<compile_context>
chip_gen: v7x
topology: tpu7x:2x2x1
jax: 0.10.0
libtpu: 0.0.40
codegen_flags: <defaults>
</compile_context>

<pallas_src>
import functools

import jax
import jax.numpy as jnp
from jax.experimental import pallas as pl
from jax.experimental.pallas import tpu as pltpu


def _round_up(x, m):
    return x if x % m == 0 else ((x + m - 1) // m) * m


def _choose_batch_tile(b_pad, cap=128):
    """Largest multiple-of-8 divisor of b_pad (<= cap), preferring >= 2 tiles
    so the 'parallel' batch axis can shard across v7x's two TensorCores."""
    divs = [t for t in range(8, min(cap, b_pad) + 1, 8) if b_pad % t == 0]
    multi = [t for t in divs if b_pad // t >= 2]
    return max(multi) if multi else max(divs)


# --------------------------------------------------------------------------
# Recurrent GRU kernel with fused input projection.
#   x (time-major, padded), h0, W_i=(E,3Hp), b_i=(1,3Hp)=[b_ir+b_hr|b_iz+b_hz|b_in],
#   W_h=(Hp,3Hp), b_h=(1,3Hp)=[0|0|b_hn]  ->  hs (S_pad, B_pad, Hp)
# --------------------------------------------------------------------------
def _gru_decoder_kernel(x_ref, h0_ref, w_i_ref, b_i_ref, w_h_ref, b_h_ref,
                        out_ref, h_scratch):
    t_blk, batch_tile, _ = x_ref.shape
    hp = h0_ref.shape[-1]

    @pl.when(pl.program_id(1) == 0)        # first time-block of this batch tile
    def _():
        h_scratch[...] = h0_ref[...]

    # Invariant loads & bias broadcasts hoisted out of the unrolled step loop
    # (JAX does not CSE broadcast_in_dim).
    w_i = w_i_ref[...]
    w_h = w_h_ref[...]
    b_i = jnp.broadcast_to(b_i_ref[...], (batch_tile, 3 * hp))
    b_h = jnp.broadcast_to(b_h_ref[...], (batch_tile, 3 * hp))

    h = h_scratch[...]                     # (batch_tile, Hp) f32 carry
    # Static unroll; at very large Hp * batch_tile reduce t_blk to limit vreg
    # pressure / spills.
    for i in range(t_blk):
        # Fused input projection: no dependence on h -> off the carry critical
        # path, its MXU pushes overlap the gate math of neighboring steps.
        gi = jnp.dot(x_ref[i], w_i, preferred_element_type=jnp.float32) + b_i
        gh = jnp.dot(h.astype(w_h.dtype), w_h,
                     preferred_element_type=jnp.float32) + b_h
        # Hp % 128 == 0 -> lane-aligned (free) slices.
        r = jax.nn.sigmoid(gi[:, :hp] + gh[:, :hp])
        z = jax.nn.sigmoid(gi[:, hp:2 * hp] + gh[:, hp:2 * hp])
        # PyTorch GRU: n = tanh(W_in x + b_in + r * (W_hn h + b_hn))
        n = jnp.tanh(gi[:, 2 * hp:] + r * gh[:, 2 * hp:])
        h = (1.0 - z) * n + z * h          # f32 gate math (v5e-safe)
        out_ref[i] = h.astype(out_ref.dtype)
    h_scratch[...] = h


def _gru_recurrence(x, h0, w_i, b_i, w_h, b_h, *, t_blk, batch_tile):
    """x: (S_pad, B_pad, E), h0: (B_pad, Hp) f32 -> (S_pad, B_pad, Hp) x.dtype."""
    s_pad, b_pad, e = x.shape
    hp = h0.shape[1]
    h3 = 3 * hp
    n_b = b_pad // batch_tile
    n_t = s_pad // t_blk

    const = lambda b, t: (0, 0)            # invariant weights / biases
    grid_spec = pltpu.PrefetchScalarGridSpec(
        num_scalar_prefetch=0,
        grid=(n_b, n_t),
        in_specs=[
            pl.BlockSpec((t_blk, batch_tile, e), lambda b, t: (t, b, 0)),   # x
            pl.BlockSpec((batch_tile, hp), lambda b, t: (b, 0)),            # h0
            pl.BlockSpec((e, h3), const, pipeline_mode=pl.Buffered(1)),     # W_i
            pl.BlockSpec((1, h3), const, pipeline_mode=pl.Buffered(1)),     # b_i
            pl.BlockSpec((hp, h3), const, pipeline_mode=pl.Buffered(1)),    # W_h
            pl.BlockSpec((1, h3), const, pipeline_mode=pl.Buffered(1)),     # b_h
        ],
        out_specs=pl.BlockSpec((t_blk, batch_tile, hp), lambda b, t: (t, b, 0)),
        scratch_shapes=[pltpu.VMEM((batch_tile, hp), jnp.float32)],
    )
    return pl.pallas_call(
        _gru_decoder_kernel,
        out_shape=jax.ShapeDtypeStruct((s_pad, b_pad, hp), x.dtype),
        grid_spec=grid_spec,
        compiler_params=pltpu.CompilerParams(
            # batch tiles independent (2nd TC on v7x); time carries the recurrence
            dimension_semantics=("parallel", "arbitrary"),
            vmem_limit_bytes=32 * 1024 * 1024),
    )(x, h0, w_i, b_i, w_h, b_h)


# --------------------------------------------------------------------------
# Deferred fc_out: tiled (M, Hp) x (Hp, V) Pallas matmul, lane-dense output.
# --------------------------------------------------------------------------
def _fc_out_kernel(h_ref, w_ref, b_ref, o_ref):
    o_ref[...] = (jnp.dot(h_ref[...].astype(w_ref.dtype), w_ref[...],
                          preferred_element_type=jnp.float32)
                  + b_ref[...]).astype(o_ref.dtype)


def _fc_out(h2d, fc_w, fc_b, *, tm=512, tn=512):
    m, hp = h2d.shape
    v = fc_w.shape[1]
    tm = min(tm, _round_up(m, 8))
    tn = min(tn, _round_up(v, 128))
    m_pad = _round_up(m, tm)
    v_pad = _round_up(v, tn)

    h2d_p = jnp.pad(h2d, ((0, m_pad - m), (0, 0)))
    fc_w_p = jnp.pad(fc_w, ((0, 0), (0, v_pad - v)))
    fc_b_p = jnp.pad(fc_b, ((0, 0), (0, v_pad - v)))
    n_m, n_v = m_pad // tm, v_pad // tn

    # Order the grid so the LARGER operand is streamed through VMEM only once
    # (its block index only changes on the outer axis); the smaller operand is
    # the one re-fetched.
    act_elems, w_elems = m_pad * hp, hp * v_pad
    if w_elems + n_v * act_elems <= act_elems + n_m * w_elems:
        grid = (n_v, n_m)                                   # fc_w streamed once
        h_map = lambda j, i: (i, 0)
        w_map = lambda j, i: (0, j)
        b_map = lambda j, i: (0, j)
        o_map = lambda j, i: (i, j)
    else:
        grid = (n_m, n_v)                                   # h2d streamed once
        h_map = lambda i, j: (i, 0)
        w_map = lambda i, j: (0, j)
        b_map = lambda i, j: (0, j)
        o_map = lambda i, j: (i, j)

    bytes_accessed = (m_pad * hp * h2d_p.dtype.itemsize
                      + hp * v_pad * fc_w_p.dtype.itemsize
                      + m_pad * v_pad * 4)
    grid_spec = pltpu.PrefetchScalarGridSpec(
        num_scalar_prefetch=0,
        grid=grid,
        in_specs=[
            pl.BlockSpec((tm, hp), h_map),
            pl.BlockSpec((hp, tn), w_map),
            pl.BlockSpec((1, tn), b_map),
        ],
        out_specs=pl.BlockSpec((tm, tn), o_map),
    )
    out = pl.pallas_call(
        _fc_out_kernel,
        out_shape=jax.ShapeDtypeStruct((m_pad, v_pad), jnp.float32),
        grid_spec=grid_spec,
        compiler_params=pltpu.CompilerParams(
            dimension_semantics=("parallel", "parallel"),
            vmem_limit_bytes=32 * 1024 * 1024),
        cost_estimate=pl.CostEstimate(flops=2 * m_pad * hp * v_pad,
                                      transcendentals=0,
                                      bytes_accessed=bytes_accessed),
    )(h2d_p, fc_w_p, fc_b_p)
    return out[:m, :v]


# --------------------------------------------------------------------------
# Batch-first wrapper matching Decoder.forward (eval mode).
# --------------------------------------------------------------------------
def decoder_forward(tgt_ids, hidden, params, seq_len=None, *,
                    t_blk=16, batch_tile=None, weight_dtype=jnp.float32):
    """tgt_ids: (B, S) int32, hidden: (B, H) f32 -> (B, S, V) f32."""
    del seq_len  # unused by the reference forward as well
    B, S = tgt_ids.shape
    H = hidden.shape[1]
    E = params["embedding"].shape[1]
    V = params["fc_w"].shape[1]

    Hp = _round_up(H, 128)                       # lane-align the gate splits
    B_pad = _round_up(B, 8)
    if batch_tile is None:
        batch_tile = _choose_batch_tile(B_pad)
    t_blk = max(1, min(t_blk, _round_up(S, 8)))
    S_pad = _round_up(S, t_blk)

    # Embedding + ReLU (dropout = identity at inference); transpose the NARROW
    # E-wide tensor to time-major before the kernel (no 3H-wide round trip).
    emb = jnp.take(params["embedding"], tgt_ids, axis=0)          # (B, S, E)
    x = jnp.maximum(emb, 0.0)
    x = jnp.transpose(x, (1, 0, 2)).astype(weight_dtype)          # (S, B, E)
    x = jnp.pad(x, ((0, S_pad - S), (0, B_pad - B), (0, 0)))

    h0 = jnp.pad(hidden, ((0, B_pad - B), (0, Hp - H))).astype(jnp.float32)

    # Gate-fused weights, zero-padded to Hp per gate (padded lanes provably stay
    # exactly 0 through the recurrence).  MXU operands cast to weight_dtype.
    def pad_gate(w, rows):                                        # -> (rows, Hp)
        return jnp.pad(w, ((0, rows - w.shape[0]), (0, Hp - H)))

    w_i = jnp.concatenate([pad_gate(params["w_ir"], E),
                           pad_gate(params["w_iz"], E),
                           pad_gate(params["w_in"], E)], axis=1).astype(weight_dtype)
    w_h = jnp.concatenate([pad_gate(params["w_hr"], Hp),
                           pad_gate(params["w_hz"], Hp),
                           pad_gate(params["w_hn"], Hp)], axis=1).astype(weight_dtype)
    b_i = jnp.concatenate([pad_gate(params["b_ir"] + params["b_hr"], 1),
                           pad_gate(params["b_iz"] + params["b_hz"], 1),
                           pad_gate(params["b_in"], 1)], axis=1)  # f32
    zero = jnp.zeros((1, Hp), jnp.float32)
    b_h = jnp.concatenate([zero, zero, pad_gate(params["b_hn"], 1)], axis=1)

    hs = _gru_recurrence(x, h0, w_i, b_i, w_h, b_h,
                         t_blk=t_blk, batch_tile=batch_tile)      # (S_pad,B_pad,Hp)

    # TODO(synk): emit batch-major hs directly from the recurrence kernel to
    #             remove this H-wide transpose round trip through HBM.
    hs = jnp.transpose(hs[:S], (1, 0, 2)).reshape(B_pad * S, Hp)

    fc_w = jnp.pad(params["fc_w"], ((0, Hp - H), (0, 0))).astype(weight_dtype)
    out = _fc_out(hs, fc_w, params["fc_b"])                       # (B_pad*S, V)
    return out.reshape(B_pad, S, V)[:B]                           # (B, S, V)


# --------------------------------------------------------------------------
# Pure-JAX reference (PyTorch GRU semantics, gate order r, z, n).
# --------------------------------------------------------------------------
def decoder_forward_ref(tgt_ids, hidden, params):
    embedded = jnp.take(params["embedding"], tgt_ids, axis=0)
    x = jnp.maximum(jnp.transpose(embedded, (1, 0, 2)), 0.0)      # (S, B, E)

    def step(h, x_t):
        r = jax.nn.sigmoid(x_t @ params["w_ir"] + params["b_ir"]
                           + h @ params["w_hr"] + params["b_hr"])
        z = jax.nn.sigmoid(x_t @ params["w_iz"] + params["b_iz"]
                           + h @ params["w_hz"] + params["b_hz"])
        n = jnp.tanh(x_t @ params["w_in"] + params["b_in"]
                     + r * (h @ params["w_hn"] + params["b_hn"]))
        h_new = (1.0 - z) * n + z * h
        return h_new, h_new

    _, hs = jax.lax.scan(step, hidden, x)                         # (S, B, H)
    out = hs @ params["fc_w"] + params["fc_b"]
    return jnp.transpose(out, (1, 0, 2))


def init_params(key, output_dim, emb_dim, enc_hid_dim, dec_hid_dim):
    # Module implies emb_dim == enc_hid_dim (GRU input) and
    # dec_hid_dim == enc_hid_dim (fc_out input); enforced here.
    assert emb_dim == enc_hid_dim and dec_hid_dim == enc_hid_dim
    E, H, V = emb_dim, dec_hid_dim, output_dim
    ks = jax.random.split(key, 16)
    s = 0.1
    return {
        "embedding": s * jax.random.normal(ks[0], (V, E), jnp.float32),
        "w_ir": s * jax.random.normal(ks[1], (E, H), jnp.float32),
        "w_iz": s * jax.random.normal(ks[2], (E, H), jnp.float32),
        "w_in": s * jax.random.normal(ks[3], (E, H), jnp.float32),
        "w_hr": s * jax.random.normal(ks[4], (H, H), jnp.float32),
        "w_hz": s * jax.random.normal(ks[5], (H, H), jnp.float32),
        "w_hn": s * jax.random.normal(ks[6], (H, H), jnp.float32),
        "b_ir": s * jax.random.normal(ks[7], (1, H), jnp.float32),
        "b_iz": s * jax.random.normal(ks[8], (1, H), jnp.float32),
        "b_in": s * jax.random.normal(ks[9], (1, H), jnp.float32),
        "b_hr": s * jax.random.normal(ks[10], (1, H), jnp.float32),
        "b_hz": s * jax.random.normal(ks[11], (1, H), jnp.float32),
        "b_hn": s * jax.random.normal(ks[12], (1, H), jnp.float32),
        "fc_w": s * jax.random.normal(ks[13], (H, V), jnp.float32),
        "fc_b": s * jax.random.normal(ks[14], (1, V), jnp.float32),
    }


if __name__ == "__main__":
    B, S = 2, 8
    V, E, H = 128, 32, 32          # output_dim, emb_dim, enc/dec_hid_dim

    key = jax.random.PRNGKey(0)
    kp, kt, kh = jax.random.split(key, 3)
    params = init_params(kp, output_dim=V, emb_dim=E,
                         enc_hid_dim=E, dec_hid_dim=H)

    tgt = jax.random.randint(kt, (B, S), 0, V, dtype=jnp.int32)
    hidden = jax.random.normal(kh, (B, H), jnp.float32)

    ref = decoder_forward_ref(tgt, hidden, params)

    # f32 path: exact comparison against the f32 reference.
    fwd = jax.jit(functools.partial(decoder_forward, params=params))
    out = jax.block_until_ready(fwd(tgt, hidden))
    assert out.shape == (B, S, V), out.shape
    max_err = float(jnp.max(jnp.abs(out - ref)))
    assert jnp.allclose(out, ref, atol=2e-4, rtol=2e-4), f"f32 mismatch: {max_err}"

    # bf16 weight path (fast path on v6e/v7x MXU; f32 accumulate, f32 gate math).
    fwd_bf16 = jax.jit(functools.partial(decoder_forward, params=params,
                                         weight_dtype=jnp.bfloat16))
    out_b = jax.block_until_ready(fwd_bf16(tgt, hidden))
    max_err_b = float(jnp.max(jnp.abs(out_b - ref)))
    assert jnp.allclose(out_b, ref, atol=5e-2, rtol=5e-2), \
        f"bf16 mismatch: {max_err_b}"

    print("KERNEL_OK")
</pallas_src>

<mosaic_0001>
module attributes {stable_mosaic.version = 11 : i64} {
  func.func @_fc_out_kernel(%arg0: i32, %arg1: i32, %arg2: memref<64x128xf32, #tpu.memory_space<vmem>>, %arg3: memref<128x128xf32, #tpu.memory_space<vmem>>, %arg4: memref<1x128xf32, #tpu.memory_space<vmem>>, %arg5: memref<64x128xf32, #tpu.memory_space<vmem>>) attributes {dimension_semantics = [#tpu.dimension_semantics<parallel>, #tpu.dimension_semantics<parallel>], iteration_bounds = array<i64: 1, 1>, scalar_prefetch = 0 : i64, scratch_operands = 0 : i64, tpu.core_type = #tpu.core_type<tc>, window_params = [{transform_indices = @transform_0, window_bounds = array<i64: 64, 128>}, {transform_indices = @transform_1, window_bounds = array<i64: 128, 128>}, {transform_indices = @transform_2, window_bounds = array<i64: 1, 128>}, {transform_indices = @transform_3, window_bounds = array<i64: 64, 128>}]} {
    %c0 = arith.constant 0 : index
    %c0_0 = arith.constant 0 : index
    %0 = vector.load %arg2[%c0, %c0_0] : memref<64x128xf32, #tpu.memory_space<vmem>>, vector<64x128xf32>
    %c0_1 = arith.constant 0 : index
    %c0_2 = arith.constant 0 : index
    %1 = vector.load %arg3[%c0_1, %c0_2] : memref<128x128xf32, #tpu.memory_space<vmem>>, vector<128x128xf32>
    %cst = arith.constant dense<0.000000e+00> : vector<64x128xf32>
    %2 = tpu.matmul %0, %1, %cst {dimension_numbers = #tpu.dot_dimension_numbers<[1], [0], [0], [1], [0, 0, 1, 1], [], []>} : vector<64x128xf32>, vector<128x128xf32>, vector<64x128xf32> -> vector<64x128xf32>
    %c0_3 = arith.constant 0 : index
    %c0_4 = arith.constant 0 : index
    %3 = vector.load %arg4[%c0_3, %c0_4] : memref<1x128xf32, #tpu.memory_space<vmem>>, vector<1x128xf32>
    %4 = vector.broadcast %3 : vector<1x128xf32> to vector<64x128xf32>
    %5 = arith.addf %2, %4 : vector<64x128xf32>
    %c0_5 = arith.constant 0 : index
    %c0_6 = arith.constant 0 : index
    %6 = vector.load %arg5[%c0_5, %c0_6] : memref<64x128xf32, #tpu.memory_space<vmem>>, vector<64x128xf32>
    tpu.vector_store %arg5[%c0_5, %c0_6], %5 {strides = array<i32>} : memref<64x128xf32, #tpu.memory_space<vmem>>, vector<64x128xf32>,
    return
  }
  func.func @transform_0(%arg0: i32, %arg1: i32) -> (i32, i32) {
    %c0_i32 = arith.constant 0 : i32
    %c0_i32_0 = arith.constant 0 : i32
    return %arg1, %c0_i32 : i32, i32
  }
  func.func @transform_1(%arg0: i32, %arg1: i32) -> (i32, i32) {
    %c0_i32 = arith.constant 0 : i32
    %c0_i32_0 = arith.constant 0 : i32
    return %c0_i32, %arg0 : i32, i32
  }
  func.func @transform_2(%arg0: i32, %arg1: i32) -> (i32, i32) {
    %c0_i32 = arith.constant 0 : i32
    %c0_i32_0 = arith.constant 0 : i32
    return %c0_i32, %arg0 : i32, i32
  }
  func.func @transform_3(%arg0: i32, %arg1: i32) -> (i32, i32) {
    %c0_i32 = arith.constant 0 : i32
    return %arg1, %arg0 : i32, i32
  }
}

module attributes {stable_mosaic.version = 11 : i64} {
  func.func @_gru_decoder_kernel(%arg0: i32, %arg1: i32, %arg2: memref<8x8x32xf32, #tpu.memory_space<vmem>>, %arg3: memref<8x128xf32, #tpu.memory_space<vmem>>, %arg4: memref<32x384xf32, #tpu.memory_space<vmem>>, %arg5: memref<1x384xf32, #tpu.memory_space<vmem>>, %arg6: memref<128x384xf32, #tpu.memory_space<vmem>>, %arg7: memref<1x384xf32, #tpu.memory_space<vmem>>, %arg8: memref<8x8x128xf32, #tpu.memory_space<vmem>>, %arg9: memref<8x128xf32, #tpu.memory_space<vmem>>) attributes {dimension_semantics = [#tpu.dimension_semantics<parallel>, #tpu.dimension_semantics<arbitrary>], iteration_bounds = array<i64: 1, 1>, scalar_prefetch = 0 : i64, scratch_operands = 1 : i64, tpu.core_type = #tpu.core_type<tc>, window_params = [{transform_indices = @transform_0, window_bounds = array<i64: 8, 8, 32>}, {transform_indices = @transform_1, window_bounds = array<i64: 8, 128>}, {pipeline_mode = #tpu.pipeline_mode<synchronous>, transform_indices = @transform_2, window_bounds = array<i64: 32, 384>}, {pipeline_mode = #tpu.pipeline_mode<synchronous>, transform_indices = @transform_3, window_bounds = array<i64: 1, 384>}, {pipeline_mode = #tpu.pipeline_mode<synchronous>, transform_indices = @transform_4, window_bounds = array<i64: 128, 384>}, {pipeline_mode = #tpu.pipeline_mode<synchronous>, transform_indices = @transform_5, window_bounds = array<i64: 1, 384>}, {transform_indices = @transform_6, window_bounds = array<i64: 8, 8, 128>}]} {
    %c0_i32 = arith.constant 0 : i32
    %0 = arith.cmpi eq, %arg1, %c0_i32 : i32
    %1 = arith.extui %0 : i1 to i32
    %c0_i32_0 = arith.constant 0 : i32
    %2 = arith.cmpi ne, %1, %c0_i32_0 : i32
    scf.if %2 {
      %c0_92 = arith.constant 0 : index
      %c0_93 = arith.constant 0 : index
      %293 = vector.load %arg3[%c0_92, %c0_93] : memref<8x128xf32, #tpu.memory_space<vmem>>, vector<8x128xf32>
      %c0_94 = arith.constant 0 : index
      %c0_95 = arith.constant 0 : index
      %294 = vector.load %arg9[%c0_94, %c0_95] : memref<8x128xf32, #tpu.memory_space<vmem>>, vector<8x128xf32>
      tpu.vector_store %arg9[%c0_94, %c0_95], %293 {strides = array<i32>} : memref<8x128xf32, #tpu.memory_space<vmem>>, vector<8x128xf32>,
    } else {
    }
    %c0 = arith.constant 0 : index
    %c0_1 = arith.constant 0 : index
    %3 = vector.load %arg4[%c0, %c0_1] : memref<32x384xf32, #tpu.memory_space<vmem>>, vector<32x384xf32>
    %c0_2 = arith.constant 0 : index
    %c0_3 = arith.constant 0 : index
    %4 = vector.load %arg6[%c0_2, %c0_3] : memref<128x384xf32, #tpu.memory_space<vmem>>, vector<128x384xf32>
    %c0_4 = arith.constant 0 : index
    %c0_5 = arith.constant 0 : index
    %5 = vector.load %arg5[%c0_4, %c0_5] : memref<1x384xf32, #tpu.memory_space<vmem>>, vector<1x384xf32>
    %6 = vector.shape_cast %5 : vector<1x384xf32> to vector<1x384xf32>
    %7 = vector.broadcast %6 : vector<1x384xf32> to vector<8x384xf32>
    %c0_6 = arith.constant 0 : index
    %c0_7 = arith.constant 0 : index
    %8 = vector.load %arg7[%c0_6, %c0_7] : memref<1x384xf32, #tpu.memory_space<vmem>>, vector<1x384xf32>
    %9 = vector.shape_cast %8 : vector<1x384xf32> to vector<1x384xf32>
    %10 = vector.broadcast %9 : vector<1x384xf32> to vector<8x384xf32>
    %c0_8 = arith.constant 0 : index
    %c0_9 = arith.constant 0 : index
    %11 = vector.load %arg9[%c0_8, %c0_9] : memref<8x128xf32, #tpu.memory_space<vmem>>, vector<8x128xf32>
    %c0_10 = arith.constant 0 : index
    %c0_11 = arith.constant 0 : index
    %c0_12 = arith.constant 0 : index
    %12 = vector.load %arg2[%c0_10, %c0_11, %c0_12] : memref<8x8x32xf32, #tpu.memory_space<vmem>>, vector<1x8x32xf32>
    %13 = vector.shape_cast %12 : vector<1x8x32xf32> to vector<8x32xf32>
    %cst = arith.constant dense<0.000000e+00> : vector<8x384xf32>
    %14 = tpu.matmul %13, %3, %cst {dimension_numbers = #tpu.dot_dimension_numbers<[1], [0], [0], [1], [0, 0, 1, 1], [], []>} : vector<8x32xf32>, vector<32x384xf32>, vector<8x384xf32> -> vector<8x384xf32>
    %15 = arith.addf %14, %7 : vector<8x384xf32>
    %cst_13 = arith.constant dense<0.000000e+00> : vector<8x384xf32>
    %16 = tpu.matmul %11, %4, %cst_13 {dimension_numbers = #tpu.dot_dimension_numbers<[1], [0], [0], [1], [0, 0, 1, 1], [], []>} : vector<8x128xf32>, vector<128x384xf32>, vector<8x384xf32> -> vector<8x384xf32>
    %17 = arith.addf %16, %10 : vector<8x384xf32>
    %18 = vector.extract_strided_slice %15 {offsets = [0, 0], sizes = [8, 128], strides = [1, 1]} : vector<8x384xf32> to vector<8x128xf32>
    %19 = vector.extract_strided_slice %17 {offsets = [0, 0], sizes = [8, 128], strides = [1, 1]} : vector<8x384xf32> to vector<8x128xf32>
    %20 = arith.addf %18, %19 : vector<8x128xf32>
    %21 = arith.negf %20 : vector<8x128xf32>
    %22 = math.exp %21 : vector<8x128xf32>
    %cst_14 = arith.constant 1.000000e+00 : f32
    %23 = vector.broadcast %cst_14 : f32 to vector<8x128xf32>
    %24 = arith.addf %23, %22 : vector<8x128xf32>
    %25 = arith.divf %23, %24 : vector<8x128xf32>
    %26 = vector.extract_strided_slice %15 {offsets = [0, 128], sizes = [8, 128], strides = [1, 1]} : vector<8x384xf32> to vector<8x128xf32>
    %27 = vector.extract_strided_slice %17 {offsets = [0, 128], sizes = [8, 128], strides = [1, 1]} : vector<8x384xf32> to vector<8x128xf32>
    %28 = arith.addf %26, %27 : vector<8x128xf32>
    %29 = arith.negf %28 : vector<8x128xf32>
    %30 = math.exp %29 : vector<8x128xf32>
    %cst_15 = arith.constant 1.000000e+00 : f32
    %31 = vector.broadcast %cst_15 : f32 to vector<8x128xf32>
    %32 = arith.addf %31, %30 : vector<8x128xf32>
    %33 = arith.divf %31, %32 : vector<8x128xf32>
    %34 = vector.extract_strided_slice %15 {offsets = [0, 256], sizes = [8, 128], strides = [1, 1]} : vector<8x384xf32> to vector<8x128xf32>
    %35 = vector.extract_strided_slice %17 {offsets = [0, 256], sizes = [8, 128], strides = [1, 1]} : vector<8x384xf32> to vector<8x128xf32>
    %36 = arith.mulf %25, %35 : vector<8x128xf32>
    %37 = arith.addf %34, %36 : vector<8x128xf32>
    %38 = math.tanh %37 : vector<8x128xf32>
    %cst_16 = arith.constant 1.000000e+00 : f32
    %39 = vector.broadcast %cst_16 : f32 to vector<8x128xf32>
    %40 = arith.subf %39, %33 : vector<8x128xf32>
    %41 = arith.mulf %40, %38 : vector<8x128xf32>
    %42 = arith.mulf %33, %11 : vector<8x128xf32>
    %43 = arith.addf %41, %42 : vector<8x128xf32>
    %c0_17 = arith.constant 0 : index
    %c0_18 = arith.constant 0 : index
    %c0_19 = arith.constant 0 : index
    %44 = vector.load %arg8[%c0_17, %c0_18, %c0_19] : memref<8x8x128xf32, #tpu.memory_space<vmem>>, vector<1x8x128xf32>
    %45 = vector.shape_cast %44 : vector<1x8x128xf32> to vector<8x128xf32>
    %46 = vector.shape_cast %43 : vector<8x128xf32> to vector<1x8x128xf32>
    tpu.vector_store %arg8[%c0_17, %c0_18, %c0_19], %46 {strides = array<i32>} : memref<8x8x128xf32, #tpu.memory_space<vmem>>, vector<1x8x128xf32>,
    %c1 = arith.constant 1 : index
    %c0_20 = arith.constant 0 : index
    %c0_21 = arith.constant 0 : index
    %47 = vector.load %arg2[%c1, %c0_20, %c0_21] : memref<8x8x32xf32, #tpu.memory_space<vmem>>, vector<1x8x32xf32>
    %48 = vector.shape_cast %47 : vector<1x8x32xf32> to vector<8x32xf32>
    %cst_22 = arith.constant dense<0.000000e+00> : vector<8x384xf32>
    %49 = tpu.matmul %48, %3, %cst_22 {dimension_numbers = #tpu.dot_dimension_numbers<[1], [0], [0], [1], [0, 0, 1, 1], [], []>} : vector<8x32xf32>, vector<32x384xf32>, vector<8x384xf32> -> vector<8x384xf32>
    %50 = arith.addf %49, %7 : vector<8x384xf32>
    %cst_23 = arith.constant dense<0.000000e+00> : vector<8x384xf32>
    %51 = tpu.matmul %43, %4, %cst_23 {dimension_numbers = #tpu.dot_dimension_numbers<[1], [0], [0], [1], [0, 0, 1, 1], [], []>} : vector<8x128xf32>, vector<128x384xf32>, vector<8x384xf32> -> vector<8x384xf32>
    %52 = arith.addf %51, %10 : vector<8x384xf32>
    %53 = vector.extract_strided_slice %50 {offsets = [0, 0], sizes = [8, 128], strides = [1, 1]} : vector<8x384xf32> to vector<8x128xf32>
    %54 = vector.extract_strided_slice %52 {offsets = [0, 0], sizes = [8, 128], strides = [1, 1]} : vector<8x384xf32> to vector<8x128xf32>
    %55 = arith.addf %53, %54 : vector<8x128xf32>
    %56 = arith.negf %55 : vector<8x128xf32>
    %57 = math.exp %56 : vector<8x128xf32>
    %cst_24 = arith.constant 1.000000e+00 : f32
    %58 = vector.broadcast %cst_24 : f32 to vector<8x128xf32>
    %59 = arith.addf %58, %57 : vector<8x128xf32>
    %60 = arith.divf %58, %59 : vector<8x128xf32>
    %61 = vector.extract_strided_slice %50 {offsets = [0, 128], sizes = [8, 128], strides = [1, 1]} : vector<8x384xf32> to vector<8x128xf32>
    %62 = vector.extract_strided_slice %52 {offsets = [0, 128], sizes = [8, 128], strides = [1, 1]} : vector<8x384xf32> to vector<8x128xf32>
    %63 = arith.addf %61, %62 : vector<8x128xf32>
    %64 = arith.negf %63 : vector<8x128xf32>
    %65 = math.exp %64 : vector<8x128xf32>
    %cst_25 = arith.constant 1.000000e+00 : f32
    %66 = vector.broadcast %cst_25 : f32 to vector<8x128xf32>
    %67 = arith.addf %66, %65 : vector<8x128xf32>
    %68 = arith.divf %66, %67 : vector<8x128xf32>
    %69 = vector.extract_strided_slice %50 {offsets = [0, 256], sizes = [8, 128], strides = [1, 1]} : vector<8x384xf32> to vector<8x128xf32>
    %70 = vector.extract_strided_slice %52 {offsets = [0, 256], sizes = [8, 128], strides = [1, 1]} : vector<8x384xf32> to vector<8x128xf32>
    %71 = arith.mulf %60, %70 : vector<8x128xf32>
    %72 = arith.addf %69, %71 : vector<8x128xf32>
    %73 = math.tanh %72 : vector<8x128xf32>
    %cst_26 = arith.constant 1.000000e+00 : f32
    %74 = vector.broadcast %cst_26 : f32 to vector<8x128xf32>
    %75 = arith.subf %74, %68 : vector<8x128xf32>
    %76 = arith.mulf %75, %73 : vector<8x128xf32>
    %77 = arith.mulf %68, %43 : vector<8x128xf32>
    %78 = arith.addf %76, %77 : vector<8x128xf32>
    %c1_27 = arith.constant 1 : index
    %c0_28 = arith.constant 0 : index
    %c0_29 = arith.constant 0 : index
    %79 = vector.load %arg8[%c1_27, %c0_28, %c0_29] : memref<8x8x128xf32, #tpu.memory_space<vmem>>, vector<1x8x128xf32>
    %80 = vector.shape_cast %79 : vector<1x8x128xf32> to vector<8x128xf32>
    %81 = vector.shape_cast %78 : vector<8x128xf32> to vector<1x8x128xf32>
    tpu.vector_store %arg8[%c1_27, %c0_28, %c0_29], %81 {strides = array<i32>} : memref<8x8x128xf32, #tpu.memory_space<vmem>>, vector<1x8x128xf32>,
    %c2 = arith.constant 2 : index
    %c0_30 = arith.constant 0 : index
    %c0_31 = arith.constant 0 : index
    %82 = vector.load %arg2[%c2, %c0_30, %c0_31] : memref<8x8x32xf32, #tpu.memory_space<vmem>>, vector<1x8x32xf32>
    %83 = vector.shape_cast %82 : vector<1x8x32xf32> to vector<8x32xf32>
    %cst_32 = arith.constant dense<0.000000e+00> : vector<8x384xf32>
    %84 = tpu.matmul %83, %3, %cst_32 {dimension_numbers = #tpu.dot_dimension_numbers<[1], [0], [0], [1], [0, 0, 1, 1], [], []>} : vector<8x32xf32>, vector<32x384xf32>, vector<8x384xf32> -> vector<8x384xf32>
    %85 = arith.addf %84, %7 : vector<8x384xf32>
    %cst_33 = arith.constant dense<0.000000e+00> : vector<8x384xf32>
    %86 = tpu.matmul %78, %4, %cst_33 {dimension_numbers = #tpu.dot_dimension_numbers<[1], [0], [0], [1], [0, 0, 1, 1], [], []>} : vector<8x128xf32>, vector<128x384xf32>, vector<8x384xf32> -> vector<8x384xf32>
    %87 = arith.addf %86, %10 : vector<8x384xf32>
    %88 = vector.extract_strided_slice %85 {offsets = [0, 0], sizes = [8, 128], strides = [1, 1]} : vector<8x384xf32> to vector<8x128xf32>
    %89 = vector.extract_strided_slice %87 {offsets = [0, 0], sizes = [8, 128], strides = [1, 1]} : vector<8x384xf32> to vector<8x128xf32>
    %90 = arith.addf %88, %89 : vector<8x128xf32>
    %91 = arith.negf %90 : vector<8x128xf32>
    %92 = math.exp %91 : vector<8x128xf32>
    %cst_34 = arith.constant 1.000000e+00 : f32
    %93 = vector.broadcast %cst_34 : f32 to vector<8x128xf32>
    %94 = arith.addf %93, %92 : vector<8x128xf32>
    %95 = arith.divf %93, %94 : vector<8x128xf32>
    %96 = vector.extract_strided_slice %85 {offsets = [0, 128], sizes = [8, 128], strides = [1, 1]} : vector<8x384xf32> to vector<8x128xf32>
    %97 = vector.extract_strided_slice %87 {offsets = [0, 128], sizes = [8, 128], strides = [1, 1]} : vector<8x384xf32> to vector<8x128xf32>
    %98 = arith.addf %96, %97 : vector<8x128xf32>
    %99 = arith.negf %98 : vector<8x128xf32>
    %100 = math.exp %99 : vector<8x128xf32>
    %cst_35 = arith.constant 1.000000e+00 : f32
    %101 = vector.broadcast %cst_35 : f32 to vector<8x128xf32>
    %102 = arith.addf %101, %100 : vector<8x128xf32>
    %103 = arith.divf %101, %102 : vector<8x128xf32>
    %104 = vector.extract_strided_slice %85 {offsets = [0, 256], sizes = [8, 128], strides = [1, 1]} : vector<8x384xf32> to vector<8x128xf32>
    %105 = vector.extract_strided_slice %87 {offsets = [0, 256], sizes = [8, 128], strides = [1, 1]} : vector<8x384xf32> to vector<8x128xf32>
    %106 = arith.mulf %95, %105 : vector<8x128xf32>
    %107 = arith.addf %104, %106 : vector<8x128xf32>
    %108 = math.tanh %107 : vector<8x128xf32>
    %cst_36 = arith.constant 1.000000e+00 : f32
    %109 = vector.broadcast %cst_36 : f32 to vector<8x128xf32>
    %110 = arith.subf %109, %103 : vector<8x128xf32>
    %111 = arith.mulf %110, %108 : vector<8x128xf32>
    %112 = arith.mulf %103, %78 : vector<8x128xf32>
    %113 = arith.addf %111, %112 : vector<8x128xf32>
    %c2_37 = arith.constant 2 : index
    %c0_38 = arith.constant 0 : index
    %c0_39 = arith.constant 0 : index
    %114 = vector.load %arg8[%c2_37, %c0_38, %c0_39] : memref<8x8x128xf32, #tpu.memory_space<vmem>>, vector<1x8x128xf32>
    %115 = vector.shape_cast %114 : vector<1x8x128xf32> to vector<8x128xf32>
    %116 = vector.shape_cast %113 : vector<8x128xf32> to vector<1x8x128xf32>
    tpu.vector_store %arg8[%c2_37, %c0_38, %c0_39], %116 {strides = array<i32>} : memref<8x8x128xf32, #tpu.memory_space<vmem>>, vector<1x8x128xf32>,
    %c3 = arith.constant 3 : index
    %c0_40 = arith.constant 0 : index
    %c0_41 = arith.constant 0 : index
    %117 = vector.load %arg2[%c3, %c0_40, %c0_41] : memref<8x8x32xf32, #tpu.memory_space<vmem>>, vector<1x8x32xf32>
    %118 = vector.shape_cast %117 : vector<1x8x32xf32> to vector<8x32xf32>
    %cst_42 = arith.constant dense<0.000000e+00> : vector<8x384xf32>
    %119 = tpu.matmul %118, %3, %cst_42 {dimension_numbers = #tpu.dot_dimension_numbers<[1], [0], [0], [1], [0, 0, 1, 1], [], []>} : vector<8x32xf32>, vector<32x384xf32>, vector<8x384xf32> -> vector<8x384xf32>
    %120 = arith.addf %119, %7 : vector<8x384xf32>
    %cst_43 = arith.constant dense<0.000000e+00> : vector<8x384xf32>
    %121 = tpu.matmul %113, %4, %cst_43 {dimension_numbers = #tpu.dot_dimension_numbers<[1], [0], [0], [1], [0, 0, 1, 1], [], []>} : vector<8x128xf32>, vector<128x384xf32>, vector<8x384xf32> -> vector<8x384xf32>
    %122 = arith.addf %121, %10 : vector<8x384xf32>
    %123 = vector.extract_strided_slice %120 {offsets = [0, 0], sizes = [8, 128], strides = [1, 1]} : vector<8x384xf32> to vector<8x128xf32>
    %124 = vector.extract_strided_slice %122 {offsets = [0, 0], sizes = [8, 128], strides = [1, 1]} : vector<8x384xf32> to vector<8x128xf32>
    %125 = arith.addf %123, %124 : vector<8x128xf32>
    %126 = arith.negf %125 : vector<8x128xf32>
    %127 = math.exp %126 : vector<8x128xf32>
    %cst_44 = arith.constant 1.000000e+00 : f32
    %128 = vector.broadcast %cst_44 : f32 to vector<8x128xf32>
    %129 = arith.addf %128, %127 : vector<8x128xf32>
    %130 = arith.divf %128, %129 : vector<8x128xf32>
    %131 = vector.extract_strided_slice %120 {offsets = [0, 128], sizes = [8, 128], strides = [1, 1]} : vector<8x384xf32> to vector<8x128xf32>
    %132 = vector.extract_strided_slice %122 {offsets = [0, 128], sizes = [8, 128], strides = [1, 1]} : vector<8x384xf32> to vector<8x128xf32>
    %133 = arith.addf %131, %132 : vector<8x128xf32>
    %134 = arith.negf %133 : vector<8x128xf32>
    %135 = math.exp %134 : vector<8x128xf32>
    %cst_45 = arith.constant 1.000000e+00 : f32
    %136 = vector.broadcast %cst_45 : f32 to vector<8x128xf32>
    %137 = arith.addf %136, %135 : vector<8x128xf32>
    %138 = arith.divf %136, %137 : vector<8x128xf32>
    %139 = vector.extract_strided_slice %120 {offsets = [0, 256], sizes = [8, 128], strides = [1, 1]} : vector<8x384xf32> to vector<8x128xf32>
    %140 = vector.extract_strided_slice %122 {offsets = [0, 256], sizes = [8, 128], strides = [1, 1]} : vector<8x384xf32> to vector<8x128xf32>
    %141 = arith.mulf %130, %140 : vector<8x128xf32>
    %142 = arith.addf %139, %141 : vector<8x128xf32>
    %143 = math.tanh %142 : vector<8x128xf32>
    %cst_46 = arith.constant 1.000000e+00 : f32
    %144 = vector.broadcast %cst_46 : f32 to vector<8x128xf32>
    %145 = arith.subf %144, %138 : vector<8x128xf32>
    %146 = arith.mulf %145, %143 : vector<8x128xf32>
    %147 = arith.mulf %138, %113 : vector<8x128xf32>
    %148 = arith.addf %146, %147 : vector<8x128xf32>
    %c3_47 = arith.constant 3 : index
    %c0_48 = arith.constant 0 : index
    %c0_49 = arith.constant 0 : index
    %149 = vector.load %arg8[%c3_47, %c0_48, %c0_49] : memref<8x8x128xf32, #tpu.memory_space<vmem>>, vector<1x8x128xf32>
    %150 = vector.shape_cast %149 : vector<1x8x128xf32> to vector<8x128xf32>
    %151 = vector.shape_cast %148 : vector<8x128xf32> to vector<1x8x128xf32>
    tpu.vector_store %arg8[%c3_47, %c0_48, %c0_49], %151 {strides = array<i32>} : memref<8x8x128xf32, #tpu.memory_space<vmem>>, vector<1x8x128xf32>,
    %c4 = arith.constant 4 : index
    %c0_50 = arith.constant 0 : index
    %c0_51 = arith.constant 0 : index
    %152 = vector.load %arg2[%c4, %c0_50, %c0_51] : memref<8x8x32xf32, #tpu.memory_space<vmem>>, vector<1x8x32xf32>
    %153 = vector.shape_cast %152 : vector<1x8x32xf32> to vector<8x32xf32>
    %cst_52 = arith.constant dense<0.000000e+00> : vector<8x384xf32>
    %154 = tpu.matmul %153, %3, %cst_52 {dimension_numbers = #tpu.dot_dimension_numbers<[1], [0], [0], [1], [0, 0, 1, 1], [], []>} : vector<8x32xf32>, vector<32x384xf32>, vector<8x384xf32> -> vector<8x384xf32>
    %155 = arith.addf %154, %7 : vector<8x384xf32>
    %cst_53 = arith.constant dense<0.000000e+00> : vector<8x384xf32>
    %156 = tpu.matmul %148, %4, %cst_53 {dimension_numbers = #tpu.dot_dimension_numbers<[1], [0], [0], [1], [0, 0, 1, 1], [], []>} : vector<8x128xf32>, vector<128x384xf32>, vector<8x384xf32> -> vector<8x384xf32>
    %157 = arith.addf %156, %10 : vector<8x384xf32>
    %158 = vector.extract_strided_slice %155 {offsets = [0, 0], sizes = [8, 128], strides = [1, 1]} : vector<8x384xf32> to vector<8x128xf32>
    %159 = vector.extract_strided_slice %157 {offsets = [0, 0], sizes = [8, 128], strides = [1, 1]} : vector<8x384xf32> to vector<8x128xf32>
    %160 = arith.addf %158, %159 : vector<8x128xf32>
    %161 = arith.negf %160 : vector<8x128xf32>
    %162 = math.exp %161 : vector<8x128xf32>
    %cst_54 = arith.constant 1.000000e+00 : f32
    %163 = vector.broadcast %cst_54 : f32 to vector<8x128xf32>
    %164 = arith.addf %163, %162 : vector<8x128xf32>
    %165 = arith.divf %163, %164 : vector<8x128xf32>
    %166 = vector.extract_strided_slice %155 {offsets = [0, 128], sizes = [8, 128], strides = [1, 1]} : vector<8x384xf32> to vector<8x128xf32>
    %167 = vector.extract_strided_slice %157 {offsets = [0, 128], sizes = [8, 128], strides = [1, 1]} : vector<8x384xf32> to vector<8x128xf32>
    %168 = arith.addf %166, %167 : vector<8x128xf32>
    %169 = arith.negf %168 : vector<8x128xf32>
    %170 = math.exp %169 : vector<8x128xf32>
    %cst_55 = arith.constant 1.000000e+00 : f32
    %171 = vector.broadcast %cst_55 : f32 to vector<8x128xf32>
    %172 = arith.addf %171, %170 : vector<8x128xf32>
    %173 = arith.divf %171, %172 : vector<8x128xf32>
    %174 = vector.extract_strided_slice %155 {offsets = [0, 256], sizes = [8, 128], strides = [1, 1]} : vector<8x384xf32> to vector<8x128xf32>
    %175 = vector.extract_strided_slice %157 {offsets = [0, 256], sizes = [8, 128], strides = [1, 1]} : vector<8x384xf32> to vector<8x128xf32>
    %176 = arith.mulf %165, %175 : vector<8x128xf32>
    %177 = arith.addf %174, %176 : vector<8x128xf32>
    %178 = math.tanh %177 : vector<8x128xf32>
    %cst_56 = arith.constant 1.000000e+00 : f32
    %179 = vector.broadcast %cst_56 : f32 to vector<8x128xf32>
    %180 = arith.subf %179, %173 : vector<8x128xf32>
    %181 = arith.mulf %180, %178 : vector<8x128xf32>
    %182 = arith.mulf %173, %148 : vector<8x128xf32>
    %183 = arith.addf %181, %182 : vector<8x128xf32>
    %c4_57 = arith.constant 4 : index
    %c0_58 = arith.constant 0 : index
    %c0_59 = arith.constant 0 : index
    %184 = vector.load %arg8[%c4_57, %c0_58, %c0_59] : memref<8x8x128xf32, #tpu.memory_space<vmem>>, vector<1x8x128xf32>
    %185 = vector.shape_cast %184 : vector<1x8x128xf32> to vector<8x128xf32>
    %186 = vector.shape_cast %183 : vector<8x128xf32> to vector<1x8x128xf32>
    tpu.vector_store %arg8[%c4_57, %c0_58, %c0_59], %186 {strides = array<i32>} : memref<8x8x128xf32, #tpu.memory_space<vmem>>, vector<1x8x128xf32>,
    %c5 = arith.constant 5 : index
    %c0_60 = arith.constant 0 : index
    %c0_61 = arith.constant 0 : index
    %187 = vector.load %arg2[%c5, %c0_60, %c0_61] : memref<8x8x32xf32, #tpu.memory_space<vmem>>, vector<1x8x32xf32>
    %188 = vector.shape_cast %187 : vector<1x8x32xf32> to vector<8x32xf32>
    %cst_62 = arith.constant dense<0.000000e+00> : vector<8x384xf32>
    %189 = tpu.matmul %188, %3, %cst_62 {dimension_numbers = #tpu.dot_dimension_numbers<[1], [0], [0], [1], [0, 0, 1, 1], [], []>} : vector<8x32xf32>, vector<32x384xf32>, vector<8x384xf32> -> vector<8x384xf32>
    %190 = arith.addf %189, %7 : vector<8x384xf32>
    %cst_63 = arith.constant dense<0.000000e+00> : vector<8x384xf32>
    %191 = tpu.matmul %183, %4, %cst_63 {dimension_numbers = #tpu.dot_dimension_numbers<[1], [0], [0], [1], [0, 0, 1, 1], [], []>} : vector<8x128xf32>, vector<128x384xf32>, vector<8x384xf32> -> vector<8x384xf32>
    %192 = arith.addf %191, %10 : vector<8x384xf32>
    %193 = vector.extract_strided_slice %190 {offsets = [0, 0], sizes = [8, 128], strides = [1, 1]} : vector<8x384xf32> to vector<8x128xf32>
    %194 = vector.extract_strided_slice %192 {offsets = [0, 0], sizes = [8, 128], strides = [1, 1]} : vector<8x384xf32> to vector<8x128xf32>
    %195 = arith.addf %193, %194 : vector<8x128xf32>
    %196 = arith.negf %195 : vector<8x128xf32>
    %197 = math.exp %196 : vector<8x128xf32>
    %cst_64 = arith.constant 1.000000e+00 : f32
    %198 = vector.broadcast %cst_64 : f32 to vector<8x128xf32>
    %199 = arith.addf %198, %197 : vector<8x128xf32>
    %200 = arith.divf %198, %199 : vector<8x128xf32>
    %201 = vector.extract_strided_slice %190 {offsets = [0, 128], sizes = [8, 128], strides = [1, 1]} : vector<8x384xf32> to vector<8x128xf32>
    %202 = vector.extract_strided_slice %192 {offsets = [0, 128], sizes = [8, 128], strides = [1, 1]} : vector<8x384xf32> to vector<8x128xf32>
    %203 = arith.addf %201, %202 : vector<8x128xf32>
    %204 = arith.negf %203 : vector<8x128xf32>
    %205 = math.exp %204 : vector<8x128xf32>
    %cst_65 = arith.constant 1.000000e+00 : f32
    %206 = vector.broadcast %cst_65 : f32 to vector<8x128xf32>
    %207 = arith.addf %206, %205 : vector<8x128xf32>
    %208 = arith.divf %206, %207 : vector<8x128xf32>
    %209 = vector.extract_strided_slice %190 {offsets = [0, 256], sizes = [8, 128], strides = [1, 1]} : vector<8x384xf32> to vector<8x128xf32>
    %210 = vector.extract_strided_slice %192 {offsets = [0, 256], sizes = [8, 128], strides = [1, 1]} : vector<8x384xf32> to vector<8x128xf32>
    %211 = arith.mulf %200, %210 : vector<8x128xf32>
    %212 = arith.addf %209, %211 : vector<8x128xf32>
    %213 = math.tanh %212 : vector<8x128xf32>
    %cst_66 = arith.constant 1.000000e+00 : f32
    %214 = vector.broadcast %cst_66 : f32 to vector<8x128xf32>
    %215 = arith.subf %214, %208 : vector<8x128xf32>
    %216 = arith.mulf %215, %213 : vector<8x128xf32>
    %217 = arith.mulf %208, %183 : vector<8x128xf32>
    %218 = arith.addf %216, %217 : vector<8x128xf32>
    %c5_67 = arith.constant 5 : index
    %c0_68 = arith.constant 0 : index
    %c0_69 = arith.constant 0 : index
    %219 = vector.load %arg8[%c5_67, %c0_68, %c0_69] : memref<8x8x128xf32, #tpu.memory_space<vmem>>, vector<1x8x128xf32>
    %220 = vector.shape_cast %219 : vector<1x8x128xf32> to vector<8x128xf32>
    %221 = vector.shape_cast %218 : vector<8x128xf32> to vector<1x8x128xf32>
    tpu.vector_store %arg8[%c5_67, %c0_68, %c0_69], %221 {strides = array<i32>} : memref<8x8x128xf32, #tpu.memory_space<vmem>>, vector<1x8x128xf32>,
    %c6 = arith.constant 6 : index
    %c0_70 = arith.constant 0 : index
    %c0_71 = arith.constant 0 : index
    %222 = vector.load %arg2[%c6, %c0_70, %c0_71] : memref<8x8x32xf32, #tpu.memory_space<vmem>>, vector<1x8x32xf32>
    %223 = vector.shape_cast %222 : vector<1x8x32xf32> to vector<8x32xf32>
    %cst_72 = arith.constant dense<0.000000e+00> : vector<8x384xf32>
    %224 = tpu.matmul %223, %3, %cst_72 {dimension_numbers = #tpu.dot_dimension_numbers<[1], [0], [0], [1], [0, 0, 1, 1], [], []>} : vector<8x32xf32>, vector<32x384xf32>, vector<8x384xf32> -> vector<8x384xf32>
    %225 = arith.addf %224, %7 : vector<8x384xf32>
    %cst_73 = arith.constant dense<0.000000e+00> : vector<8x384xf32>
    %226 = tpu.matmul %218, %4, %cst_73 {dimension_numbers = #tpu.dot_dimension_numbers<[1], [0], [0], [1], [0, 0, 1, 1], [], []>} : vector<8x128xf32>, vector<128x384xf32>, vector<8x384xf32> -> vector<8x384xf32>
    %227 = arith.addf %226, %10 : vector<8x384xf32>
    %228 = vector.extract_strided_slice %225 {offsets = [0, 0], sizes = [8, 128], strides = [1, 1]} : vector<8x384xf32> to vector<8x128xf32>
    %229 = vector.extract_strided_slice %227 {offsets = [0, 0], sizes = [8, 128], strides = [1, 1]} : vector<8x384xf32> to vector<8x128xf32>
    %230 = arith.addf %228, %229 : vector<8x128xf32>
    %231 = arith.negf %230 : vector<8x128xf32>
    %232 = math.exp %231 : vector<8x128xf32>
    %cst_74 = arith.constant 1.000000e+00 : f32
    %233 = vector.broadcast %cst_74 : f32 to vector<8x128xf32>
    %234 = arith.addf %233, %232 : vector<8x128xf32>
    %235 = arith.divf %233, %234 : vector<8x128xf32>
    %236 = vector.extract_strided_slice %225 {offsets = [0, 128], sizes = [8, 128], strides = [1, 1]} : vector<8x384xf32> to vector<8x128xf32>
    %237 = vector.extract_strided_slice %227 {offsets = [0, 128], sizes = [8, 128], strides = [1, 1]} : vector<8x384xf32> to vector<8x128xf32>
    %238 = arith.addf %236, %237 : vector<8x128xf32>
    %239 = arith.negf %238 : vector<8x128xf32>
    %240 = math.exp %239 : vector<8x128xf32>
    %cst_75 = arith.constant 1.000000e+00 : f32
    %241 = vector.broadcast %cst_75 : f32 to vector<8x128xf32>
    %242 = arith.addf %241, %240 : vector<8x128xf32>
    %243 = arith.divf %241, %242 : vector<8x128xf32>
    %244 = vector.extract_strided_slice %225 {offsets = [0, 256], sizes = [8, 128], strides = [1, 1]} : vector<8x384xf32> to vector<8x128xf32>
    %245 = vector.extract_strided_slice %227 {offsets = [0, 256], sizes = [8, 128], strides = [1, 1]} : vector<8x384xf32> to vector<8x128xf32>
    %246 = arith.mulf %235, %245 : vector<8x128xf32>
    %247 = arith.addf %244, %246 : vector<8x128xf32>
    %248 = math.tanh %247 : vector<8x128xf32>
    %cst_76 = arith.constant 1.000000e+00 : f32
    %249 = vector.broadcast %cst_76 : f32 to vector<8x128xf32>
    %250 = arith.subf %249, %243 : vector<8x128xf32>
    %251 = arith.mulf %250, %248 : vector<8x128xf32>
    %252 = arith.mulf %243, %218 : vector<8x128xf32>
    %253 = arith.addf %251, %252 : vector<8x128xf32>
    %c6_77 = arith.constant 6 : index
    %c0_78 = arith.constant 0 : index
    %c0_79 = arith.constant 0 : index
    %254 = vector.load %arg8[%c6_77, %c0_78, %c0_79] : memref<8x8x128xf32, #tpu.memory_space<vmem>>, vector<1x8x128xf32>
    %255 = vector.shape_cast %254 : vector<1x8x128xf32> to vector<8x128xf32>
    %256 = vector.shape_cast %253 : vector<8x128xf32> to vector<1x8x128xf32>
    tpu.vector_store %arg8[%c6_77, %c0_78, %c0_79], %256 {strides = array<i32>} : memref<8x8x128xf32, #tpu.memory_space<vmem>>, vector<1x8x128xf32>,
    %c7 = arith.constant 7 : index
    %c0_80 = arith.constant 0 : index
    %c0_81 = arith.constant 0 : index
    %257 = vector.load %arg2[%c7, %c0_80, %c0_81] : memref<8x8x32xf32, #tpu.memory_space<vmem>>, vector<1x8x32xf32>
    %258 = vector.shape_cast %257 : vector<1x8x32xf32> to vector<8x32xf32>
    %cst_82 = arith.constant dense<0.000000e+00> : vector<8x384xf32>
    %259 = tpu.matmul %258, %3, %cst_82 {dimension_numbers = #tpu.dot_dimension_numbers<[1], [0], [0], [1], [0, 0, 1, 1], [], []>} : vector<8x32xf32>, vector<32x384xf32>, vector<8x384xf32> -> vector<8x384xf32>
    %260 = arith.addf %259, %7 : vector<8x384xf32>
    %cst_83 = arith.constant dense<0.000000e+00> : vector<8x384xf32>
    %261 = tpu.matmul %253, %4, %cst_83 {dimension_numbers = #tpu.dot_dimension_numbers<[1], [0], [0], [1], [0, 0, 1, 1], [], []>} : vector<8x128xf32>, vector<128x384xf32>, vector<8x384xf32> -> vector<8x384xf32>
    %262 = arith.addf %261, %10 : vector<8x384xf32>
    %263 = vector.extract_strided_slice %260 {offsets = [0, 0], sizes = [8, 128], strides = [1, 1]} : vector<8x384xf32> to vector<8x128xf32>
    %264 = vector.extract_strided_slice %262 {offsets = [0, 0], sizes = [8, 128], strides = [1, 1]} : vector<8x384xf32> to vector<8x128xf32>
    %265 = arith.addf %263, %264 : vector<8x128xf32>
    %266 = arith.negf %265 : vector<8x128xf32>
    %267 = math.exp %266 : vector<8x128xf32>
    %cst_84 = arith.constant 1.000000e+00 : f32
    %268 = vector.broadcast %cst_84 : f32 to vector<8x128xf32>
    %269 = arith.addf %268, %267 : vector<8x128xf32>
    %270 = arith.divf %268, %269 : vector<8x128xf32>
    %271 = vector.extract_strided_slice %260 {offsets = [0, 128], sizes = [8, 128], strides = [1, 1]} : vector<8x384xf32> to vector<8x128xf32>
    %272 = vector.extract_strided_slice %262 {offsets = [0, 128], sizes = [8, 128], strides = [1, 1]} : vector<8x384xf32> to vector<8x128xf32>
    %273 = arith.addf %271, %272 : vector<8x128xf32>
    %274 = arith.negf %273 : vector<8x128xf32>
    %275 = math.exp %274 : vector<8x128xf32>
    %cst_85 = arith.constant 1.000000e+00 : f32
    %276 = vector.broadcast %cst_85 : f32 to vector<8x128xf32>
    %277 = arith.addf %276, %275 : vector<8x128xf32>
    %278 = arith.divf %276, %277 : vector<8x128xf32>
    %279 = vector.extract_strided_slice %260 {offsets = [0, 256], sizes = [8, 128], strides = [1, 1]} : vector<8x384xf32> to vector<8x128xf32>
    %280 = vector.extract_strided_slice %262 {offsets = [0, 256], sizes = [8, 128], strides = [1, 1]} : vector<8x384xf32> to vector<8x128xf32>
    %281 = arith.mulf %270, %280 : vector<8x128xf32>
    %282 = arith.addf %279, %281 : vector<8x128xf32>
    %283 = math.tanh %282 : vector<8x128xf32>
    %cst_86 = arith.constant 1.000000e+00 : f32
    %284 = vector.broadcast %cst_86 : f32 to vector<8x128xf32>
    %285 = arith.subf %284, %278 : vector<8x128xf32>
    %286 = arith.mulf %285, %283 : vector<8x128xf32>
    %287 = arith.mulf %278, %253 : vector<8x128xf32>
    %288 = arith.addf %286, %287 : vector<8x128xf32>
    %c7_87 = arith.constant 7 : index
    %c0_88 = arith.constant 0 : index
    %c0_89 = arith.constant 0 : index
    %289 = vector.load %arg8[%c7_87, %c0_88, %c0_89] : memref<8x8x128xf32, #tpu.memory_space<vmem>>, vector<1x8x128xf32>
    %290 = vector.shape_cast %289 : vector<1x8x128xf32> to vector<8x128xf32>
    %291 = vector.shape_cast %288 : vector<8x128xf32> to vector<1x8x128xf32>
    tpu.vector_store %arg8[%c7_87, %c0_88, %c0_89], %291 {strides = array<i32>} : memref<8x8x128xf32, #tpu.memory_space<vmem>>, vector<1x8x128xf32>,
    %c0_90 = arith.constant 0 : index
    %c0_91 = arith.constant 0 : index
    %292 = vector.load %arg9[%c0_90, %c0_91] : memref<8x128xf32, #tpu.memory_space<vmem>>, vector<8x128xf32>
    tpu.vector_store %arg9[%c0_90, %c0_91], %288 {strides = array<i32>} : memref<8x128xf32, #tpu.memory_space<vmem>>, vector<8x128xf32>,
    return
  }
  func.func @transform_0(%arg0: i32, %arg1: i32) -> (i32, i32, i32) {
    %c0_i32 = arith.constant 0 : i32
    %c0_i32_0 = arith.constant 0 : i32
    return %arg1, %arg0, %c0_i32 : i32, i32, i32
  }
  func.func @transform_1(%arg0: i32, %arg1: i32) -> (i32, i32) {
    %c0_i32 = arith.constant 0 : i32
    %c0_i32_0 = arith.constant 0 : i32
    return %arg0, %c0_i32 : i32, i32
  }
  func.func @transform_2(%arg0: i32, %arg1: i32) -> (i32, i32) {
    %c0_i32 = arith.constant 0 : i32
    %c0_i32_0 = arith.constant 0 : i32
    %c0_i32_1 = arith.constant 0 : i32
    return %c0_i32, %c0_i32_0 : i32, i32
  }
  func.func @transform_3(%arg0: i32, %arg1: i32) -> (i32, i32) {
    %c0_i32 = arith.constant 0 : i32
    %c0_i32_0 = arith.constant 0 : i32
    %c0_i32_1 = arith.constant 0 : i32
    return %c0_i32, %c0_i32_0 : i32, i32
  }
  func.func @transform_4(%arg0: i32, %arg1: i32) -> (i32, i32) {
    %c0_i32 = arith.constant 0 : i32
    %c0_i32_0 = arith.constant 0 : i32
    %c0_i32_1 = arith.constant 0 : i32
    return %c0_i32, %c0_i32_0 : i32, i32
  }
  func.func @transform_5(%arg0: i32, %arg1: i32) -> (i32, i32) {
    %c0_i32 = arith.constant 0 : i32
    %c0_i32_0 = arith.constant 0 : i32
    %c0_i32_1 = arith.constant 0 : i32
    return %c0_i32, %c0_i32_0 : i32, i32
  }
  func.func @transform_6(%arg0: i32, %arg1: i32) -> (i32, i32, i32) {
    %c0_i32 = arith.constant 0 : i32
    %c0_i32_0 = arith.constant 0 : i32
    return %arg1, %arg0, %c0_i32 : i32, i32, i32
  }
}

</mosaic_0001>

<llo_original>
// kernel: decoder_forward.3
$region0: #{decoder_forward.3}
  #allocation0 [shape = 'u32[]', space=smem, size = 0x4, offset = 0x4, fixed_abs, tag = 'smem constant byte address 0x4 - core index']
  #allocation1 [shape = 'u32[144,128]{1,0:T(1,128)}', space=vmem, size = 0x12000, scoped, tag = 'internal scratch']
  %s0 = inlined_call_operand.vmem [shape: f32[64,128], index: 0, kind: input, shape index: {}]
  %s1 = inlined_call_operand.vmem [shape: f32[128,128], index: 1, kind: input, shape index: {}]
  %s2 = inlined_call_operand.vmem [shape: f32[1,128], index: 2, kind: input, shape index: {}]
  %s3 = inlined_call_operand.vmem [shape: f32[64,128], index: 3, kind: output, shape index: {}]
  %s4 = sld [smem:[#allocation0]]
  $region22: #{decoder_forward.3} parent=0
    _
  %s6 = ssub.s32 1, %s4
  %s7 = scalar_select 0, %s6, %s4
  // Predicated region
  $region2: #{decoder_forward.3} parent=0 // pred_check
    _
  $region3: #{decoder_forward.3} parent=0 // pred_check_branch
    %9 = sbr.rel (0) target = $region5
  $region4: #{decoder_forward.3} parent=0 // pred_region
    _
  $region5: #{decoder_forward.3} parent=0 // pred_fallthru
    _
  // Predicated region
  $region6: #{decoder_forward.3} parent=0 // pred_check
    _
  $region7: #{decoder_forward.3} parent=0 // pred_check_branch
    %11 = sbr.rel (0) target = $region9
  $region8: #{decoder_forward.3} parent=0 // pred_region
    _
  $region9: #{decoder_forward.3} parent=0 // pred_fallthru
    _
  // Predicated region
  $region10: #{decoder_forward.3} parent=0 // pred_check
    _
  $region11: #{decoder_forward.3} parent=0 // pred_check_branch
    %13 = sbr.rel (0) target = $region13
  $region12: #{decoder_forward.3} parent=0 // pred_region
    _
  $region13: #{decoder_forward.3} parent=0 // pred_fallthru
    _
  %v14 = vld [vmem:[%s0] sm:$0xff]
  %v15 = vld [vmem:[%s0 + $0x8] sm:$0xff]
  %v16 = vld [vmem:[%s0 + $0x10] sm:$0xff]
  %v17 = vld [vmem:[%s0 + $0x18] sm:$0xff]
  %v18 = vld [vmem:[%s0 + $0x20] sm:$0xff]
  %v19 = vld [vmem:[%s0 + $0x28] sm:$0xff]
  %v20 = vld [vmem:[%s0 + $0x30] sm:$0xff]
  %v21 = vld [vmem:[%s0 + $0x38] sm:$0xff]
  %v22 = vld [vmem:[%s1] sm:$0xff]
  %v23 = vld [vmem:[%s1 + $0x8] sm:$0xff]
  %v24 = vld [vmem:[%s1 + $0x10] sm:$0xff]
  %v25 = vld [vmem:[%s1 + $0x18] sm:$0xff]
  %v26 = vld [vmem:[%s1 + $0x20] sm:$0xff]
  %v27 = vld [vmem:[%s1 + $0x28] sm:$0xff]
  %v28 = vld [vmem:[%s1 + $0x30] sm:$0xff]
  %v29 = vld [vmem:[%s1 + $0x38] sm:$0xff]
  %v30 = vld [vmem:[%s1 + $0x40] sm:$0xff]
  %v31 = vld [vmem:[%s1 + $0x48] sm:$0xff]
  %v32 = vld [vmem:[%s1 + $0x50] sm:$0xff]
  %v33 = vld [vmem:[%s1 + $0x58] sm:$0xff]
  %v34 = vld [vmem:[%s1 + $0x60] sm:$0xff]
  %v35 = vld [vmem:[%s1 + $0x68] sm:$0xff]
  %v36 = vld [vmem:[%s1 + $0x70] sm:$0xff]
  %v37 = vld [vmem:[%s1 + $0x78] sm:$0xff]
  %v38 = vld [vmem:[%s2] sm:$0x1]
  %v40 = vlaneseq
  %v41 = vshrl.u32 %v40, 7
  %v42 = vsub.s32 0, %v41
  %v43 = vrot.slane %v38, %v42
  %45 = vmatprep.subr.mxu0 0.0
  %46 = vmatpush1.msra.mxu0 %v22
  %47 = vmatprep.subr.mxu0 0.0
  %48 = vmatpush1.msra.mxu0 %v23
  %49 = vmatprep.subr.mxu0 0.0
  %50 = vmatpush1.msra.mxu0 %v24
  %51 = vmatprep.subr.mxu0 0.0
  %52 = vmatpush1.msra.mxu0 %v25
  %53 = vmatprep.subr.mxu0 0.0
  %54 = vmatpush1.msra.mxu0 %v26
  %55 = vmatprep.subr.mxu0 0.0
  %56 = vmatpush1.msra.mxu0 %v27
  %57 = vmatprep.subr.mxu0 0.0
  %58 = vmatpush1.msra.mxu0 %v28
  %59 = vmatprep.subr.mxu0 0.0
  %60 = vmatpush1.msra.mxu0 %v29
  %61 = vmatprep.subr.mxu0 0.0
  %62 = vmatpush1.msra.mxu0 %v30
  %63 = vmatprep.subr.mxu0 0.0
  %64 = vmatpush1.msra.mxu0 %v31
  %65 = vmatprep.subr.mxu0 0.0
  %66 = vmatpush1.msra.mxu0 %v32
  %67 = vmatprep.subr.mxu0 0.0
  %68 = vmatpush1.msra.mxu0 %v33
  %69 = vmatprep.subr.mxu0 0.0
  %70 = vmatpush1.msra.mxu0 %v34
  %71 = vmatprep.subr.mxu0 0.0
  %72 = vmatpush1.msra.mxu0 %v35
  %73 = vmatprep.subr.mxu0 0.0
  %74 = vmatpush1.msra.mxu0 %v36
  %75 = vmatprep.subr.mxu0 0.0
  %76 = vmatpush1.msra.mxu0 %v37
  %77 = vmatprep.subr.mxu0 0.0
  %78 = vmatpush1.msra.mxu0 0.0
  %79 = vmatprep.subr.mxu0 0.0
  %80 = vmatpush1.msra.mxu0 0.0
  %81 = vmatprep.subr.mxu0 0.0
  %82 = vmatpush1.msra.mxu0 0.0
  %83 = vmatprep.subr.mxu0 0.0
  %84 = vmatpush1.msra.mxu0 0.0
  %85 = vmatprep.subr.mxu0 0.0
  %86 = vmatpush1.msra.mxu0 0.0
  %87 = vmatprep.subr.mxu0 0.0
  %88 = vmatpush1.msra.mxu0 0.0
  %89 = vmatprep.subr.mxu0 0.0
  %90 = vmatpush1.msra.mxu0 0.0
  %91 = vmatprep.subr.mxu0 0.0
  %92 = vmatpush1.msra.mxu0 0.0
  %93 = vmatprep.subr.mxu0 0.0
  %94 = vmatpush1.msra.mxu0 0.0
  %95 = vmatprep.subr.mxu0 0.0
  %96 = vmatpush1.msra.mxu0 0.0
  %97 = vmatprep.subr.mxu0 0.0
  %98 = vmatpush1.msra.mxu0 0.0
  %99 = vmatprep.subr.mxu0 0.0
  %100 = vmatpush1.msra.mxu0 0.0
  %101 = vmatprep.subr.mxu0 0.0
  %102 = vmatpush1.msra.mxu0 0.0
  %103 = vmatprep.subr.mxu0 0.0
  %104 = vmatpush1.msra.mxu0 0.0
  %105 = vmatprep.subr.mxu0 0.0
  %106 = vmatpush1.msra.mxu0 0.0
  %107 = vmatprep.subr.mxu0 0.0
  %108 = vmatpush1.msra.mxu0 0.0
  %109 = vmatprep.mubr.f32.mxu0 0.0
  %110 = vmatmul.mubr.f32.gmra.mrb[0].mxu0 %v14
  %v111 = vpop.f32.mrb[0].mxu0
  %v112 = vadd.f32 %v43, %v111
  %v113 = vpop.f32.mrb[0].mxu0
  %114 = vmatprep.mubr.f32.mxu0 0.0
  %115 = vmatmul.mubr.f32.gmra.mrb[0].mxu0 %v15
  %v116 = vpop.f32.mrb[0].mxu0
  %v117 = vadd.f32 %v43, %v116
  %v118 = vpop.f32.mrb[0].mxu0
  %119 = vmatprep.mubr.f32.mxu0 0.0
  %120 = vmatmul.mubr.f32.gmra.mrb[0].mxu0 %v16
  %v121 = vpop.f32.mrb[0].mxu0
  %v122 = vadd.f32 %v43, %v121
  %v123 = vpop.f32.mrb[0].mxu0
  %124 = vmatprep.mubr.f32.mxu0 0.0
  %125 = vmatmul.mubr.f32.gmra.mrb[0].mxu0 %v17
  %v126 = vpop.f32.mrb[0].mxu0
  %v127 = vadd.f32 %v43, %v126
  %v128 = vpop.f32.mrb[0].mxu0
  %129 = vmatprep.mubr.f32.mxu0 0.0
  %130 = vmatmul.mubr.f32.gmra.mrb[0].mxu0 %v18
  %v131 = vpop.f32.mrb[0].mxu0
  %v132 = vadd.f32 %v43, %v131
  %v133 = vpop.f32.mrb[0].mxu0
  %134 = vmatprep.mubr.f32.mxu0 0.0
  %135 = vmatmul.mubr.f32.gmra.mrb[0].mxu0 %v19
  %v136 = vpop.f32.mrb[0].mxu0
  %v137 = vadd.f32 %v43, %v136
  %v138 = vpop.f32.mrb[0].mxu0
  %139 = vmatprep.mubr.f32.mxu0 0.0
  %140 = vmatmul.mubr.f32.gmra.mrb[0].mxu0 %v20
  %v141 = vpop.f32.mrb[0].mxu0
  %v142 = vadd.f32 %v43, %v141
  %v143 = vpop.f32.mrb[0].mxu0
  %144 = vmatprep.mubr.f32.mxu0 0.0
  %145 = vmatmul.mubr.f32.gmra.mrb[0].mxu0 %v21
  %v146 = vpop.f32.mrb[0].mxu0
  %v147 = vadd.f32 %v43, %v146
  %v148 = vpop.f32.mrb[0].mxu0
  %149 = vdwg.mxu0
  %150 = vst [vmem:[%s3] sm:$0xff] %v112
  %151 = vst [vmem:[%s3 + $0x8] sm:$0xff] %v117
  %152 = vst [vmem:[%s3 + $0x10] sm:$0xff] %v122
  %153 = vst [vmem:[%s3 + $0x18] sm:$0xff] %v127
  %154 = vst [vmem:[%s3 + $0x20] sm:$0xff] %v132
  %155 = vst [vmem:[%s3 + $0x28] sm:$0xff] %v137
  %156 = vst [vmem:[%s3 + $0x30] sm:$0xff] %v142
  %157 = vst [vmem:[%s3 + $0x38] sm:$0xff] %v147
  // Predicated region
  $region14: #{decoder_forward.3} parent=0 // pred_check
    _
  $region15: #{decoder_forward.3} parent=0 // pred_check_branch
    %159 = sbr.rel (0) target = $region17
  $region16: #{decoder_forward.3} parent=0 // pred_region
    _
  $region17: #{decoder_forward.3} parent=0 // pred_fallthru
    _
  // Predicated region
  $region18: #{decoder_forward.3} parent=0 // pred_check
    _
  $region19: #{decoder_forward.3} parent=0 // pred_check_branch
    %161 = sbr.rel (0) target = $region21
  $region20: #{decoder_forward.3} parent=0 // pred_region
    _
  $region21: #{decoder_forward.3} parent=0 // pred_fallthru
    _

// kernel: decoder_forward.2
$region0: #{decoder_forward.2}
  #allocation0 [shape = 'u32[]', space=smem, size = 0x4, offset = 0x4, fixed_abs, tag = 'smem constant byte address 0x4 - core index']
  #allocation1 [shape = 'u32[144,128]{1,0:T(1,128)}', space=vmem, size = 0x12000, scoped, tag = 'internal scratch']
  #allocation2 [shape = 'f32[8,128]{1,0:T(8,128)}', space=vmem, size = 0x1000, scoped, tag = 'scratch operand']
  %s0 = inlined_call_operand.vmem [shape: f32[8,8,32], index: 0, kind: input, shape index: {}]
  %s1 = inlined_call_operand.vmem [shape: f32[8,128], index: 1, kind: input, shape index: {}]
  %s2 = inlined_call_operand.vmem [shape: f32[32,384], index: 2, kind: input, shape index: {}]
  %s3 = inlined_call_operand.vmem [shape: f32[1,384], index: 3, kind: input, shape index: {}]
  %s4 = inlined_call_operand.hbm [shape: f32[128,384], index: 4, kind: input, shape index: {}]
  %s5 = inlined_call_operand.vmem [shape: f32[1,384], index: 5, kind: input, shape index: {}]
  %s6 = inlined_call_operand.vmem [shape: f32[8,8,128], index: 6, kind: output, shape index: {}]
  %s7 = sld [smem:[#allocation0]]
  $region42: #{decoder_forward.2} parent=0
    _
  %s9 = ssub.s32 1, %s7
  %s10 = scalar_select 0, %s9, %s7
  $region1: #{decoder_forward.2} parent=0
    #allocation3 [shape = 'u8[196608]{0}', space=vmem, size = 0x30000, scoped, tag = 'input window, operand 4, single buffered']
    #allocation4 [shape = 's32[1]{0}', space=sflag, size = 0x4, scoped, tag = 'scoped memory for decoder_forward.2']
    %11 = vsyncpa [#allocation4], 0
    // Predicated region
    $region2: #{decoder_forward.2} parent=1 // pred_check
      _
    $region3: #{decoder_forward.2} parent=1 // pred_check_branch
      %13 = sbr.rel (0) target = $region5
    $region4: #{decoder_forward.2} parent=1 // pred_region
      _
    $region5: #{decoder_forward.2} parent=1 // pred_fallthru
      _
    // Predicated region
    $region6: #{decoder_forward.2} parent=1 // pred_check
      _
    $region7: #{decoder_forward.2} parent=1 // pred_check_branch
      %15 = sbr.rel (0) target = $region9
    $region8: #{decoder_forward.2} parent=1 // pred_region
      _
    $region9: #{decoder_forward.2} parent=1 // pred_fallthru
      _
    // Predicated region
    $region10: #{decoder_forward.2} parent=1 // pred_check
      _
    $region11: #{decoder_forward.2} parent=1 // pred_check_branch
      %17 = sbr.rel (0) target = $region13
    $region12: #{decoder_forward.2} parent=1 // pred_region
      _
    $region13: #{decoder_forward.2} parent=1 // pred_fallthru
      _
    // Predicated region
    $region14: #{decoder_forward.2} parent=1 // pred_check
      _
    $region15: #{decoder_forward.2} parent=1 // pred_check_branch
      %19 = sbr.rel (0) target = $region17
    $region16: #{decoder_forward.2} parent=1 // pred_region
      _
    $region17: #{decoder_forward.2} parent=1 // pred_fallthru
      _
    // Predicated region
    $region18: #{decoder_forward.2} parent=1 // pred_check
      _
    $region19: #{decoder_forward.2} parent=1 // pred_check_branch
      %21 = sbr.rel (0) target = $region21
    $region20: #{decoder_forward.2} parent=1 // pred_region
      %s23 = ssub.s32 6144, 6144
      %24 = vsyncadd [#allocation4], %s23
      %s25 = sshll.u32 [#allocation3], 4
      %s26 = int_to_ptr.vmem [resolvable:$true] %s25
      %31 = dma.hbm_to_vmem [thread:$0]  %s4, 6144, %s26, [#allocation4], 384, 384, 24
    $region21: #{decoder_forward.2} parent=1 // pred_fallthru
      _
    // Predicated region
    $region22: #{decoder_forward.2} parent=1 // pred_check
      _
    $region23: #{decoder_forward.2} parent=1 // pred_check_branch
      %33 = sbr.rel (0) target = $region25
    $region24: #{decoder_forward.2} parent=1 // pred_region
      _
    $region25: #{decoder_forward.2} parent=1 // pred_fallthru
      _
    // Predicated region
    $region26: #{decoder_forward.2} parent=1 // pred_check
      _
    $region27: #{decoder_forward.2} parent=1 // pred_check_branch
      %35 = sbr.rel (0) target = $region29
    $region28: #{decoder_forward.2} parent=1 // pred_region
      %36 = dma.done [#allocation4], 6144
    $region29: #{decoder_forward.2} parent=1 // pred_fallthru
      _
    %p37 = scmp.eq.s32.totalorder 0, 0
    // Predicated region
    $region30: #{decoder_forward.2} parent=1 // pred_check
      %p38 = pneg %p37
    $region31: #{decoder_forward.2} parent=1 // pred_check_branch
      %40 = sbr.rel (%p38) target = $region33
    $region32: #{decoder_forward.2} parent=1 // pred_region
      %v41 = vld [vmem:[%s1] sm:$0xff]
      %42 = vst [vmem:[#allocation2] sm:$0xff] %v41
    $region33: #{decoder_forward.2} parent=1 // pred_fallthru
      _
    %v43 = vld [vmem:[%s2] sm:$0xff]
    %v44 = vld [vmem:[%s2 + $0x8] sm:$0xff]
    %v45 = vld [vmem:[%s2 + $0x10] sm:$0xff]
    %v46 = vld [vmem:[%s2 + $0x18] sm:$0xff]
    %v47 = vld [vmem:[%s2 + $0x20] sm:$0xff]
    %v48 = vld [vmem:[%s2 + $0x28] sm:$0xff]
    %v49 = vld [vmem:[%s2 + $0x30] sm:$0xff]
    %v50 = vld [vmem:[%s2 + $0x38] sm:$0xff]
    %v51 = vld [vmem:[%s2 + $0x40] sm:$0xff]
    %v52 = vld [vmem:[%s2 + $0x48] sm:$0xff]
    %v53 = vld [vmem:[%s2 + $0x50] sm:$0xff]
    %v54 = vld [vmem:[%s2 + $0x58] sm:$0xff]
    %v55 = vld [vmem:[#allocation3] sm:$0xff]
    %v56 = vld [vmem:[#allocation3 + $0x8] sm:$0xff]
    %v57 = vld [vmem:[#allocation3 + $0x10] sm:$0xff]
    %v58 = vld [vmem:[#allocation3 + $0x18] sm:$0xff]
    %v59 = vld [vmem:[#allocation3 + $0x20] sm:$0xff]
    %v60 = vld [vmem:[#allocation3 + $0x28] sm:$0xff]
    %v61 = vld [vmem:[#allocation3 + $0x30] sm:$0xff]
    %v62 = vld [vmem:[#allocation3 + $0x38] sm:$0xff]
    %v63 = vld [vmem:[#allocation3 + $0x40] sm:$0xff]
    %v64 = vld [vmem:[#allocation3 + $0x48] sm:$0xff]
    %v65 = vld [vmem:[#allocation3 + $0x50] sm:$0xff]
    %v66 = vld [vmem:[#allocation3 + $0x58] sm:$0xff]
    %v67 = vld [vmem:[#allocation3 + $0x60] sm:$0xff]
    %v68 = vld [vmem:[#allocation3 + $0x68] sm:$0xff]
    %v69 = vld [vmem:[#allocation3 + $0x70] sm:$0xff]
    %v70 = vld [vmem:[#allocation3 + $0x78] sm:$0xff]
    %v71 = vld [vmem:[#allocation3 + $0x80] sm:$0xff]
    %v72 = vld [vmem:[#allocation3 + $0x88] sm:$0xff]
    %v73 = vld [vmem:[#allocation3 + $0x90] sm:$0xff]
    %v74 = vld [vmem:[#allocation3 + $0x98] sm:$0xff]
    %v75 = vld [vmem:[#allocation3 + $0xa0] sm:$0xff]
    %v76 = vld [vmem:[#allocation3 + $0xa8] sm:$0xff]
    %v77 = vld [vmem:[#allocation3 + $0xb0] sm:$0xff]
    %v78 = vld [vmem:[#allocation3 + $0xb8] sm:$0xff]
    %v79 = vld [vmem:[#allocation3 + $0xc0] sm:$0xff]
    %v80 = vld [vmem:[#allocation3 + $0xc8] sm:$0xff]
    %v81 = vld [vmem:[#allocation3 + $0xd0] sm:$0xff]
    %v82 = vld [vmem:[#allocation3 + $0xd8] sm:$0xff]
    %v83 = vld [vmem:[#allocation3 + $0xe0] sm:$0xff]
    %v84 = vld [vmem:[#allocation3 + $0xe8] sm:$0xff]
    %v85 = vld [vmem:[#allocation3 + $0xf0] sm:$0xff]
    %v86 = vld [vmem:[#allocation3 + $0xf8] sm:$0xff]
    %v87 = vld [vmem:[#allocation3 + $0x100] sm:$0xff]
    %v88 = vld [vmem:[#allocation3 + $0x108] sm:$0xff]
    %v89 = vld [vmem:[#allocation3 + $0x110] sm:$0xff]
    %v90 = vld [vmem:[#allocation3 + $0x118] sm:$0xff]
    %v91 = vld [vmem:[#allocation3 + $0x120] sm:$0xff]
    %v92 = vld [vmem:[#allocation3 + $0x128] sm:$0xff]
    %v93 = vld [vmem:[#allocation3 + $0x130] sm:$0xff]
    %v94 = vld [vmem:[#allocation3 + $0x138] sm:$0xff]
    %v95 = vld [vmem:[#allocation3 + $0x140] sm:$0xff]
    %v96 = vld [vmem:[#allocation3 + $0x148] sm:$0xff]
    %v97 = vld [vmem:[#allocation3 + $0x150] sm:$0xff]
    %v98 = vld [vmem:[#allocation3 + $0x158] sm:$0xff]
    %v99 = vld [vmem:[#allocation3 + $0x160] sm:$0xff]
    %v100 = vld [vmem:[#allocation3 + $0x168] sm:$0xff]
    %v101 = vld [vmem:[#allocation3 + $0x170] sm:$0xff]
    %v102 = vld [vmem:[#allocation3 + $0x178] sm:$0xff]
    %v103 = vld [vmem:[%s3] sm:$0x7]
    %v105 = vlaneseq
    %v106 = vshrl.u32 %v105, 7
    %v107 = vsub.s32 0, %v106
    %v108 = vrot.slane %v103, %v107
    %v109 = vlaneseq
    %v110 = vshrl.u32 %v109, 7
    %v111 = vsub.s32 1, %v110
    %v112 = vrot.slane %v103, %v111
    %v113 = vlaneseq
    %v114 = vshrl.u32 %v113, 7
    %v115 = vsub.s32 2, %v114
    %v116 = vrot.slane %v103, %v115
    %v120 = vld [vmem:[%s5] sm:$0x7]
    %v122 = vlaneseq
    %v123 = vshrl.u32 %v122, 7
    %v124 = vsub.s32 0, %v123
    %v125 = vrot.slane %v120, %v124
    %v126 = vlaneseq
    %v127 = vshrl.u32 %v126, 7
    %v128 = vsub.s32 1, %v127
    %v129 = vrot.slane %v120, %v128
    %v130 = vlaneseq
    %v131 = vshrl.u32 %v130, 7
    %v132 = vsub.s32 2, %v131
    %v133 = vrot.slane %v120, %v132
    %v137 = vld [vmem:[#allocation2] sm:$0xff]
    %v138 = vld [vmem:[%s0] sm:$0xff]
    %vm139 = vcmask 261120
    %v141 = vsel %vm139, %v138, 0
    %143 = vmatprep.subr.mxu0 %v44
    %144 = vmatpush1.msra.mxu0 %v43
    %145 = vmatprep.subr.mxu0 %v47
    %146 = vmatpush1.msra.mxu0 %v46
    %147 = vmatprep.subr.mxu0 %v50
    %148 = vmatpush1.msra.mxu0 %v49
    %149 = vmatprep.subr.mxu0 %v53
    %150 = vmatpush1.msra.mxu0 %v52
    %151 = vmatprep.subr.mxu0 0.0
    %152 = vmatpush1.msra.mxu0 0.0
    %153 = vmatprep.subr.mxu0 0.0
    %154 = vmatpush1.msra.mxu0 0.0
    %155 = vmatprep.subr.mxu0 0.0
    %156 = vmatpush1.msra.mxu0 0.0
    %157 = vmatprep.subr.mxu0 0.0
    %158 = vmatpush1.msra.mxu0 0.0
    %159 = vmatprep.subr.mxu0 0.0
    %160 = vmatpush1.msra.mxu0 0.0
    %161 = vmatprep.subr.mxu0 0.0
    %162 = vmatpush1.msra.mxu0 0.0
    %163 = vmatprep.subr.mxu0 0.0
    %164 = vmatpush1.msra.mxu0 0.0
    %165 = vmatprep.subr.mxu0 0.0
    %166 = vmatpush1.msra.mxu0 0.0
    %167 = vmatprep.subr.mxu0 0.0
    %168 = vmatpush1.msra.mxu0 0.0
    %169 = vmatprep.subr.mxu0 0.0
    %170 = vmatpush1.msra.mxu0 0.0
    %171 = vmatprep.subr.mxu0 0.0
    %172 = vmatpush1.msra.mxu0 0.0
    %173 = vmatprep.subr.mxu0 0.0
    %174 = vmatpush1.msra.mxu0 0.0
    %175 = vmatprep.subr.mxu0 0.0
    %176 = vmatpush1.msra.mxu0 0.0
    %177 = vmatprep.subr.mxu0 0.0
    %178 = vmatpush1.msra.mxu0 0.0
    %179 = vmatprep.subr.mxu0 0.0
    %180 = vmatpush1.msra.mxu0 0.0
    %181 = vmatprep.subr.mxu0 0.0
    %182 = vmatpush1.msra.mxu0 0.0
    %183 = vmatprep.subr.mxu0 0.0
    %184 = vmatpush1.msra.mxu0 0.0
    %185 = vmatprep.subr.mxu0 0.0
    %186 = vmatpush1.msra.mxu0 0.0
    %187 = vmatprep.subr.mxu0 0.0
    %188 = vmatpush1.msra.mxu0 0.0
    %189 = vmatprep.subr.mxu0 0.0
    %190 = vmatpush1.msra.mxu0 0.0
    %191 = vmatprep.subr.mxu0 0.0
    %192 = vmatpush1.msra.mxu0 0.0
    %193 = vmatprep.subr.mxu0 0.0
    %194 = vmatpush1.msra.mxu0 0.0
    %195 = vmatprep.subr.mxu0 0.0
    %196 = vmatpush1.msra.mxu0 0.0
    %197 = vmatprep.subr.mxu0 0.0
    %198 = vmatpush1.msra.mxu0 0.0
    %199 = vmatprep.subr.mxu0 0.0
    %200 = vmatpush1.msra.mxu0 0.0
    %201 = vmatprep.subr.mxu0 0.0
    %202 = vmatpush1.msra.mxu0 0.0
    %203 = vmatprep.subr.mxu0 0.0
    %204 = vmatpush1.msra.mxu0 0.0
    %205 = vmatprep.subr.mxu0 0.0
    %206 = vmatpush1.msra.mxu0 0.0
    %207 = vmatprep.mubr.f32.mxu0 0.0
    %208 = vmatmul.mubr.f32.gmra.mrb[0].mxu0 %v141
    %v209 = vpop.f32.mrb[0].mxu0
    %v210 = vadd.f32 %v108, %v209
    %v211 = vpop.f32.mrb[0].mxu0
    %v212 = vadd.f32 %v112, %v211
    %213 = vdwg.mxu0
    %214 = vmatprep.subr.mxu0 0.0
    %215 = vmatpush1.msra.mxu0 %v45
    %216 = vmatprep.subr.mxu0 0.0
    %217 = vmatpush1.msra.mxu0 %v48
    %218 = vmatprep.subr.mxu0 0.0
    %219 = vmatpush1.msra.mxu0 %v51
    %220 = vmatprep.subr.mxu0 0.0
    %221 = vmatpush1.msra.mxu0 %v54
    %222 = vmatprep.subr.mxu0 0.0
    %223 = vmatpush1.msra.mxu0 0.0
    %224 = vmatprep.subr.mxu0 0.0
    %225 = vmatpush1.msra.mxu0 0.0
    %226 = vmatprep.subr.mxu0 0.0
    %227 = vmatpush1.msra.mxu0 0.0
    %228 = vmatprep.subr.mxu0 0.0
    %229 = vmatpush1.msra.mxu0 0.0
    %230 = vmatprep.subr.mxu0 0.0
    %231 = vmatpush1.msra.mxu0 0.0
    %232 = vmatprep.subr.mxu0 0.0
    %233 = vmatpush1.msra.mxu0 0.0
    %234 = vmatprep.subr.mxu0 0.0
    %235 = vmatpush1.msra.mxu0 0.0
    %236 = vmatprep.subr.mxu0 0.0
    %237 = vmatpush1.msra.mxu0 0.0
    %238 = vmatprep.subr.mxu0 0.0
    %239 = vmatpush1.msra.mxu0 0.0
    %240 = vmatprep.subr.mxu0 0.0
    %241 = vmatpush1.msra.mxu0 0.0
    %242 = vmatprep.subr.mxu0 0.0
    %243 = vmatpush1.msra.mxu0 0.0
    %244 = vmatprep.subr.mxu0 0.0
    %245 = vmatpush1.msra.mxu0 0.0
    %246 = vmatprep.subr.mxu0 0.0
    %247 = vmatpush1.msra.mxu0 0.0
    %248 = vmatprep.subr.mxu0 0.0
    %249 = vmatpush1.msra.mxu0 0.0
    %250 = vmatprep.subr.mxu0 0.0
    %251 = vmatpush1.msra.mxu0 0.0
    %252 = vmatprep.subr.mxu0 0.0
    %253 = vmatpush1.msra.mxu0 0.0
    %254 = vmatprep.subr.mxu0 0.0
    %255 = vmatpush1.msra.mxu0 0.0
    %256 = vmatprep.subr.mxu0 0.0
    %257 = vmatpush1.msra.mxu0 0.0
    %258 = vmatprep.subr.mxu0 0.0
    %259 = vmatpush1.msra.mxu0 0.0
    %260 = vmatprep.subr.mxu0 0.0
    %261 = vmatpush1.msra.mxu0 0.0
    %262 = vmatprep.subr.mxu0 0.0
    %263 = vmatpush1.msra.mxu0 0.0
    %264 = vmatprep.subr.mxu0 0.0
    %265 = vmatpush1.msra.mxu0 0.0
    %266 = vmatprep.subr.mxu0 0.0
    %267 = vmatpush1.msra.mxu0 0.0
    %268 = vmatprep.subr.mxu0 0.0
    %269 = vmatpush1.msra.mxu0 0.0
    %270 = vmatprep.subr.mxu0 0.0
    %271 = vmatpush1.msra.mxu0 0.0
    %272 = vmatprep.subr.mxu0 0.0
    %273 = vmatpush1.msra.mxu0 0.0
    %274 = vmatprep.subr.mxu0 0.0
    %275 = vmatpush1.msra.mxu0 0.0
    %276 = vmatprep.subr.mxu0 0.0
    %277 = vmatpush1.msra.mxu0 0.0
    %278 = vmatprep.mubr.f32.mxu0 0.0
    %279 = vmatmul.mubr.f32.gmra.mrb[0].mxu0 %v141
    %v280 = vpop.f32.mrb[0].mxu0
    %v281 = vadd.f32 %v116, %v280
    %v282 = vpop.f32.mrb[0].mxu0
    %283 = vdwg.mxu0
    %284 = vmatprep.subr.mxu0 %v56
    %285 = vmatpush1.msra.mxu0 %v55
    %286 = vmatprep.subr.mxu0 %v59
    %287 = vmatpush1.msra.mxu0 %v58
    %288 = vmatprep.subr.mxu0 %v62
    %289 = vmatpush1.msra.mxu0 %v61
    %290 = vmatprep.subr.mxu0 %v65
    %291 = vmatpush1.msra.mxu0 %v64
    %292 = vmatprep.subr.mxu0 %v68
    %293 = vmatpush1.msra.mxu0 %v67
    %294 = vmatprep.subr.mxu0 %v71
    %295 = vmatpush1.msra.mxu0 %v70
    %296 = vmatprep.subr.mxu0 %v74
    %297 = vmatpush1.msra.mxu0 %v73
    %298 = vmatprep.subr.mxu0 %v77
    %299 = vmatpush1.msra.mxu0 %v76
    %300 = vmatprep.subr.mxu0 %v80
    %301 = vmatpush1.msra.mxu0 %v79
    %302 = vmatprep.subr.mxu0 %v83
    %303 = vmatpush1.msra.mxu0 %v82
    %304 = vmatprep.subr.mxu0 %v86
    %305 = vmatpush1.msra.mxu0 %v85
    %306 = vmatprep.subr.mxu0 %v89
    %307 = vmatpush1.msra.mxu0 %v88
    %308 = vmatprep.subr.mxu0 %v92
    %309 = vmatpush1.msra.mxu0 %v91
    %310 = vmatprep.subr.mxu0 %v95
    %311 = vmatpush1.msra.mxu0 %v94
    %312 = vmatprep.subr.mxu0 %v98
    %313 = vmatpush1.msra.mxu0 %v97
    %314 = vmatprep.subr.mxu0 %v101
    %315 = vmatpush1.msra.mxu0 %v100
    %316 = vmatprep.subr.mxu0 0.0
    %317 = vmatpush1.msra.mxu0 0.0
    %318 = vmatprep.subr.mxu0 0.0
    %319 = vmatpush1.msra.mxu0 0.0
    %320 = vmatprep.subr.mxu0 0.0
    %321 = vmatpush1.msra.mxu0 0.0
    %322 = vmatprep.subr.mxu0 0.0
    %323 = vmatpush1.msra.mxu0 0.0
    %324 = vmatprep.subr.mxu0 0.0
    %325 = vmatpush1.msra.mxu0 0.0
    %326 = vmatprep.subr.mxu0 0.0
    %327 = vmatpush1.msra.mxu0 0.0
    %328 = vmatprep.subr.mxu0 0.0
    %329 = vmatpush1.msra.mxu0 0.0
    %330 = vmatprep.subr.mxu0 0.0
    %331 = vmatpush1.msra.mxu0 0.0
    %332 = vmatprep.subr.mxu0 0.0
    %333 = vmatpush1.msra.mxu0 0.0
    %334 = vmatprep.subr.mxu0 0.0
    %335 = vmatpush1.msra.mxu0 0.0
    %336 = vmatprep.subr.mxu0 0.0
    %337 = vmatpush1.msra.mxu0 0.0
    %338 = vmatprep.subr.mxu0 0.0
    %339 = vmatpush1.msra.mxu0 0.0
    %340 = vmatprep.subr.mxu0 0.0
    %341 = vmatpush1.msra.mxu0 0.0
    %342 = vmatprep.subr.mxu0 0.0
    %343 = vmatpush1.msra.mxu0 0.0
    %344 = vmatprep.subr.mxu0 0.0
    %345 = vmatpush1.msra.mxu0 0.0
    %346 = vmatprep.subr.mxu0 0.0
    %347 = vmatpush1.msra.mxu0 0.0
    %348 = vmatprep.mubr.f32.mxu0 0.0
    %349 = vmatmul.mubr.f32.gmra.mrb[0].mxu0 %v137
    %v350 = vpop.f32.mrb[0].mxu0
    %v351 = vadd.f32 %v125, %v350
    %v352 = vpop.f32.mrb[0].mxu0
    %v353 = vadd.f32 %v129, %v352
    %354 = vdwg.mxu0
    %355 = vmatprep.subr.mxu0 0.0
    %356 = vmatpush1.msra.mxu0 %v57
    %357 = vmatprep.subr.mxu0 0.0
    %358 = vmatpush1.msra.mxu0 %v60
    %359 = vmatprep.subr.mxu0 0.0
    %360 = vmatpush1.msra.mxu0 %v63
    %361 = vmatprep.subr.mxu0 0.0
    %362 = vmatpush1.msra.mxu0 %v66
    %363 = vmatprep.subr.mxu0 0.0
    %364 = vmatpush1.msra.mxu0 %v69
    %365 = vmatprep.subr.mxu0 0.0
    %366 = vmatpush1.msra.mxu0 %v72
    %367 = vmatprep.subr.mxu0 0.0
    %368 = vmatpush1.msra.mxu0 %v75
    %369 = vmatprep.subr.mxu0 0.0
    %370 = vmatpush1.msra.mxu0 %v78
    %371 = vmatprep.subr.mxu0 0.0
    %372 = vmatpush1.msra.mxu0 %v81
    %373 = vmatprep.subr.mxu0 0.0
    %374 = vmatpush1.msra.mxu0 %v84
    %375 = vmatprep.subr.mxu0 0.0
    %376 = vmatpush1.msra.mxu0 %v87
    %377 = vmatprep.subr.mxu0 0.0
    %378 = vmatpush1.msra.mxu0 %v90
    %379 = vmatprep.subr.mxu0 0.0
    %380 = vmatpush1.msra.mxu0 %v93
    %381 = vmatprep.subr.mxu0 0.0
    %382 = vmatpush1.msra.mxu0 %v96
    %383 = vmatprep.subr.mxu0 0.0
    %384 = vmatpush1.msra.mxu0 %v99
    %385 = vmatprep.subr.mxu0 0.0
    %386 = vmatpush1.msra.mxu0 %v102
    %387 = vmatprep.subr.mxu0 0.0
    %388 = vmatpush1.msra.mxu0 0.0
    %389 = vmatprep.subr.mxu0 0.0
    %390 = vmatpush1.msra.mxu0 0.0
    %391 = vmatprep.subr.mxu0 0.0
    %392 = vmatpush1.msra.mxu0 0.0
    %393 = vmatprep.subr.mxu0 0.0
    %394 = vmatpush1.msra.mxu0 0.0
    %395 = vmatprep.subr.mxu0 0.0
    %396 = vmatpush1.msra.mxu0 0.0
    %397 = vmatprep.subr.mxu0 0.0
    %398 = vmatpush1.msra.mxu0 0.0
    %399 = vmatprep.subr.mxu0 0.0
    %400 = vmatpush1.msra.mxu0 0.0
    %401 = vmatprep.subr.mxu0 0.0
    %402 = vmatpush1.msra.mxu0 0.0
    %403 = vmatprep.subr.mxu0 0.0
    %404 = vmatpush1.msra.mxu0 0.0
    %405 = vmatprep.subr.mxu0 0.0
    %406 = vmatpush1.msra.mxu0 0.0
    %407 = vmatprep.subr.mxu0 0.0
    %408 = vmatpush1.msra.mxu0 0.0
    %409 = vmatprep.subr.mxu0 0.0
    %410 = vmatpush1.msra.mxu0 0.0
    %411 = vmatprep.subr.mxu0 0.0
    %412 = vmatpush1.msra.mxu0 0.0
    %413 = vmatprep.subr.mxu0 0.0
    %414 = vmatpush1.msra.mxu0 0.0
    %415 = vmatprep.subr.mxu0 0.0
    %416 = vmatpush1.msra.mxu0 0.0
    %417 = vmatprep.subr.mxu0 0.0
    %418 = vmatpush1.msra.mxu0 0.0
    %419 = vmatprep.mubr.f32.mxu0 0.0
    %420 = vmatmul.mubr.f32.gmra.mrb[0].mxu0 %v137
    %v421 = vpop.f32.mrb[0].mxu0
    %v422 = vadd.f32 %v133, %v421
    %v423 = vpop.f32.mrb[0].mxu0
    %424 = vdwg.mxu0
    %v425 = vadd.f32 %v210, %v351
    %v426 = vxor.u32 %v425, 2147483648
    %v427 = vmul.f32 %v426, 1.442695
    %v428 = vpow.pop %v427
    %v429 = vadd.f32 %v428, 1.0
    %v430 = vrcp.pop %v429
    %v431 = vmul.f32 1.0, %v430
    %v432 = vadd.f32 %v212, %v353
    %v433 = vxor.u32 %v432, 2147483648
    %v434 = vmul.f32 %v433, 1.442695
    %v435 = vpow.pop %v434
    %v436 = vadd.f32 %v435, 1.0
    %v437 = vrcp.pop %v436
    %v438 = vmul.f32 1.0, %v437
    %v439 = vmul.f32 %v431, %v422
    %v440 = vadd.f32 %v281, %v439
    %v441 = vtanh.pop %v440
    %v442 = vsub.f32 1.0, %v438
    %v443 = vmul.f32 %v442, %v441
    %v444 = vmul.f32 %v438, %v137
    %v445 = vadd.f32 %v443, %v444
    %446 = vst [vmem:[%s6] sm:$0xff] %v445
    %s447 = scalar_lea.vmem %s0, 8
    %v448 = vld [vmem:[%s447] sm:$0xff]
    %v450 = vsel %vm139, %v448, 0
    %452 = vmatprep.subr.mxu0 %v44
    %453 = vmatpush1.msra.mxu0 %v43
    %454 = vmatprep.subr.mxu0 %v47
    %455 = vmatpush1.msra.mxu0 %v46
    %456 = vmatprep.subr.mxu0 %v50
    %457 = vmatpush1.msra.mxu0 %v49
    %458 = vmatprep.subr.mxu0 %v53
    %459 = vmatpush1.msra.mxu0 %v52
    %460 = vmatprep.subr.mxu0 0.0
    %461 = vmatpush1.msra.mxu0 0.0
    %462 = vmatprep.subr.mxu0 0.0
    %463 = vmatpush1.msra.mxu0 0.0
    %464 = vmatprep.subr.mxu0 0.0
    %465 = vmatpush1.msra.mxu0 0.0
    %466 = vmatprep.subr.mxu0 0.0
    %467 = vmatpush1.msra.mxu0 0.0
    %468 = vmatprep.subr.mxu0 0.0
    %469 = vmatpush1.msra.mxu0 0.0
    %470 = vmatprep.subr.mxu0 0.0
    %471 = vmatpush1.msra.mxu0 0.0
    %472 = vmatprep.subr.mxu0 0.0
    %473 = vmatpush1.msra.mxu0 0.0
    %474 = vmatprep.subr.mxu0 0.0
    %475 = vmatpush1.msra.mxu0 0.0
    %476 = vmatprep.subr.mxu0 0.0
    %477 = vmatpush1.msra.mxu0 0.0
    %478 = vmatprep.subr.mxu0 0.0
    %479 = vmatpush1.msra.mxu0 0.0
    %480 = vmatprep.subr.mxu0 0.0
    %481 = vmatpush1.msra.mxu0 0.0
    %482 = vmatprep.subr.mxu0 0.0
    %483 = vmatpush1.msra.mxu0 0.0
    %484 = vmatprep.subr.mxu0 0.0
    %485 = vmatpush1.msra.mxu0 0.0
    %486 = vmatprep.subr.mxu0 0.0
    %487 = vmatpush1.msra.mxu0 0.0
    %488 = vmatprep.subr.mxu0 0.0
    %489 = vmatpush1.msra.mxu0 0.0
    %490 = vmatprep.subr.mxu0 0.0
    %491 = vmatpush1.msra.mxu0 0.0
    %492 = vmatprep.subr.mxu0 0.0
    %493 = vmatpush1.msra.mxu0 0.0
    %494 = vmatprep.subr.mxu0 0.0
    %495 = vmatpush1.msra.mxu0 0.0
    %496 = vmatprep.subr.mxu0 0.0
    %497 = vmatpush1.msra.mxu0 0.0
    %498 = vmatprep.subr.mxu0 0.0
    %499 = vmatpush1.msra.mxu0 0.0
    %500 = vmatprep.subr.mxu0 0.0
    %501 = vmatpush1.msra.mxu0 0.0
    %502 = vmatprep.subr.mxu0 0.0
    %503 = vmatpush1.msra.mxu0 0.0
    %504 = vmatprep.subr.mxu0 0.0
    %505 = vmatpush1.msra.mxu0 0.0
    %506 = vmatprep.subr.mxu0 0.0
    %507 = vmatpush1.msra.mxu0 0.0
    %508 = vmatprep.subr.mxu0 0.0
    %509 = vmatpush1.msra.mxu0 0.0
    %510 = vmatprep.subr.mxu0 0.0
    %511 = vmatpush1.msra.mxu0 0.0
    %512 = vmatprep.subr.mxu0 0.0
    %513 = vmatpush1.msra.mxu0 0.0
    %514 = vmatprep.subr.mxu0 0.0
    %515 = vmatpush1.msra.mxu0 0.0
    %516 = vmatprep.mubr.f32.mxu0 0.0
    %517 = vmatmul.mubr.f32.gmra.mrb[0].mxu0 %v450
    %v518 = vpop.f32.mrb[0].mxu0
    %v519 = vadd.f32 %v108, %v518
    %v520 = vpop.f32.mrb[0].mxu0
    %v521 = vadd.f32 %v112, %v520
    %522 = vdwg.mxu0
    %523 = vmatprep.subr.mxu0 0.0
    %524 = vmatpush1.msra.mxu0 %v45
    %525 = vmatprep.subr.mxu0 0.0
    %526 = vmatpush1.msra.mxu0 %v48
    %527 = vmatprep.subr.mxu0 0.0
    %528 = vmatpush1.msra.mxu0 %v51
    %529 = vmatprep.subr.mxu0 0.0
    %530 = vmatpush1.msra.mxu0 %v54
    %531 = vmatprep.subr.mxu0 0.0
    %532 = vmatpush1.msra.mxu0 0.0
    %533 = vmatprep.subr.mxu0 0.0
    %534 = vmatpush1.msra.mxu0 0.0
    %535 = vmatprep.subr.mxu0 0.0
    %536 = vmatpush1.msra.mxu0 0.0
    %537 = vmatprep.subr.mxu0 0.0
    %538 = vmatpush1.msra.mxu0 0.0
    %539 = vmatprep.subr.mxu0 0.0
    %540 = vmatpush1.msra.mxu0 0.0
    %541 = vmatprep.subr.mxu0 0.0
    %542 = vmatpush1.msra.mxu0 0.0
    %543 = vmatprep.subr.mxu0 0.0
    %544 = vmatpush1.msra.mxu0 0.0
    %545 = vmatprep.subr.mxu0 0.0
    %546 = vmatpush1.msra.mxu0 0.0
    %547 = vmatprep.subr.mxu0 0.0
    %548 = vmatpush1.msra.mxu0 0.0
    %549 = vmatprep.subr.mxu0 0.0
    %550 = vmatpush1.msra.mxu0 0.0
    %551 = vmatprep.subr.mxu0 0.0
    %552 = vmatpush1.msra.mxu0 0.0
    %553 = vmatprep.subr.mxu0 0.0
    %554 = vmatpush1.msra.mxu0 0.0
    %555 = vmatprep.subr.mxu0 0.0
    %556 = vmatpush1.msra.mxu0 0.0
    %557 = vmatprep.subr.mxu0 0.0
    %558 = vmatpush1.msra.mxu0 0.0
    %559 = vmatprep.subr.mxu0 0.0
    %560 = vmatpush1.msra.mxu0 0.0
    %561 = vmatprep.subr.mxu0 0.0
    %562 = vmatpush1.msra.mxu0 0.0
    %563 = vmatprep.subr.mxu0 0.0
    %564 = vmatpush1.msra.mxu0 0.0
    %565 = vmatprep.subr.mxu0 0.0
    %566 = vmatpush1.msra.mxu0 0.0
    %567 = vmatprep.subr.mxu0 0.0
    %568 = vmatpush1.msra.mxu0 0.0
    %569 = vmatprep.subr.mxu0 0.0
    %570 = vmatpush1.msra.mxu0 0.0
    %571 = vmatprep.subr.mxu0 0.0
    %572 = vmatpush1.msra.mxu0 0.0
    %573 = vmatprep.subr.mxu0 0.0
    %574 = vmatpush1.msra.mxu0 0.0
    %575 = vmatprep.subr.mxu0 0.0
    %576 = vmatpush1.msra.mxu0 0.0
    %577 = vmatprep.subr.mxu0 0.0
    %578 = vmatpush1.msra.mxu0 0.0
    %579 = vmatprep.subr.mxu0 0.0
    %580 = vmatpush1.msra.mxu0 0.0
    %581 = vmatprep.subr.mxu0 0.0
    %582 = vmatpush1.msra.mxu0 0.0
    %583 = vmatprep.subr.mxu0 0.0
    %584 = vmatpush1.msra.mxu0 0.0
    %585 = vmatprep.subr.mxu0 0.0
    %586 = vmatpush1.msra.mxu0 0.0
    %587 = vmatprep.mubr.f32.mxu0 0.0
    %588 = vmatmul.mubr.f32.gmra.mrb[0].mxu0 %v450
    %v589 = vpop.f32.mrb[0].mxu0
    %v590 = vadd.f32 %v116, %v589
    %v591 = vpop.f32.mrb[0].mxu0
    %592 = vdwg.mxu0
    %593 = vmatprep.subr.mxu0 %v56
    %594 = vmatpush1.msra.mxu0 %v55
    %595 = vmatprep.subr.mxu0 %v59
    %596 = vmatpush1.msra.mxu0 %v58
    %597 = vmatprep.subr.mxu0 %v62
    %598 = vmatpush1.msra.mxu0 %v61
    %599 = vmatprep.subr.mxu0 %v65
    %600 = vmatpush1.msra.mxu0 %v64
    %601 = vmatprep.subr.mxu0 %v68
    %602 = vmatpush1.msra.mxu0 %v67
    %603 = vmatprep.subr.mxu0 %v71
    %604 = vmatpush1.msra.mxu0 %v70
    %605 = vmatprep.subr.mxu0 %v74
    %606 = vmatpush1.msra.mxu0 %v73
    %607 = vmatprep.subr.mxu0 %v77
    %608 = vmatpush1.msra.mxu0 %v76
    %609 = vmatprep.subr.mxu0 %v80
    %610 = vmatpush1.msra.mxu0 %v79
    %611 = vmatprep.subr.mxu0 %v83
    %612 = vmatpush1.msra.mxu0 %v82
    %613 = vmatprep.subr.mxu0 %v86
    %614 = vmatpush1.msra.mxu0 %v85
    %615 = vmatprep.subr.mxu0 %v89
    %616 = vmatpush1.msra.mxu0 %v88
    %617 = vmatprep.subr.mxu0 %v92
    %618 = vmatpush1.msra.mxu0 %v91
    %619 = vmatprep.subr.mxu0 %v95
    %620 = vmatpush1.msra.mxu0 %v94
    %621 = vmatprep.subr.mxu0 %v98
    %622 = vmatpush1.msra.mxu0 %v97
    %623 = vmatprep.subr.mxu0 %v101
    %624 = vmatpush1.msra.mxu0 %v100
    %625 = vmatprep.subr.mxu0 0.0
    %626 = vmatpush1.msra.mxu0 0.0
    %627 = vmatprep.subr.mxu0 0.0
    %628 = vmatpush1.msra.mxu0 0.0
    %629 = vmatprep.subr.mxu0 0.0
    %630 = vmatpush1.msra.mxu0 0.0
    %631 = vmatprep.subr.mxu0 0.0
    %632 = vmatpush1.msra.mxu0 0.0
    %633 = vmatprep.subr.mxu0 0.0
    %634 = vmatpush1.msra.mxu0 0.0
    %635 = vmatprep.subr.mxu0 0.0
    %636 = vmatpush1.msra.mxu0 0.0
    %637 = vmatprep.subr.mxu0 0.0
    %638 = vmatpush1.msra.mxu0 0.0
    %639 = vmatprep.subr.mxu0 0.0
    %640 = vmatpush1.msra.mxu0 0.0
    %641 = vmatprep.subr.mxu0 0.0
    %642 = vmatpush1.msra.mxu0 0.0
    %643 = vmatprep.subr.mxu0 0.0
    %644 = vmatpush1.msra.mxu0 0.0
    %645 = vmatprep.subr.mxu0 0.0
    %646 = vmatpush1.msra.mxu0 0.0
    %647 = vmatprep.subr.mxu0 0.0
    %648 = vmatpush1.msra.mxu0 0.0
    %649 = vmatprep.subr.mxu0 0.0
    %650 = vmatpush1.msra.mxu0 0.0
    %651 = vmatprep.subr.mxu0 0.0
    %652 = vmatpush1.msra.mxu0 0.0
    %653 = vmatprep.subr.mxu0 0.0
    %654 = vmatpush1.msra.mxu0 0.0
    %655 = vmatprep.subr.mxu0 0.0
    %656 = vmatpush1.msra.mxu0 0.0
    %657 = vmatprep.mubr.f32.mxu0 0.0
    %658 = vmatmul.mubr.f32.gmra.mrb[0].mxu0 %v445
    %v659 = vpop.f32.mrb[0].mxu0
    %v660 = vadd.f32 %v125, %v659
    %v661 = vpop.f32.mrb[0].mxu0
    %v662 = vadd.f32 %v129, %v661
    %663 = vdwg.mxu0
    %664 = vmatprep.subr.mxu0 0.0
    %665 = vmatpush1.msra.mxu0 %v57
    %666 = vmatprep.subr.mxu0 0.0
    %667 = vmatpush1.msra.mxu0 %v60
    %668 = vmatprep.subr.mxu0 0.0
    %669 = vmatpush1.msra.mxu0 %v63
    %670 = vmatprep.subr.mxu0 0.0
    %671 = vmatpush1.msra.mxu0 %v66
    %672 = vmatprep.subr.mxu0 0.0
    %673 = vmatpush1.msra.mxu0 %v69
    %674 = vmatprep.subr.mxu0 0.0
    %675 = vmatpush1.msra.mxu0 %v72
    %676 = vmatprep.subr.mxu0 0.0
    %677 = vmatpush1.msra.mxu0 %v75
    %678 = vmatprep.subr.mxu0 0.0
    %679 = vmatpush1.msra.mxu0 %v78
    %680 = vmatprep.subr.mxu0 0.0
    %681 = vmatpush1.msra.mxu0 %v81
    %682 = vmatprep.subr.mxu0 0.0
    %683 = vmatpush1.msra.mxu0 %v84
    %684 = vmatprep.subr.mxu0 0.0
    %685 = vmatpush1.msra.mxu0 %v87
    %686 = vmatprep.subr.mxu0 0.0
    %687 = vmatpush1.msra.mxu0 %v90
    %688 = vmatprep.subr.mxu0 0.0
    %689 = vmatpush1.msra.mxu0 %v93
    %690 = vmatprep.subr.mxu0 0.0
    %691 = vmatpush1.msra.mxu0 %v96
    %692 = vmatprep.subr.mxu0 0.0
    %693 = vmatpush1.msra.mxu0 %v99
    %694 = vmatprep.subr.mxu0 0.0
    %695 = vmatpush1.msra.mxu0 %v102
    %696 = vmatprep.subr.mxu0 0.0
    %697 = vmatpush1.msra.mxu0 0.0
    %698 = vmatprep.subr.mxu0 0.0
    %699 = vmatpush1.msra.mxu0 0.0
    %700 = vmatprep.subr.mxu0 0.0
    %701 = vmatpush1.msra.mxu0 0.0
    %702 = vmatprep.subr.mxu0 0.0
    %703 = vmatpush1.msra.mxu0 0.0
    %704 = vmatprep.subr.mxu0 0.0
    %705 = vmatpush1.msra.mxu0 0.0
    %706 = vmatprep.subr.mxu0 0.0
    %707 = vmatpush1.msra.mxu0 0.0
    %708 = vmatprep.subr.mxu0 0.0
    %709 = vmatpush1.msra.mxu0 0.0
    %710 = vmatprep.subr.mxu0 0.0
    %711 = vmatpush1.msra.mxu0 0.0
    %712 = vmatprep.subr.mxu0 0.0
    %713 = vmatpush1.msra.mxu0 0.0
    %714 = vmatprep.subr.mxu0 0.0
    %715 = vmatpush1.msra.mxu0 0.0
    %716 = vmatprep.subr.mxu0 0.0
    %717 = vmatpush1.msra.mxu0 0.0
    %718 = vmatprep.subr.mxu0 0.0
    %719 = vmatpush1.msra.mxu0 0.0
    %720 = vmatprep.subr.mxu0 0.0
    %721 = vmatpush1.msra.mxu0 0.0
    %722 = vmatprep.subr.mxu0 0.0
    %723 = vmatpush1.msra.mxu0 0.0
    %724 = vmatprep.subr.mxu0 0.0
    %725 = vmatpush1.msra.mxu0 0.0
    %726 = vmatprep.subr.mxu0 0.0
    %727 = vmatpush1.msra.mxu0 0.0
    %728 = vmatprep.mubr.f32.mxu0 0.0
    %729 = vmatmul.mubr.f32.gmra.mrb[0].mxu0 %v445
    %v730 = vpop.f32.mrb[0].mxu0
    %v731 = vadd.f32 %v133, %v730
    %v732 = vpop.f32.mrb[0].mxu0
    %733 = vdwg.mxu0
    %v734 = vadd.f32 %v519, %v660
    %v735 = vxor.u32 %v734, 2147483648
    %v736 = vmul.f32 %v735, 1.442695
    %v737 = vpow.pop %v736
    %v738 = vadd.f32 %v737, 1.0
    %v739 = vrcp.pop %v738
    %v740 = vmul.f32 1.0, %v739
    %v741 = vadd.f32 %v521, %v662
    %v742 = vxor.u32 %v741, 2147483648
    %v743 = vmul.f32 %v742, 1.442695
    %v744 = vpow.pop %v743
    %v745 = vadd.f32 %v744, 1.0
    %v746 = vrcp.pop %v745
    %v747 = vmul.f32 1.0, %v746
    %v748 = vmul.f32 %v740, %v731
    %v749 = vadd.f32 %v590, %v748
    %v750 = vtanh.pop %v749
    %v751 = vsub.f32 1.0, %v747
    %v752 = vmul.f32 %v751, %v750
    %v753 = vmul.f32 %v747, %v445
    %v754 = vadd.f32 %v752, %v753
    %s755 = scalar_lea.vmem %s6, 8
    %756 = vst [vmem:[%s755] sm:$0xff] %v754
    %s757 = scalar_lea.vmem %s0, 16
    %v758 = vld [vmem:[%s757] sm:$0xff]
    %v760 = vsel %vm139, %v758, 0
    %762 = vmatprep.subr.mxu0 %v44
    %763 = vmatpush1.msra.mxu0 %v43
    %764 = vmatprep.subr.mxu0 %v47
    %765 = vmatpush1.msra.mxu0 %v46
    %766 = vmatprep.subr.mxu0 %v50
    %767 = vmatpush1.msra.mxu0 %v49
    %768 = vmatprep.subr.mxu0 %v53
    %769 = vmatpush1.msra.mxu0 %v52
    %770 = vmatprep.subr.mxu0 0.0
    %771 = vmatpush1.msra.mxu0 0.0
    %772 = vmatprep.subr.mxu0 0.0
    %773 = vmatpush1.msra.mxu0 0.0
    %774 = vmatprep.subr.mxu0 0.0
    %775 = vmatpush1.msra.mxu0 0.0
    %776 = vmatprep.subr.mxu0 0.0
    %777 = vmatpush1.msra.mxu0 0.0
    %778 = vmatprep.subr.mxu0 0.0
    %779 = vmatpush1.msra.mxu0 0.0
    %780 = vmatprep.subr.mxu0 0.0
    %781 = vmatpush1.msra.mxu0 0.0
    %782 = vmatprep.subr.mxu0 0.0
    %783 = vmatpush1.msra.mxu0 0.0
    %784 = vmatprep.subr.mxu0 0.0
    %785 = vmatpush1.msra.mxu0 0.0
    %786 = vmatprep.subr.mxu0 0.0
    %787 = vmatpush1.msra.mxu0 0.0
    %788 = vmatprep.subr.mxu0 0.0
    %789 = vmatpush1.msra.mxu0 0.0
    %790 = vmatprep.subr.mxu0 0.0
    %791 = vmatpush1.msra.mxu0 0.0
    %792 = vmatprep.subr.mxu0 0.0
    %793 = vmatpush1.msra.mxu0 0.0
    %794 = vmatprep.subr.mxu0 0.0
    %795 = vmatpush1.msra.mxu0 0.0
    %796 = vmatprep.subr.mxu0 0.0
    %797 = vmatpush1.msra.mxu0 0.0
    %798 = vmatprep.subr.mxu0 0.0
    %799 = vmatpush1.msra.mxu0 0.0
    %800 = vmatprep.subr.mxu0 0.0
    %801 = vmatpush1.msra.mxu0 0.0
    %802 = vmatprep.subr.mxu0 0.0
    %803 = vmatpush1.msra.mxu0 0.0
    %804 = vmatprep.subr.mxu0 0.0
    %805 = vmatpush1.msra.mxu0 0.0
    %806 = vmatprep.subr.mxu0 0.0
    %807 = vmatpush1.msra.mxu0 0.0
    %808 = vmatprep.subr.mxu0 0.0
    %809 = vmatpush1.msra.mxu0 0.0
    %810 = vmatprep.subr.mxu0 0.0
    %811 = vmatpush1.msra.mxu0 0.0
    %812 = vmatprep.subr.mxu0 0.0
    %813 = vmatpush1.msra.mxu0 0.0
    %814 = vmatprep.subr.mxu0 0.0
    %815 = vmatpush1.msra.mxu0 0.0
    %816 = vmatprep.subr.mxu0 0.0
    %817 = vmatpush1.msra.mxu0 0.0
    %818 = vmatprep.subr.mxu0 0.0
    %819 = vmatpush1.msra.mxu0 0.0
    %820 = vmatprep.subr.mxu0 0.0
    %821 = vmatpush1.msra.mxu0 0.0
    %822 = vmatprep.subr.mxu0 0.0
    %823 = vmatpush1.msra.mxu0 0.0
    %824 = vmatprep.subr.mxu0 0.0
    %825 = vmatpush1.msra.mxu0 0.0
    %826 = vmatprep.mubr.f32.mxu0 0.0
    %827 = vmatmul.mubr.f32.gmra.mrb[0].mxu0 %v760
    %v828 = vpop.f32.mrb[0].mxu0
    %v829 = vadd.f32 %v108, %v828
    %v830 = vpop.f32.mrb[0].mxu0
    %v831 = vadd.f32 %v112, %v830
    %832 = vdwg.mxu0
    %833 = vmatprep.subr.mxu0 0.0
    %834 = vmatpush1.msra.mxu0 %v45
    %835 = vmatprep.subr.mxu0 0.0
    %836 = vmatpush1.msra.mxu0 %v48
    %837 = vmatprep.subr.mxu0 0.0
    %838 = vmatpush1.msra.mxu0 %v51
    %839 = vmatprep.subr.mxu0 0.0
    %840 = vmatpush1.msra.mxu0 %v54
    %841 = vmatprep.subr.mxu0 0.0
    %842 = vmatpush1.msra.mxu0 0.0
    %843 = vmatprep.subr.mxu0 0.0
    %844 = vmatpush1.msra.mxu0 0.0
    %845 = vmatprep.subr.mxu0 0.0
    %846 = vmatpush1.msra.mxu0 0.0
    %847 = vmatprep.subr.mxu0 0.0
    %848 = vmatpush1.msra.mxu0 0.0
    %849 = vmatprep.subr.mxu0 0.0
    %850 = vmatpush1.msra.mxu0 0.0
    %851 = vmatprep.subr.mxu0 0.0
    %852 = vmatpush1.msra.mxu0 0.0
    %853 = vmatprep.subr.mxu0 0.0
    %854 = vmatpush1.msra.mxu0 0.0
    %855 = vmatprep.subr.mxu0 0.0
    %856 = vmatpush1.msra.mxu0 0.0
    %857 = vmatprep.subr.mxu0 0.0
    %858 = vmatpush1.msra.mxu0 0.0
    %859 = vmatprep.subr.mxu0 0.0
    %860 = vmatpush1.msra.mxu0 0.0
    %861 = vmatprep.subr.mxu0 0.0
    %862 = vmatpush1.msra.mxu0 0.0
    %863 = vmatprep.subr.mxu0 0.0
    %864 = vmatpush1.msra.mxu0 0.0
    %865 = vmatprep.subr.mxu0 0.0
    %866 = vmatpush1.msra.mxu0 0.0
    %867 = vmatprep.subr.mxu0 0.0
    %868 = vmatpush1.msra.mxu0 0.0
    %869 = vmatprep.subr.mxu0 0.0
    %870 = vmatpush1.msra.mxu0 0.0
    %871 = vmatprep.subr.mxu0 0.0
    %872 = vmatpush1.msra.mxu0 0.0
    %873 = vmatprep.subr.mxu0 0.0
    %874 = vmatpush1.msra.mxu0 0.0
    %875 = vmatprep.subr.mxu0 0.0
    %876 = vmatpush1.msra.mxu0 0.0
    %877 = vmatprep.subr.mxu0 0.0
    %878 = vmatpush1.msra.mxu0 0.0
    %879 = vmatprep.subr.mxu0 0.0
    %880 = vmatpush1.msra.mxu0 0.0
    %881 = vmatprep.subr.mxu0 0.0
    %882 = vmatpush1.msra.mxu0 0.0
    %883 = vmatprep.subr.mxu0 0.0
    %884 = vmatpush1.msra.mxu0 0.0
    %885 = vmatprep.subr.mxu0 0.0
    %886 = vmatpush1.msra.mxu0 0.0
    %887 = vmatprep.subr.mxu0 0.0
    %888 = vmatpush1.msra.mxu0 0.0
    %889 = vmatprep.subr.mxu0 0.0
    %890 = vmatpush1.msra.mxu0 0.0
    %891 = vmatprep.subr.mxu0 0.0
    %892 = vmatpush1.msra.mxu0 0.0
    %893 = vmatprep.subr.mxu0 0.0
    %894 = vmatpush1.msra.mxu0 0.0
    %895 = vmatprep.subr.mxu0 0.0
    %896 = vmatpush1.msra.mxu0 0.0
    %897 = vmatprep.mubr.f32.mxu0 0.0
    %898 = vmatmul.mubr.f32.gmra.mrb[0].mxu0 %v760
    %v899 = vpop.f32.mrb[0].mxu0
    %v900 = vadd.f32 %v116, %v899
    %v901 = vpop.f32.mrb[0].mxu0
    %902 = vdwg.mxu0
    %903 = vmatprep.subr.mxu0 %v56
    %904 = vmatpush1.msra.mxu0 %v55
    %905 = vmatprep.subr.mxu0 %v59
    %906 = vmatpush1.msra.mxu0 %v58
    %907 = vmatprep.subr.mxu0 %v62
    %908 = vmatpush1.msra.mxu0 %v61
    %909 = vmatprep.subr.mxu0 %v65
    %910 = vmatpush1.msra.mxu0 %v64
    %911 = vmatprep.subr.mxu0 %v68
    %912 = vmatpush1.msra.mxu0 %v67
    %913 = vmatprep.subr.mxu0 %v71
    %914 = vmatpush1.msra.mxu0 %v70
    %915 = vmatprep.subr.mxu0 %v74
    %916 = vmatpush1.msra.mxu0 %v73
    %917 = vmatprep.subr.mxu0 %v77
    %918 = vmatpush1.msra.mxu0 %v76
    %919 = vmatprep.subr.mxu0 %v80
    %920 = vmatpush1.msra.mxu0 %v79
    %921 = vmatprep.subr.mxu0 %v83
    %922 = vmatpush1.msra.mxu0 %v82
    %923 = vmatprep.subr.mxu0 %v86
    %924 = vmatpush1.msra.mxu0 %v85
    %925 = vmatprep.subr.mxu0 %v89
    %926 = vmatpush1.msra.mxu0 %v88
    %927 = vmatprep.subr.mxu0 %v92
    %928 = vmatpush1.msra.mxu0 %v91
    %929 = vmatprep.subr.mxu0 %v95
    %930 = vmatpush1.msra.mxu0 %v94
    %931 = vmatprep.subr.mxu0 %v98
    %932 = vmatpush1.msra.mxu0 %v97
    %933 = vmatprep.subr.mxu0 %v101
    %934 = vmatpush1.msra.mxu0 %v100
    %935 = vmatprep.subr.mxu0 0.0
    %936 = vmatpush1.msra.mxu0 0.0
    %937 = vmatprep.subr.mxu0 0.0
    %938 = vmatpush1.msra.mxu0 0.0
    %939 = vmatprep.subr.mxu0 0.0
    %940 = vmatpush1.msra.mxu0 0.0
    %941 = vmatprep.subr.mxu0 0.0
    %942 = vmatpush1.msra.mxu0 0.0
    %943 = vmatprep.subr.mxu0 0.0
    %944 = vmatpush1.msra.mxu0 0.0
    %945 = vmatprep.subr.mxu0 0.0
    %946 = vmatpush1.msra.mxu0 0.0
    %947 = vmatprep.subr.mxu0 0.0
    %948 = vmatpush1.msra.mxu0 0.0
    %949 = vmatprep.subr.mxu0 0.0
    %950 = vmatpush1.msra.mxu0 0.0
    %951 = vmatprep.subr.mxu0 0.0
    %952 = vmatpush1.msra.mxu0 0.0
    %953 = vmatprep.subr.mxu0 0.0
    %954 = vmatpush1.msra.mxu0 0.0
    %955 = vmatprep.subr.mxu0 0.0
    %956 = vmatpush1.msra.mxu0 0.0
    %957 = vmatprep.subr.mxu0 0.0
    %958 = vmatpush1.msra.mxu0 0.0
    %959 = vmatprep.subr.mxu0 0.0
    %960 = vmatpush1.msra.mxu0 0.0
    %961 = vmatprep.subr.mxu0 0.0
    %962 = vmatpush1.msra.mxu0 0.0
    %963 = vmatprep.subr.mxu0 0.0
    %964 = vmatpush1.msra.mxu0 0.0
    %965 = vmatprep.subr.mxu0 0.0
    %966 = vmatpush1.msra.mxu0 0.0
    %967 = vmatprep.mubr.f32.mxu0 0.0
    %968 = vmatmul.mubr.f32.gmra.mrb[0].mxu0 %v754
    %v969 = vpop.f32.mrb[0].mxu0
    %v970 = vadd.f32 %v125, %v969
    %v971 = vpop.f32.mrb[0].mxu0
    %v972 = vadd.f32 %v129, %v971
    %973 = vdwg.mxu0
    %974 = vmatprep.subr.mxu0 0.0
    %975 = vmatpush1.msra.mxu0 %v57
    %976 = vmatprep.subr.mxu0 0.0
    %977 = vmatpush1.msra.mxu0 %v60
    %978 = vmatprep.subr.mxu0 0.0
    %979 = vmatpush1.msra.mxu0 %v63
    %980 = vmatprep.subr.mxu0 0.0
    %981 = vmatpush1.msra.mxu0 %v66
    %982 = vmatprep.subr.mxu0 0.0
    %983 = vmatpush1.msra.mxu0 %v69
    %984 = vmatprep.subr.mxu0 0.0
    %985 = vmatpush1.msra.mxu0 %v72
    %986 = vmatprep.subr.mxu0 0.0
    %987 = vmatpush1.msra.mxu0 %v75
    %988 = vmatprep.subr.mxu0 0.0
    %989 = vmatpush1.msra.mxu0 %v78
    %990 = vmatprep.subr.mxu0 0.0
    %991 = vmatpush1.msra.mxu0 %v81
    %992 = vmatprep.subr.mxu0 0.0
    %993 = vmatpush1.msra.mxu0 %v84
    %994 = vmatprep.subr.mxu0 0.0
    %995 = vmatpush1.msra.mxu0 %v87
    %996 = vmatprep.subr.mxu0 0.0
    %997 = vmatpush1.msra.mxu0 %v90
    %998 = vmatprep.subr.mxu0 0.0
    %999 = vmatpush1.msra.mxu0 %v93
    %1000 = vmatprep.subr.mxu0 0.0
    %1001 = vmatpush1.msra.mxu0 %v96
    %1002 = vmatprep.subr.mxu0 0.0
    %1003 = vmatpush1.msra.mxu0 %v99
    %1004 = vmatprep.subr.mxu0 0.0
    %1005 = vmatpush1.msra.mxu0 %v102
    %1006 = vmatprep.subr.mxu0 0.0
    %1007 = vmatpush1.msra.mxu0 0.0
    %1008 = vmatprep.subr.mxu0 0.0
    %1009 = vmatpush1.msra.mxu0 0.0
    %1010 = vmatprep.subr.mxu0 0.0
    %1011 = vmatpush1.msra.mxu0 0.0
    %1012 = vmatprep.subr.mxu0 0.0
    %1013 = vmatpush1.msra.mxu0 0.0
    %1014 = vmatprep.subr.mxu0 0.0
    %1015 = vmatpush1.msra.mxu0 0.0
    %1016 = vmatprep.subr.mxu0 0.0
    %1017 = vmatpush1.msra.mxu0 0.0
    %1018 = vmatprep.subr.mxu0 0.0
    %1019 = vmatpush1.msra.mxu0 0.0
    %1020 = vmatprep.subr.mxu0 0.0
    %1021 = vmatpush1.msra.mxu0 0.0
    %1022 = vmatprep.subr.mxu0 0.0
    %1023 = vmatpush1.msra.mxu0 0.0
    %1024 = vmatprep.subr.mxu0 0.0
    %1025 = vmatpush1.msra.mxu0 0.0
    %1026 = vmatprep.subr.mxu0 0.0
    %1027 = vmatpush1.msra.mxu0 0.0
    %1028 = vmatprep.subr.mxu0 0.0
    %1029 = vmatpush1.msra.mxu0 0.0
    %1030 = vmatprep.subr.mxu0 0.0
    %1031 = vmatpush1.msra.mxu0 0.0
    %1032 = vmatprep.subr.mxu0 0.0
    %1033 = vmatpush1.msra.mxu0 0.0
    %1034 = vmatprep.subr.mxu0 0.0
    %1035 = vmatpush1.msra.mxu0 0.0
    %1036 = vmatprep.subr.mxu0 0.0
    %1037 = vmatpush1.msra.mxu0 0.0
    %1038 = vmatprep.mubr.f32.mxu0 0.0
    %1039 = vmatmul.mubr.f32.gmra.mrb[0].mxu0 %v754
    %v1040 = vpop.f32.mrb[0].mxu0
    %v1041 = vadd.f32 %v133, %v1040
    %v1042 = vpop.f32.mrb[0].mxu0
    %1043 = vdwg.mxu0
    %v1044 = vadd.f32 %v829, %v970
    %v1045 = vxor.u32 %v1044, 2147483648
    %v1046 = vmul.f32 %v1045, 1.442695
    %v1047 = vpow.pop %v1046
    %v1048 = vadd.f32 %v1047, 1.0
    %v1049 = vrcp.pop %v1048
    %v1050 = vmul.f32 1.0, %v1049
    %v1051 = vadd.f32 %v831, %v972
    %v1052 = vxor.u32 %v1051, 2147483648
    %v1053 = vmul.f32 %v1052, 1.442695
    %v1054 = vpow.pop %v1053
    %v1055 = vadd.f32 %v1054, 1.0
    %v1056 = vrcp.pop %v1055
    %v1057 = vmul.f32 1.0, %v1056
    %v1058 = vmul.f32 %v1050, %v1041
    %v1059 = vadd.f32 %v900, %v1058
    %v1060 = vtanh.pop %v1059
    %v1061 = vsub.f32 1.0, %v1057
    %v1062 = vmul.f32 %v1061, %v1060
    %v1063 = vmul.f32 %v1057, %v754
    %v1064 = vadd.f32 %v1062, %v1063
    %s1065 = scalar_lea.vmem %s6, 16
    %1066 = vst [vmem:[%s1065] sm:$0xff] %v1064
    %s1067 = scalar_lea.vmem %s0, 24
    %v1068 = vld [vmem:[%s1067] sm:$0xff]
    %v1070 = vsel %vm139, %v1068, 0
    %1072 = vmatprep.subr.mxu0 %v44
    %1073 = vmatpush1.msra.mxu0 %v43
    %1074 = vmatprep.subr.mxu0 %v47
    %1075 = vmatpush1.msra.mxu0 %v46
    %1076 = vmatprep.subr.mxu0 %v50
    %1077 = vmatpush1.msra.mxu0 %v49
    %1078 = vmatprep.subr.mxu0 %v53
    %1079 = vmatpush1.msra.mxu0 %v52
    %1080 = vmatprep.subr.mxu0 0.0
    %1081 = vmatpush1.msra.mxu0 0.0
    %1082 = vmatprep.subr.mxu0 0.0
    %1083 = vmatpush1.msra.mxu0 0.0
    %1084 = vmatprep.subr.mxu0 0.0
    %1085 = vmatpush1.msra.mxu0 0.0
    %1086 = vmatprep.subr.mxu0 0.0
    %1087 = vmatpush1.msra.mxu0 0.0
    %1088 = vmatprep.subr.mxu0 0.0
    %1089 = vmatpush1.msra.mxu0 0.0
    %1090 = vmatprep.subr.mxu0 0.0
    %1091 = vmatpush1.msra.mxu0 0.0
    %1092 = vmatprep.subr.mxu0 0.0
    %1093 = vmatpush1.msra.mxu0 0.0
    %1094 = vmatprep.subr.mxu0 0.0
    %1095 = vmatpush1.msra.mxu0 0.0
    %1096 = vmatprep.subr.mxu0 0.0
    %1097 = vmatpush1.msra.mxu0 0.0
    %1098 = vmatprep.subr.mxu0 0.0
    %1099 = vmatpush1.msra.mxu0 0.0
    %1100 = vmatprep.subr.mxu0 0.0
    %1101 = vmatpush1.msra.mxu0 0.0
    %1102 = vmatprep.subr.mxu0 0.0
    %1103 = vmatpush1.msra.mxu0 0.0
    %1104 = vmatprep.subr.mxu0 0.0
    %1105 = vmatpush1.msra.mxu0 0.0
    %1106 = vmatprep.subr.mxu0 0.0
    %1107 = vmatpush1.msra.mxu0 0.0
    %1108 = vmatprep.subr.mxu0 0.0
    %1109 = vmatpush1.msra.mxu0 0.0
    %1110 = vmatprep.subr.mxu0 0.0
    %1111 = vmatpush1.msra.mxu0 0.0
    %1112 = vmatprep.subr.mxu0 0.0
    %1113 = vmatpush1.msra.mxu0 0.0
    %1114 = vmatprep.subr.mxu0 0.0
    %1115 = vmatpush1.msra.mxu0 0.0
    %1116 = vmatprep.subr.mxu0 0.0
    %1117 = vmatpush1.msra.mxu0 0.0
    %1118 = vmatprep.subr.mxu0 0.0
    %1119 = vmatpush1.msra.mxu0 0.0
    %1120 = vmatprep.subr.mxu0 0.0
    %1121 = vmatpush1.msra.mxu0 0.0
    %1122 = vmatprep.subr.mxu0 0.0
    %1123 = vmatpush1.msra.mxu0 0.0
    %1124 = vmatprep.subr.mxu0 0.0
    %1125 = vmatpush1.msra.mxu0 0.0
    %1126 = vmatprep.subr.mxu0 0.0
    %1127 = vmatpush1.msra.mxu0 0.0
    %1128 = vmatprep.subr.mxu0 0.0
    %1129 = vmatpush1.msra.mxu0 0.0
    %1130 = vmatprep.subr.mxu0 0.0
    %1131 = vmatpush1.msra.mxu0 0.0
    %1132 = vmatprep.subr.mxu0 0.0
    %1133 = vmatpush1.msra.mxu0 0.0
    %1134 = vmatprep.subr.mxu0 0.0
    %1135 = vmatpush1.msra.mxu0 0.0
    %1136 = vmatprep.mubr.f32.mxu0 0.0
    %1137 = vmatmul.mubr.f32.gmra.mrb[0].mxu0 %v1070
    %v1138 = vpop.f32.mrb[0].mxu0
    %v1139 = vadd.f32 %v108, %v1138
    %v1140 = vpop.f32.mrb[0].mxu0
    %v1141 = vadd.f32 %v112, %v1140
    %1142 = vdwg.mxu0
    %1143 = vmatprep.subr.mxu0 0.0
    %1144 = vmatpush1.msra.mxu0 %v45
    %1145 = vmatprep.subr.mxu0 0.0
    %1146 = vmatpush1.msra.mxu0 %v48
    %1147 = vmatprep.subr.mxu0 0.0
    %1148 = vmatpush1.msra.mxu0 %v51
    %1149 = vmatprep.subr.mxu0 0.0
    %1150 = vmatpush1.msra.mxu0 %v54
    %1151 = vmatprep.subr.mxu0 0.0
    %1152 = vmatpush1.msra.mxu0 0.0
    %1153 = vmatprep.subr.mxu0 0.0
    %1154 = vmatpush1.msra.mxu0 0.0
    %1155 = vmatprep.subr.mxu0 0.0
    %1156 = vmatpush1.msra.mxu0 0.0
    %1157 = vmatprep.subr.mxu0 0.0
    %1158 = vmatpush1.msra.mxu0 0.0
    %1159 = vmatprep.subr.mxu0 0.0
    %1160 = vmatpush1.msra.mxu0 0.0
    %1161 = vmatprep.subr.mxu0 0.0
    %1162 = vmatpush1.msra.mxu0 0.0
    %1163 = vmatprep.subr.mxu0 0.0
    %1164 = vmatpush1.msra.mxu0 0.0
    %1165 = vmatprep.subr.mxu0 0.0
    %1166 = vmatpush1.msra.mxu0 0.0
    %1167 = vmatprep.subr.mxu0 0.0
    %1168 = vmatpush1.msra.mxu0 0.0
    %1169 = vmatprep.subr.mxu0 0.0
    %1170 = vmatpush1.msra.mxu0 0.0
    %1171 = vmatprep.subr.mxu0 0.0
    %1172 = vmatpush1.msra.mxu0 0.0
    %1173 = vmatprep.subr.mxu0 0.0
    %1174 = vmatpush1.msra.mxu0 0.0
    %1175 = vmatprep.subr.mxu0 0.0
    %1176 = vmatpush1.msra.mxu0 0.0
    %1177 = vmatprep.subr.mxu0 0.0
    %1178 = vmatpush1.msra.mxu0 0.0
    %1179 = vmatprep.subr.mxu0 0.0
    %1180 = vmatpush1.msra.mxu0 0.0
    %1181 = vmatprep.subr.mxu0 0.0
    %1182 = vmatpush1.msra.mxu0 0.0
    %1183 = vmatprep.subr.mxu0 0.0
    %1184 = vmatpush1.msra.mxu0 0.0
    %1185 = vmatprep.subr.mxu0 0.0
    %1186 = vmatpush1.msra.mxu0 0.0
    %1187 = vmatprep.subr.mxu0 0.0
    %1188 = vmatpush1.msra.mxu0 0.0
    %1189 = vmatprep.subr.mxu0 0.0
    %1190 = vmatpush1.msra.mxu0 0.0
    %1191 = vmatprep.subr.mxu0 0.0
    %1192 = vmatpush1.msra.mxu0 0.0
    %1193 = vmatprep.subr.mxu0 0.0
    %1194 = vmatpush1.msra.mxu0 0.0
    %1195 = vmatprep.subr.mxu0 0.0
    %1196 = vmatpush1.msra.mxu0 0.0
    %1197 = vmatprep.subr.mxu0 0.0
    %1198 = vmatpush1.msra.mxu0 0.0
    %1199 = vmatprep.subr.mxu0 0.0
    %1200 = vmatpush1.msra.mxu0 0.0
    %1201 = vmatprep.subr.mxu0 0.0
    %1202 = vmatpush1.msra.mxu0 0.0
    %1203 = vmatprep.subr.mxu0 0.0
    %1204 = vmatpush1.msra.mxu0 0.0
    %1205 = vmatprep.subr.mxu0 0.0
    %1206 = vmatpush1.msra.mxu0 0.0
    %1207 = vmatprep.mubr.f32.mxu0 0.0
    %1208 = vmatmul.mubr.f32.gmra.mrb[0].mxu0 %v1070
    %v1209 = vpop.f32.mrb[0].mxu0
    %v1210 = vadd.f32 %v116, %v1209
    %v1211 = vpop.f32.mrb[0].mxu0
    %1212 = vdwg.mxu0
    %1213 = vmatprep.subr.mxu0 %v56
    %1214 = vmatpush1.msra.mxu0 %v55
    %1215 = vmatprep.subr.mxu0 %v59
    %1216 = vmatpush1.msra.mxu0 %v58
    %1217 = vmatprep.subr.mxu0 %v62
    %1218 = vmatpush1.msra.mxu0 %v61
    %1219 = vmatprep.subr.mxu0 %v65
    %1220 = vmatpush1.msra.mxu0 %v64
    %1221 = vmatprep.subr.mxu0 %v68
    %1222 = vmatpush1.msra.mxu0 %v67
    %1223 = vmatprep.subr.mxu0 %v71
    %1224 = vmatpush1.msra.mxu0 %v70
    %1225 = vmatprep.subr.mxu0 %v74
    %1226 = vmatpush1.msra.mxu0 %v73
    %1227 = vmatprep.subr.mxu0 %v77
    %1228 = vmatpush1.msra.mxu0 %v76
    %1229 = vmatprep.subr.mxu0 %v80
    %1230 = vmatpush1.msra.mxu0 %v79
    %1231 = vmatprep.subr.mxu0 %v83
    %1232 = vmatpush1.msra.mxu0 %v82
    %1233 = vmatprep.subr.mxu0 %v86
    %1234 = vmatpush1.msra.mxu0 %v85
    %1235 = vmatprep.subr.mxu0 %v89
    %1236 = vmatpush1.msra.mxu0 %v88
    %1237 = vmatprep.subr.mxu0 %v92
    %1238 = vmatpush1.msra.mxu0 %v91
    %1239 = vmatprep.subr.mxu0 %v95
    %1240 = vmatpush1.msra.mxu0 %v94
    %1241 = vmatprep.subr.mxu0 %v98
    %1242 = vmatpush1.msra.mxu0 %v97
    %1243 = vmatprep.subr.mxu0 %v101
    %1244 = vmatpush1.msra.mxu0 %v100
    %1245 = vmatprep.subr.mxu0 0.0
    %1246 = vmatpush1.msra.mxu0 0.0
    %1247 = vmatprep.subr.mxu0 0.0
    %1248 = vmatpush1.msra.mxu0 0.0
    %1249 = vmatprep.subr.mxu0 0.0
    %1250 = vmatpush1.msra.mxu0 0.0
    %1251 = vmatprep.subr.mxu0 0.0
    %1252 = vmatpush1.msra.mxu0 0.0
    %1253 = vmatprep.subr.mxu0 0.0
    %1254 = vmatpush1.msra.mxu0 0.0
    %1255 = vmatprep.subr.mxu0 0.0
    %1256 = vmatpush1.msra.mxu0 0.0
    %1257 = vmatprep.subr.mxu0 0.0
    %1258 = vmatpush1.msra.mxu0 0.0
    %1259 = vmatprep.subr.mxu0 0.0
    %1260 = vmatpush1.msra.mxu0 0.0
    %1261 = vmatprep.subr.mxu0 0.0
    %1262 = vmatpush1.msra.mxu0 0.0
    %1263 = vmatprep.subr.mxu0 0.0
    %1264 = vmatpush1.msra.mxu0 0.0
    %1265 = vmatprep.subr.mxu0 0.0
    %1266 = vmatpush1.msra.mxu0 0.0
    %1267 = vmatprep.subr.mxu0 0.0
    %1268 = vmatpush1.msra.mxu0 0.0
    %1269 = vmatprep.subr.mxu0 0.0
    %1270 = vmatpush1.msra.mxu0 0.0
    %1271 = vmatprep.subr.mxu0 0.0
    %1272 = vmatpush1.msra.mxu0 0.0
    %1273 = vmatprep.subr.mxu0 0.0
    %1274 = vmatpush1.msra.mxu0 0.0
    %1275 = vmatprep.subr.mxu0 0.0
    %1276 = vmatpush1.msra.mxu0 0.0
    %1277 = vmatprep.mubr.f32.mxu0 0.0
    %1278 = vmatmul.mubr.f32.gmra.mrb[0].mxu0 %v1064
    %v1279 = vpop.f32.mrb[0].mxu0
    %v1280 = vadd.f32 %v125, %v1279
    %v1281 = vpop.f32.mrb[0].mxu0
    %v1282 = vadd.f32 %v129, %v1281
    %1283 = vdwg.mxu0
    %1284 = vmatprep.subr.mxu0 0.0
    %1285 = vmatpush1.msra.mxu0 %v57
    %1286 = vmatprep.subr.mxu0 0.0
    %1287 = vmatpush1.msra.mxu0 %v60
    %1288 = vmatprep.subr.mxu0 0.0
    %1289 = vmatpush1.msra.mxu0 %v63
    %1290 = vmatprep.subr.mxu0 0.0
    %1291 = vmatpush1.msra.mxu0 %v66
    %1292 = vmatprep.subr.mxu0 0.0
    %1293 = vmatpush1.msra.mxu0 %v69
    %1294 = vmatprep.subr.mxu0 0.0
    %1295 = vmatpush1.msra.mxu0 %v72
    %1296 = vmatprep.subr.mxu0 0.0
    %1297 = vmatpush1.msra.mxu0 %v75
    %1298 = vmatprep.subr.mxu0 0.0
    %1299 = vmatpush1.msra.mxu0 %v78
    %1300 = vmatprep.subr.mxu0 0.0
    %1301 = vmatpush1.msra.mxu0 %v81
    %1302 = vmatprep.subr.mxu0 0.0
    %1303 = vmatpush1.msra.mxu0 %v84
    %1304 = vmatprep.subr.mxu0 0.0
    %1305 = vmatpush1.msra.mxu0 %v87
    %1306 = vmatprep.subr.mxu0 0.0
    %1307 = vmatpush1.msra.mxu0 %v90
    %1308 = vmatprep.subr.mxu0 0.0
    %1309 = vmatpush1.msra.mxu0 %v93
    %1310 = vmatprep.subr.mxu0 0.0
    %1311 = vmatpush1.msra.mxu0 %v96
    %1312 = vmatprep.subr.mxu0 0.0
    %1313 = vmatpush1.msra.mxu0 %v99
    %1314 = vmatprep.subr.mxu0 0.0
    %1315 = vmatpush1.msra.mxu0 %v102
    %1316 = vmatprep.subr.mxu0 0.0
    %1317 = vmatpush1.msra.mxu0 0.0
    %1318 = vmatprep.subr.mxu0 0.0
    %1319 = vmatpush1.msra.mxu0 0.0
    %1320 = vmatprep.subr.mxu0 0.0
    %1321 = vmatpush1.msra.mxu0 0.0
    %1322 = vmatprep.subr.mxu0 0.0
    %1323 = vmatpush1.msra.mxu0 0.0
    %1324 = vmatprep.subr.mxu0 0.0
    %1325 = vmatpush1.msra.mxu0 0.0
    %1326 = vmatprep.subr.mxu0 0.0
    %1327 = vmatpush1.msra.mxu0 0.0
    %1328 = vmatprep.subr.mxu0 0.0
    %1329 = vmatpush1.msra.mxu0 0.0
    %1330 = vmatprep.subr.mxu0 0.0
    %1331 = vmatpush1.msra.mxu0 0.0
    %1332 = vmatprep.subr.mxu0 0.0
    %1333 = vmatpush1.msra.mxu0 0.0
    %1334 = vmatprep.subr.mxu0 0.0
    %1335 = vmatpush1.msra.mxu0 0.0
    %1336 = vmatprep.subr.mxu0 0.0
    %1337 = vmatpush1.msra.mxu0 0.0
    %1338 = vmatprep.subr.mxu0 0.0
    %1339 = vmatpush1.msra.mxu0 0.0
    %1340 = vmatprep.subr.mxu0 0.0
    %1341 = vmatpush1.msra.mxu0 0.0
    %1342 = vmatprep.subr.mxu0 0.0
    %1343 = vmatpush1.msra.mxu0 0.0
    %1344 = vmatprep.subr.mxu0 0.0
    %1345 = vmatpush1.msra.mxu0 0.0
    %1346 = vmatprep.subr.mxu0 0.0
    %1347 = vmatpush1.msra.mxu0 0.0
    %1348 = vmatprep.mubr.f32.mxu0 0.0
    %1349 = vmatmul.mubr.f32.gmra.mrb[0].mxu0 %v1064
    %v1350 = vpop.f32.mrb[0].mxu0
    %v1351 = vadd.f32 %v133, %v1350
    %v1352 = vpop.f32.mrb[0].mxu0
    %1353 = vdwg.mxu0
    %v1354 = vadd.f32 %v1139, %v1280
    %v1355 = vxor.u32 %v1354, 2147483648
    %v1356 = vmul.f32 %v1355, 1.442695
    %v1357 = vpow.pop %v1356
    %v1358 = vadd.f32 %v1357, 1.0
    %v1359 = vrcp.pop %v1358
    %v1360 = vmul.f32 1.0, %v1359
    %v1361 = vadd.f32 %v1141, %v1282
    %v1362 = vxor.u32 %v1361, 2147483648
    %v1363 = vmul.f32 %v1362, 1.442695
    %v1364 = vpow.pop %v1363
    %v1365 = vadd.f32 %v1364, 1.0
    %v1366 = vrcp.pop %v1365
    %v1367 = vmul.f32 1.0, %v1366
    %v1368 = vmul.f32 %v1360, %v1351
    %v1369 = vadd.f32 %v1210, %v1368
    %v1370 = vtanh.pop %v1369
    %v1371 = vsub.f32 1.0, %v1367
    %v1372 = vmul.f32 %v1371, %v1370
    %v1373 = vmul.f32 %v1367, %v1064
    %v1374 = vadd.f32 %v1372, %v1373
    %s1375 = scalar_lea.vmem %s6, 24
    %1376 = vst [vmem:[%s1375] sm:$0xff] %v1374
    %s1377 = scalar_lea.vmem %s0, 32
    %v1378 = vld [vmem:[%s1377] sm:$0xff]
    %v1380 = vsel %vm139, %v1378, 0
    %1382 = vmatprep.subr.mxu0 %v44
    %1383 = vmatpush1.msra.mxu0 %v43
    %1384 = vmatprep.subr.mxu0 %v47
    %1385 = vmatpush1.msra.mxu0 %v46
    %1386 = vmatprep.subr.mxu0 %v50
    %1387 = vmatpush1.msra.mxu0 %v49
    %1388 = vmatprep.subr.mxu0 %v53
    %1389 = vmatpush1.msra.mxu0 %v52
    %1390 = vmatprep.subr.mxu0 0.0
    %1391 = vmatpush1.msra.mxu0 0.0
    %1392 = vmatprep.subr.mxu0 0.0
    %1393 = vmatpush1.msra.mxu0 0.0
    %1394 = vmatprep.subr.mxu0 0.0
    %1395 = vmatpush1.msra.mxu0 0.0
    %1396 = vmatprep.subr.mxu0 0.0
    %1397 = vmatpush1.msra.mxu0 0.0
    %1398 = vmatprep.subr.mxu0 0.0
    %1399 = vmatpush1.msra.mxu0 0.0
    %1400 = vmatprep.subr.mxu0 0.0
    %1401 = vmatpush1.msra.mxu0 0.0
    %1402 = vmatprep.subr.mxu0 0.0
    %1403 = vmatpush1.msra.mxu0 0.0
    %1404 = vmatprep.subr.mxu0 0.0
    %1405 = vmatpush1.msra.mxu0 0.0
    %1406 = vmatprep.subr.mxu0 0.0
    %1407 = vmatpush1.msra.mxu0 0.0
    %1408 = vmatprep.subr.mxu0 0.0
    %1409 = vmatpush1.msra.mxu0 0.0
    %1410 = vmatprep.subr.mxu0 0.0
    %1411 = vmatpush1.msra.mxu0 0.0
    %1412 = vmatprep.subr.mxu0 0.0
    %1413 = vmatpush1.msra.mxu0 0.0
    %1414 = vmatprep.subr.mxu0 0.0
    %1415 = vmatpush1.msra.mxu0 0.0
    %1416 = vmatprep.subr.mxu0 0.0
    %1417 = vmatpush1.msra.mxu0 0.0
    %1418 = vmatprep.subr.mxu0 0.0
    %1419 = vmatpush1.msra.mxu0 0.0
    %1420 = vmatprep.subr.mxu0 0.0
    %1421 = vmatpush1.msra.mxu0 0.0
    %1422 = vmatprep.subr.mxu0 0.0
    %1423 = vmatpush1.msra.mxu0 0.0
    %1424 = vmatprep.subr.mxu0 0.0
    %1425 = vmatpush1.msra.mxu0 0.0
    %1426 = vmatprep.subr.mxu0 0.0
    %1427 = vmatpush1.msra.mxu0 0.0
    %1428 = vmatprep.subr.mxu0 0.0
    %1429 = vmatpush1.msra.mxu0 0.0
    %1430 = vmatprep.subr.mxu0 0.0
    %1431 = vmatpush1.msra.mxu0 0.0
    %1432 = vmatprep.subr.mxu0 0.0
    %1433 = vmatpush1.msra.mxu0 0.0
    %1434 = vmatprep.subr.mxu0 0.0
    %1435 = vmatpush1.msra.mxu0 0.0
    %1436 = vmatprep.subr.mxu0 0.0
    %1437 = vmatpush1.msra.mxu0 0.0
    %1438 = vmatprep.subr.mxu0 0.0
    %1439 = vmatpush1.msra.mxu0 0.0
    %1440 = vmatprep.subr.mxu0 0.0
    %1441 = vmatpush1.msra.mxu0 0.0
    %1442 = vmatprep.subr.mxu0 0.0
    %1443 = vmatpush1.msra.mxu0 0.0
    %1444 = vmatprep.subr.mxu0 0.0
    %1445 = vmatpush1.msra.mxu0 0.0
    %1446 = vmatprep.mubr.f32.mxu0 0.0
    %1447 = vmatmul.mubr.f32.gmra.mrb[0].mxu0 %v1380
    %v1448 = vpop.f32.mrb[0].mxu0
    %v1449 = vadd.f32 %v108, %v1448
    %v1450 = vpop.f32.mrb[0].mxu0
    %v1451 = vadd.f32 %v112, %v1450
    %1452 = vdwg.mxu0
    %1453 = vmatprep.subr.mxu0 0.0
    %1454 = vmatpush1.msra.mxu0 %v45
    %1455 = vmatprep.subr.mxu0 0.0
    %1456 = vmatpush1.msra.mxu0 %v48
    %1457 = vmatprep.subr.mxu0 0.0
    %1458 = vmatpush1.msra.mxu0 %v51
    %1459 = vmatprep.subr.mxu0 0.0
    %1460 = vmatpush1.msra.mxu0 %v54
    %1461 = vmatprep.subr.mxu0 0.0
    %1462 = vmatpush1.msra.mxu0 0.0
    %1463 = vmatprep.subr.mxu0 0.0
    %1464 = vmatpush1.msra.mxu0 0.0
    %1465 = vmatprep.subr.mxu0 0.0
    %1466 = vmatpush1.msra.mxu0 0.0
    %1467 = vmatprep.subr.mxu0 0.0
    %1468 = vmatpush1.msra.mxu0 0.0
    %1469 = vmatprep.subr.mxu0 0.0
    %1470 = vmatpush1.msra.mxu0 0.0
    %1471 = vmatprep.subr.mxu0 0.0
    %1472 = vmatpush1.msra.mxu0 0.0
    %1473 = vmatprep.subr.mxu0 0.0
    %1474 = vmatpush1.msra.mxu0 0.0
    %1475 = vmatprep.subr.mxu0 0.0
    %1476 = vmatpush1.msra.mxu0 0.0
    %1477 = vmatprep.subr.mxu0 0.0
    %1478 = vmatpush1.msra.mxu0 0.0
    %1479 = vmatprep.subr.mxu0 0.0
    %1480 = vmatpush1.msra.mxu0 0.0
    %1481 = vmatprep.subr.mxu0 0.0
    %1482 = vmatpush1.msra.mxu0 0.0
    %1483 = vmatprep.subr.mxu0 0.0
    %1484 = vmatpush1.msra.mxu0 0.0
    %1485 = vmatprep.subr.mxu0 0.0
    %1486 = vmatpush1.msra.mxu0 0.0
    %1487 = vmatprep.subr.mxu0 0.0
    %1488 = vmatpush1.msra.mxu0 0.0
    %1489 = vmatprep.subr.mxu0 0.0
    %1490 = vmatpush1.msra.mxu0 0.0
    %1491 = vmatprep.subr.mxu0 0.0
    %1492 = vmatpush1.msra.mxu0 0.0
    %1493 = vmatprep.subr.mxu0 0.0
    %1494 = vmatpush1.msra.mxu0 0.0
    %1495 = vmatprep.subr.mxu0 0.0
    %1496 = vmatpush1.msra.mxu0 0.0
    %1497 = vmatprep.subr.mxu0 0.0
    %1498 = vmatpush1.msra.mxu0 0.0
    %1499 = vmatprep.subr.mxu0 0.0
    %1500 = vmatpush1.msra.mxu0 0.0
    %1501 = vmatprep.subr.mxu0 0.0
    %1502 = vmatpush1.msra.mxu0 0.0
    %1503 = vmatprep.subr.mxu0 0.0
    %1504 = vmatpush1.msra.mxu0 0.0
    %1505 = vmatprep.subr.mxu0 0.0
    %1506 = vmatpush1.msra.mxu0 0.0
    %1507 = vmatprep.subr.mxu0 0.0
    %1508 = vmatpush1.msra.mxu0 0.0
    %1509 = vmatprep.subr.mxu0 0.0
    %1510 = vmatpush1.msra.mxu0 0.0
    %1511 = vmatprep.subr.mxu0 0.0
    %1512 = vmatpush1.msra.mxu0 0.0
    %1513 = vmatprep.subr.mxu0 0.0
    %1514 = vmatpush1.msra.mxu0 0.0
    %1515 = vmatprep.subr.mxu0 0.0
    %1516 = vmatpush1.msra.mxu0 0.0
    %1517 = vmatprep.mubr.f32.mxu0 0.0
    %1518 = vmatmul.mubr.f32.gmra.mrb[0].mxu0 %v1380
    %v1519 = vpop.f32.mrb[0].mxu0
    %v1520 = vadd.f32 %v116, %v1519
    %v1521 = vpop.f32.mrb[0].mxu0
    %1522 = vdwg.mxu0
    %1523 = vmatprep.subr.mxu0 %v56
    %1524 = vmatpush1.msra.mxu0 %v55
    %1525 = vmatprep.subr.mxu0 %v59
    %1526 = vmatpush1.msra.mxu0 %v58
    %1527 = vmatprep.subr.mxu0 %v62
    %1528 = vmatpush1.msra.mxu0 %v61
    %1529 = vmatprep.subr.mxu0 %v65
    %1530 = vmatpush1.msra.mxu0 %v64
    %1531 = vmatprep.subr.mxu0 %v68
    %1532 = vmatpush1.msra.mxu0 %v67
    %1533 = vmatprep.subr.mxu0 %v71
    %1534 = vmatpush1.msra.mxu0 %v70
    %1535 = vmatprep.subr.mxu0 %v74
    %1536 = vmatpush1.msra.mxu0 %v73
    %1537 = vmatprep.subr.mxu0 %v77
    %1538 = vmatpush1.msra.mxu0 %v76
    %1539 = vmatprep.subr.mxu0 %v80
    %1540 = vmatpush1.msra.mxu0 %v79
    %1541 = vmatprep.subr.mxu0 %v83
    %1542 = vmatpush1.msra.mxu0 %v82
    %1543 = vmatprep.subr.mxu0 %v86
    %1544 = vmatpush1.msra.mxu0 %v85
    %1545 = vmatprep.subr.mxu0 %v89
    %1546 = vmatpush1.msra.mxu0 %v88
    %1547 = vmatprep.subr.mxu0 %v92
    %1548 = vmatpush1.msra.mxu0 %v91
    %1549 = vmatprep.subr.mxu0 %v95
    %1550 = vmatpush1.msra.mxu0 %v94
    %1551 = vmatprep.subr.mxu0 %v98
    %1552 = vmatpush1.msra.mxu0 %v97
    %1553 = vmatprep.subr.mxu0 %v101
    %1554 = vmatpush1.msra.mxu0 %v100
    %1555 = vmatprep.subr.mxu0 0.0
    %1556 = vmatpush1.msra.mxu0 0.0
    %1557 = vmatprep.subr.mxu0 0.0
    %1558 = vmatpush1.msra.mxu0 0.0
    %1559 = vmatprep.subr.mxu0 0.0
    %1560 = vmatpush1.msra.mxu0 0.0
    %1561 = vmatprep.subr.mxu0 0.0
    %1562 = vmatpush1.msra.mxu0 0.0
    %1563 = vmatprep.subr.mxu0 0.0
    %1564 = vmatpush1.msra.mxu0 0.0
    %1565 = vmatprep.subr.mxu0 0.0
    %1566 = vmatpush1.msra.mxu0 0.0
    %1567 = vmatprep.subr.mxu0 0.0
    %1568 = vmatpush1.msra.mxu0 0.0
    %1569 = vmatprep.subr.mxu0 0.0
    %1570 = vmatpush1.msra.mxu0 0.0
    %1571 = vmatprep.subr.mxu0 0.0
    %1572 = vmatpush1.msra.mxu0 0.0
    %1573 = vmatprep.subr.mxu0 0.0
    %1574 = vmatpush1.msra.mxu0 0.0
    %1575 = vmatprep.subr.mxu0 0.0
    %1576 = vmatpush1.msra.mxu0 0.0
    %1577 = vmatprep.subr.mxu0 0.0
    %1578 = vmatpush1.msra.mxu0 0.0
    %1579 = vmatprep.subr.mxu0 0.0
    %1580 = vmatpush1.msra.mxu0 0.0
    %1581 = vmatprep.subr.mxu0 0.0
    %1582 = vmatpush1.msra.mxu0 0.0
    %1583 = vmatprep.subr.mxu0 0.0
    %1584 = vmatpush1.msra.mxu0 0.0
    %1585 = vmatprep.subr.mxu0 0.0
    %1586 = vmatpush1.msra.mxu0 0.0
    %1587 = vmatprep.mubr.f32.mxu0 0.0
    %1588 = vmatmul.mubr.f32.gmra.mrb[0].mxu0 %v1374
    %v1589 = vpop.f32.mrb[0].mxu0
    %v1590 = vadd.f32 %v125, %v1589
    %v1591 = vpop.f32.mrb[0].mxu0
    %v1592 = vadd.f32 %v129, %v1591
    %1593 = vdwg.mxu0
    %1594 = vmatprep.subr.mxu0 0.0
    %1595 = vmatpush1.msra.mxu0 %v57
    %1596 = vmatprep.subr.mxu0 0.0
    %1597 = vmatpush1.msra.mxu0 %v60
    %1598 = vmatprep.subr.mxu0 0.0
    %1599 = vmatpush1.msra.mxu0 %v63
    %1600 = vmatprep.subr.mxu0 0.0
    %1601 = vmatpush1.msra.mxu0 %v66
    %1602 = vmatprep.subr.mxu0 0.0
    %1603 = vmatpush1.msra.mxu0 %v69
    %1604 = vmatprep.subr.mxu0 0.0
    %1605 = vmatpush1.msra.mxu0 %v72
    %1606 = vmatprep.subr.mxu0 0.0
    %1607 = vmatpush1.msra.mxu0 %v75
    %1608 = vmatprep.subr.mxu0 0.0
    %1609 = vmatpush1.msra.mxu0 %v78
    %1610 = vmatprep.subr.mxu0 0.0
    %1611 = vmatpush1.msra.mxu0 %v81
    %1612 = vmatprep.subr.mxu0 0.0
    %1613 = vmatpush1.msra.mxu0 %v84
    %1614 = vmatprep.subr.mxu0 0.0
    %1615 = vmatpush1.msra.mxu0 %v87
    %1616 = vmatprep.subr.mxu0 0.0
    %1617 = vmatpush1.msra.mxu0 %v90
    %1618 = vmatprep.subr.mxu0 0.0
    %1619 = vmatpush1.msra.mxu0 %v93
    %1620 = vmatprep.subr.mxu0 0.0
    %1621 = vmatpush1.msra.mxu0 %v96
    %1622 = vmatprep.subr.mxu0 0.0
    %1623 = vmatpush1.msra.mxu0 %v99
    %1624 = vmatprep.subr.mxu0 0.0
    %1625 = vmatpush1.msra.mxu0 %v102
    %1626 = vmatprep.subr.mxu0 0.0
    %1627 = vmatpush1.msra.mxu0 0.0
    %1628 = vmatprep.subr.mxu0 0.0
    %1629 = vmatpush1.msra.mxu0 0.0
    %1630 = vmatprep.subr.mxu0 0.0
    %1631 = vmatpush1.msra.mxu0 0.0
    %1632 = vmatprep.subr.mxu0 0.0
    %1633 = vmatpush1.msra.mxu0 0.0
    %1634 = vmatprep.subr.mxu0 0.0
    %1635 = vmatpush1.msra.mxu0 0.0
    %1636 = vmatprep.subr.mxu0 0.0
    %1637 = vmatpush1.msra.mxu0 0.0
    %1638 = vmatprep.subr.mxu0 0.0
    %1639 = vmatpush1.msra.mxu0 0.0
    %1640 = vmatprep.subr.mxu0 0.0
    %1641 = vmatpush1.msra.mxu0 0.0
    %1642 = vmatprep.subr.mxu0 0.0
    %1643 = vmatpush1.msra.mxu0 0.0
    %1644 = vmatprep.subr.mxu0 0.0
    %1645 = vmatpush1.msra.mxu0 0.0
    %1646 = vmatprep.subr.mxu0 0.0
    %1647 = vmatpush1.msra.mxu0 0.0
    %1648 = vmatprep.subr.mxu0 0.0
    %1649 = vmatpush1.msra.mxu0 0.0
    %1650 = vmatprep.subr.mxu0 0.0
    %1651 = vmatpush1.msra.mxu0 0.0
    %1652 = vmatprep.subr.mxu0 0.0
    %1653 = vmatpush1.msra.mxu0 0.0
    %1654 = vmatprep.subr.mxu0 0.0
    %1655 = vmatpush1.msra.mxu0 0.0
    %1656 = vmatprep.subr.mxu0 0.0
    %1657 = vmatpush1.msra.mxu0 0.0
    %1658 = vmatprep.mubr.f32.mxu0 0.0
    %1659 = vmatmul.mubr.f32.gmra.mrb[0].mxu0 %v1374
    %v1660 = vpop.f32.mrb[0].mxu0
    %v1661 = vadd.f32 %v133, %v1660
    %v1662 = vpop.f32.mrb[0].mxu0
    %1663 = vdwg.mxu0
    %v1664 = vadd.f32 %v1449, %v1590
    %v1665 = vxor.u32 %v1664, 2147483648
    %v1666 = vmul.f32 %v1665, 1.442695
    %v1667 = vpow.pop %v1666
    %v1668 = vadd.f32 %v1667, 1.0
    %v1669 = vrcp.pop %v1668
    %v1670 = vmul.f32 1.0, %v1669
    %v1671 = vadd.f32 %v1451, %v1592
    %v1672 = vxor.u32 %v1671, 2147483648
    %v1673 = vmul.f32 %v1672, 1.442695
    %v1674 = vpow.pop %v1673
    %v1675 = vadd.f32 %v1674, 1.0
    %v1676 = vrcp.pop %v1675
    %v1677 = vmul.f32 1.0, %v1676
    %v1678 = vmul.f32 %v1670, %v1661
    %v1679 = vadd.f32 %v1520, %v1678
    %v1680 = vtanh.pop %v1679
    %v1681 = vsub.f32 1.0, %v1677
    %v1682 = vmul.f32 %v1681, %v1680
    %v1683 = vmul.f32 %v1677, %v1374
    %v1684 = vadd.f32 %v1682, %v1683
    %s1685 = scalar_lea.vmem %s6, 32
    %1686 = vst [vmem:[%s1685] sm:$0xff] %v1684
    %s1687 = scalar_lea.vmem %s0, 40
    %v1688 = vld [vmem:[%s1687] sm:$0xff]
    %v1690 = vsel %vm139, %v1688, 0
    %1692 = vmatprep.subr.mxu0 %v44
    %1693 = vmatpush1.msra.mxu0 %v43
    %1694 = vmatprep.subr.mxu0 %v47
    %1695 = vmatpush1.msra.mxu0 %v46
    %1696 = vmatprep.subr.mxu0 %v50
    %1697 = vmatpush1.msra.mxu0 %v49
    %1698 = vmatprep.subr.mxu0 %v53
    %1699 = vmatpush1.msra.mxu0 %v52
    %1700 = vmatprep.subr.mxu0 0.0
    %1701 = vmatpush1.msra.mxu0 0.0
    %1702 = vmatprep.subr.mxu0 0.0
    %1703 = vmatpush1.msra.mxu0 0.0
    %1704 = vmatprep.subr.mxu0 0.0
    %1705 = vmatpush1.msra.mxu0 0.0
    %1706 = vmatprep.subr.mxu0 0.0
    %1707 = vmatpush1.msra.mxu0 0.0
    %1708 = vmatprep.subr.mxu0 0.0
    %1709 = vmatpush1.msra.mxu0 0.0
    %1710 = vmatprep.subr.mxu0 0.0
    %1711 = vmatpush1.msra.mxu0 0.0
    %1712 = vmatprep.subr.mxu0 0.0
    %1713 = vmatpush1.msra.mxu0 0.0
    %1714 = vmatprep.subr.mxu0 0.0
    %1715 = vmatpush1.msra.mxu0 0.0
    %1716 = vmatprep.subr.mxu0 0.0
    %1717 = vmatpush1.msra.mxu0 0.0
    %1718 = vmatprep.subr.mxu0 0.0
    %1719 = vmatpush1.msra.mxu0 0.0
    %1720 = vmatprep.subr.mxu0 0.0
    %1721 = vmatpush1.msra.mxu0 0.0
    %1722 = vmatprep.subr.mxu0 0.0
    %1723 = vmatpush1.msra.mxu0 0.0
    %1724 = vmatprep.subr.mxu0 0.0
    %1725 = vmatpush1.msra.mxu0 0.0
    %1726 = vmatprep.subr.mxu0 0.0
    %1727 = vmatpush1.msra.mxu0 0.0
    %1728 = vmatprep.subr.mxu0 0.0
    %1729 = vmatpush1.msra.mxu0 0.0
    %1730 = vmatprep.subr.mxu0 0.0
    %1731 = vmatpush1.msra.mxu0 0.0
    %1732 = vmatprep.subr.mxu0 0.0
    %1733 = vmatpush1.msra.mxu0 0.0
    %1734 = vmatprep.subr.mxu0 0.0
    %1735 = vmatpush1.msra.mxu0 0.0
    %1736 = vmatprep.subr.mxu0 0.0
    %1737 = vmatpush1.msra.mxu0 0.0
    %1738 = vmatprep.subr.mxu0 0.0
    %1739 = vmatpush1.msra.mxu0 0.0
    %1740 = vmatprep.subr.mxu0 0.0
    %1741 = vmatpush1.msra.mxu0 0.0
    %1742 = vmatprep.subr.mxu0 0.0
    %1743 = vmatpush1.msra.mxu0 0.0
    %1744 = vmatprep.subr.mxu0 0.0
    %1745 = vmatpush1.msra.mxu0 0.0
    %1746 = vmatprep.subr.mxu0 0.0
    %1747 = vmatpush1.msra.mxu0 0.0
    %1748 = vmatprep.subr.mxu0 0.0
    %1749 = vmatpush1.msra.mxu0 0.0
    %1750 = vmatprep.subr.mxu0 0.0
    %1751 = vmatpush1.msra.mxu0 0.0
    %1752 = vmatprep.subr.mxu0 0.0
    %1753 = vmatpush1.msra.mxu0 0.0
    %1754 = vmatprep.subr.mxu0 0.0
    %1755 = vmatpush1.msra.mxu0 0.0
    %1756 = vmatprep.mubr.f32.mxu0 0.0
    %1757 = vmatmul.mubr.f32.gmra.mrb[0].mxu0 %v1690
    %v1758 = vpop.f32.mrb[0].mxu0
    %v1759 = vadd.f32 %v108, %v1758
    %v1760 = vpop.f32.mrb[0].mxu0
    %v1761 = vadd.f32 %v112, %v1760
    %1762 = vdwg.mxu0
    %1763 = vmatprep.subr.mxu0 0.0
    %1764 = vmatpush1.msra.mxu0 %v45
    %1765 = vmatprep.subr.mxu0 0.0
    %1766 = vmatpush1.msra.mxu0 %v48
    %1767 = vmatprep.subr.mxu0 0.0
    %1768 = vmatpush1.msra.mxu0 %v51
    %1769 = vmatprep.subr.mxu0 0.0
    %1770 = vmatpush1.msra.mxu0 %v54
    %1771 = vmatprep.subr.mxu0 0.0
    %1772 = vmatpush1.msra.mxu0 0.0
    %1773 = vmatprep.subr.mxu0 0.0
    %1774 = vmatpush1.msra.mxu0 0.0
    %1775 = vmatprep.subr.mxu0 0.0
    %1776 = vmatpush1.msra.mxu0 0.0
    %1777 = vmatprep.subr.mxu0 0.0
    %1778 = vmatpush1.msra.mxu0 0.0
    %1779 = vmatprep.subr.mxu0 0.0
    %1780 = vmatpush1.msra.mxu0 0.0
    %1781 = vmatprep.subr.mxu0 0.0
    %1782 = vmatpush1.msra.mxu0 0.0
    %1783 = vmatprep.subr.mxu0 0.0
    %1784 = vmatpush1.msra.mxu0 0.0
    %1785 = vmatprep.subr.mxu0 0.0
    %1786 = vmatpush1.msra.mxu0 0.0
    %1787 = vmatprep.subr.mxu0 0.0
    %1788 = vmatpush1.msra.mxu0 0.0
    %1789 = vmatprep.subr.mxu0 0.0
    %1790 = vmatpush1.msra.mxu0 0.0
    %1791 = vmatprep.subr.mxu0 0.0
    %1792 = vmatpush1.msra.mxu0 0.0
    %1793 = vmatprep.subr.mxu0 0.0
    %1794 = vmatpush1.msra.mxu0 0.0
    %1795 = vmatprep.subr.mxu0 0.0
    %1796 = vmatpush1.msra.mxu0 0.0
    %1797 = vmatprep.subr.mxu0 0.0
    %1798 = vmatpush1.msra.mxu0 0.0
    %1799 = vmatprep.subr.mxu0 0.0
    %1800 = vmatpush1.msra.mxu0 0.0
    %1801 = vmatprep.subr.mxu0 0.0
    %1802 = vmatpush1.msra.mxu0 0.0
    %1803 = vmatprep.subr.mxu0 0.0
    %1804 = vmatpush1.msra.mxu0 0.0
    %1805 = vmatprep.subr.mxu0 0.0
    %1806 = vmatpush1.msra.mxu0 0.0
    %1807 = vmatprep.subr.mxu0 0.0
    %1808 = vmatpush1.msra.mxu0 0.0
    %1809 = vmatprep.subr.mxu0 0.0
    %1810 = vmatpush1.msra.mxu0 0.0
    %1811 = vmatprep.subr.mxu0 0.0
    %1812 = vmatpush1.msra.mxu0 0.0
    %1813 = vmatprep.subr.mxu0 0.0
    %1814 = vmatpush1.msra.mxu0 0.0
    %1815 = vmatprep.subr.mxu0 0.0
    %1816 = vmatpush1.msra.mxu0 0.0
    %1817 = vmatprep.subr.mxu0 0.0
    %1818 = vmatpush1.msra.mxu0 0.0
    %1819 = vmatprep.subr.mxu0 0.0
    %1820 = vmatpush1.msra.mxu0 0.0
    %1821 = vmatprep.subr.mxu0 0.0
    %1822 = vmatpush1.msra.mxu0 0.0
    %1823 = vmatprep.subr.mxu0 0.0
    %1824 = vmatpush1.msra.mxu0 0.0
    %1825 = vmatprep.subr.mxu0 0.0
    %1826 = vmatpush1.msra.mxu0 0.0
    %1827 = vmatprep.mubr.f32.mxu0 0.0
    %1828 = vmatmul.mubr.f32.gmra.mrb[0].mxu0 %v1690
    %v1829 = vpop.f32.mrb[0].mxu0
    %v1830 = vadd.f32 %v116, %v1829
    %v1831 = vpop.f32.mrb[0].mxu0
    %1832 = vdwg.mxu0
    %1833 = vmatprep.subr.mxu0 %v56
    %1834 = vmatpush1.msra.mxu0 %v55
    %1835 = vmatprep.subr.mxu0 %v59
    %1836 = vmatpush1.msra.mxu0 %v58
    %1837 = vmatprep.subr.mxu0 %v62
    %1838 = vmatpush1.msra.mxu0 %v61
    %1839 = vmatprep.subr.mxu0 %v65
    %1840 = vmatpush1.msra.mxu0 %v64
    %1841 = vmatprep.subr.mxu0 %v68
    %1842 = vmatpush1.msra.mxu0 %v67
    %1843 = vmatprep.subr.mxu0 %v71
    %1844 = vmatpush1.msra.mxu0 %v70
    %1845 = vmatprep.subr.mxu0 %v74
    %1846 = vmatpush1.msra.mxu0 %v73
    %1847 = vmatprep.subr.mxu0 %v77
    %1848 = vmatpush1.msra.mxu0 %v76
    %1849 = vmatprep.subr.mxu0 %v80
    %1850 = vmatpush1.msra.mxu0 %v79
    %1851 = vmatprep.subr.mxu0 %v83
    %1852 = vmatpush1.msra.mxu0 %v82
    %1853 = vmatprep.subr.mxu0 %v86
    %1854 = vmatpush1.msra.mxu0 %v85
    %1855 = vmatprep.subr.mxu0 %v89
    %1856 = vmatpush1.msra.mxu0 %v88
    %1857 = vmatprep.subr.mxu0 %v92
    %1858 = vmatpush1.msra.mxu0 %v91
    %1859 = vmatprep.subr.mxu0 %v95
    %1860 = vmatpush1.msra.mxu0 %v94
    %1861 = vmatprep.subr.mxu0 %v98
    %1862 = vmatpush1.msra.mxu0 %v97
    %1863 = vmatprep.subr.mxu0 %v101
    %1864 = vmatpush1.msra.mxu0 %v100
    %1865 = vmatprep.subr.mxu0 0.0
    %1866 = vmatpush1.msra.mxu0 0.0
    %1867 = vmatprep.subr.mxu0 0.0
    %1868 = vmatpush1.msra.mxu0 0.0
    %1869 = vmatprep.subr.mxu0 0.0
    %1870 = vmatpush1.msra.mxu0 0.0
    %1871 = vmatprep.subr.mxu0 0.0
    %1872 = vmatpush1.msra.mxu0 0.0
    %1873 = vmatprep.subr.mxu0 0.0
    %1874 = vmatpush1.msra.mxu0 0.0
    %1875 = vmatprep.subr.mxu0 0.0
    %1876 = vmatpush1.msra.mxu0 0.0
    %1877 = vmatprep.subr.mxu0 0.0
    %1878 = vmatpush1.msra.mxu0 0.0
    %1879 = vmatprep.subr.mxu0 0.0
    %1880 = vmatpush1.msra.mxu0 0.0
    %1881 = vmatprep.subr.mxu0 0.0
    %1882 = vmatpush1.msra.mxu0 0.0
    %1883 = vmatprep.subr.mxu0 0.0
    %1884 = vmatpush1.msra.mxu0 0.0
    %1885 = vmatprep.subr.mxu0 0.0
    %1886 = vmatpush1.msra.mxu0 0.0
    %1887 = vmatprep.subr.mxu0 0.0
    %1888 = vmatpush1.msra.mxu0 0.0
    %1889 = vmatprep.subr.mxu0 0.0
    %1890 = vmatpush1.msra.mxu0 0.0
    %1891 = vmatprep.subr.mxu0 0.0
    %1892 = vmatpush1.msra.mxu0 0.0
    %1893 = vmatprep.subr.mxu0 0.0
    %1894 = vmatpush1.msra.mxu0 0.0
    %1895 = vmatprep.subr.mxu0 0.0
    %1896 = vmatpush1.msra.mxu0 0.0
    %1897 = vmatprep.mubr.f32.mxu0 0.0
    %1898 = vmatmul.mubr.f32.gmra.mrb[0].mxu0 %v1684
    %v1899 = vpop.f32.mrb[0].mxu0
    %v1900 = vadd.f32 %v125, %v1899
    %v1901 = vpop.f32.mrb[0].mxu0
    %v1902 = vadd.f32 %v129, %v1901
    %1903 = vdwg.mxu0
    %1904 = vmatprep.subr.mxu0 0.0
    %1905 = vmatpush1.msra.mxu0 %v57
    %1906 = vmatprep.subr.mxu0 0.0
    %1907 = vmatpush1.msra.mxu0 %v60
    %1908 = vmatprep.subr.mxu0 0.0
    %1909 = vmatpush1.msra.mxu0 %v63
    %1910 = vmatprep.subr.mxu0 0.0
    %1911 = vmatpush1.msra.mxu0 %v66
    %1912 = vmatprep.subr.mxu0 0.0
    %1913 = vmatpush1.msra.mxu0 %v69
    %1914 = vmatprep.subr.mxu0 0.0
    %1915 = vmatpush1.msra.mxu0 %v72
    %1916 = vmatprep.subr.mxu0 0.0
    %1917 = vmatpush1.msra.mxu0 %v75
    %1918 = vmatprep.subr.mxu0 0.0
    %1919 = vmatpush1.msra.mxu0 %v78
    %1920 = vmatprep.subr.mxu0 0.0
    %1921 = vmatpush1.msra.mxu0 %v81
    %1922 = vmatprep.subr.mxu0 0.0
    %1923 = vmatpush1.msra.mxu0 %v84
    %1924 = vmatprep.subr.mxu0 0.0
    %1925 = vmatpush1.msra.mxu0 %v87
    %1926 = vmatprep.subr.mxu0 0.0
    %1927 = vmatpush1.msra.mxu0 %v90
    %1928 = vmatprep.subr.mxu0 0.0
    %1929 = vmatpush1.msra.mxu0 %v93
    %1930 = vmatprep.subr.mxu0 0.0
    %1931 = vmatpush1.msra.mxu0 %v96
    %1932 = vmatprep.subr.mxu0 0.0
    %1933 = vmatpush1.msra.mxu0 %v99
    %1934 = vmatprep.subr.mxu0 0.0
    %1935 = vmatpush1.msra.mxu0 %v102
    %1936 = vmatprep.subr.mxu0 0.0
    %1937 = vmatpush1.msra.mxu0 0.0
    %1938 = vmatprep.subr.mxu0 0.0
    %1939 = vmatpush1.msra.mxu0 0.0
    %1940 = vmatprep.subr.mxu0 0.0
    %1941 = vmatpush1.msra.mxu0 0.0
    %1942 = vmatprep.subr.mxu0 0.0
    %1943 = vmatpush1.msra.mxu0 0.0
    %1944 = vmatprep.subr.mxu0 0.0
    %1945 = vmatpush1.msra.mxu0 0.0
    %1946 = vmatprep.subr.mxu0 0.0
    %1947 = vmatpush1.msra.mxu0 0.0
    %1948 = vmatprep.subr.mxu0 0.0
    %1949 = vmatpush1.msra.mxu0 0.0
    %1950 = vmatprep.subr.mxu0 0.0
    %1951 = vmatpush1.msra.mxu0 0.0
    %1952 = vmatprep.subr.mxu0 0.0
    %1953 = vmatpush1.msra.mxu0 0.0
    %1954 = vmatprep.subr.mxu0 0.0
    %1955 = vmatpush1.msra.mxu0 0.0
    %1956 = vmatprep.subr.mxu0 0.0
    %1957 = vmatpush1.msra.mxu0 0.0
    %1958 = vmatprep.subr.mxu0 0.0
    %1959 = vmatpush1.msra.mxu0 0.0
    %1960 = vmatprep.subr.mxu0 0.0
    %1961 = vmatpush1.msra.mxu0 0.0
    %1962 = vmatprep.subr.mxu0 0.0
    %1963 = vmatpush1.msra.mxu0 0.0
    %1964 = vmatprep.subr.mxu0 0.0
    %1965 = vmatpush1.msra.mxu0 0.0
    %1966 = vmatprep.subr.mxu0 0.0
    %1967 = vmatpush1.msra.mxu0 0.0
    %1968 = vmatprep.mubr.f32.mxu0 0.0
    %1969 = vmatmul.mubr.f32.gmra.mrb[0].mxu0 %v1684
    %v1970 = vpop.f32.mrb[0].mxu0
    %v1971 = vadd.f32 %v133, %v1970
    %v1972 = vpop.f32.mrb[0].mxu0
    %1973 = vdwg.mxu0
    %v1974 = vadd.f32 %v1759, %v1900
    %v1975 = vxor.u32 %v1974, 2147483648
    %v1976 = vmul.f32 %v1975, 1.442695
    %v1977 = vpow.pop %v1976
    %v1978 = vadd.f32 %v1977, 1.0
    %v1979 = vrcp.pop %v1978
    %v1980 = vmul.f32 1.0, %v1979
    %v1981 = vadd.f32 %v1761, %v1902
    %v1982 = vxor.u32 %v1981, 2147483648
    %v1983 = vmul.f32 %v1982, 1.442695
    %v1984 = vpow.pop %v1983
    %v1985 = vadd.f32 %v1984, 1.0
    %v1986 = vrcp.pop %v1985
    %v1987 = vmul.f32 1.0, %v1986
    %v1988 = vmul.f32 %v1980, %v1971
    %v1989 = vadd.f32 %v1830, %v1988
    %v1990 = vtanh.pop %v1989
    %v1991 = vsub.f32 1.0, %v1987
    %v1992 = vmul.f32 %v1991, %v1990
    %v1993 = vmul.f32 %v1987, %v1684
    %v1994 = vadd.f32 %v1992, %v1993
    %s1995 = scalar_lea.vmem %s6, 40
    %1996 = vst [vmem:[%s1995] sm:$0xff] %v1994
    %s1997 = scalar_lea.vmem %s0, 48
    %v1998 = vld [vmem:[%s1997] sm:$0xff]
    %v2000 = vsel %vm139, %v1998, 0
    %2002 = vmatprep.subr.mxu0 %v44
    %2003 = vmatpush1.msra.mxu0 %v43
    %2004 = vmatprep.subr.mxu0 %v47
    %2005 = vmatpush1.msra.mxu0 %v46
    %2006 = vmatprep.subr.mxu0 %v50
    %2007 = vmatpush1.msra.mxu0 %v49
    %2008 = vmatprep.subr.mxu0 %v53
    %2009 = vmatpush1.msra.mxu0 %v52
    %2010 = vmatprep.subr.mxu0 0.0
    %2011 = vmatpush1.msra.mxu0 0.0
    %2012 = vmatprep.subr.mxu0 0.0
    %2013 = vmatpush1.msra.mxu0 0.0
    %2014 = vmatprep.subr.mxu0 0.0
    %2015 = vmatpush1.msra.mxu0 0.0
    %2016 = vmatprep.subr.mxu0 0.0
    %2017 = vmatpush1.msra.mxu0 0.0
    %2018 = vmatprep.subr.mxu0 0.0
    %2019 = vmatpush1.msra.mxu0 0.0
    %2020 = vmatprep.subr.mxu0 0.0
    %2021 = vmatpush1.msra.mxu0 0.0
    %2022 = vmatprep.subr.mxu0 0.0
    %2023 = vmatpush1.msra.mxu0 0.0
    %2024 = vmatprep.subr.mxu0 0.0
    %2025 = vmatpush1.msra.mxu0 0.0
    %2026 = vmatprep.subr.mxu0 0.0
    %2027 = vmatpush1.msra.mxu0 0.0
    %2028 = vmatprep.subr.mxu0 0.0
    %2029 = vmatpush1.msra.mxu0 0.0
    %2030 = vmatprep.subr.mxu0 0.0
    %2031 = vmatpush1.msra.mxu0 0.0
    %2032 = vmatprep.subr.mxu0 0.0
    %2033 = vmatpush1.msra.mxu0 0.0
    %2034 = vmatprep.subr.mxu0 0.0
    %2035 = vmatpush1.msra.mxu0 0.0
    %2036 = vmatprep.subr.mxu0 0.0
    %2037 = vmatpush1.msra.mxu0 0.0
    %2038 = vmatprep.subr.mxu0 0.0
    %2039 = vmatpush1.msra.mxu0 0.0
    %2040 = vmatprep.subr.mxu0 0.0
    %2041 = vmatpush1.msra.mxu0 0.0
    %2042 = vmatprep.subr.mxu0 0.0
    %2043 = vmatpush1.msra.mxu0 0.0
    %2044 = vmatprep.subr.mxu0 0.0
    %2045 = vmatpush1.msra.mxu0 0.0
    %2046 = vmatprep.subr.mxu0 0.0
    %2047 = vmatpush1.msra.mxu0 0.0
    %2048 = vmatprep.subr.mxu0 0.0
    %2049 = vmatpush1.msra.mxu0 0.0
    %2050 = vmatprep.subr.mxu0 0.0
    %2051 = vmatpush1.msra.mxu0 0.0
    %2052 = vmatprep.subr.mxu0 0.0
    %2053 = vmatpush1.msra.mxu0 0.0
    %2054 = vmatprep.subr.mxu0 0.0
    %2055 = vmatpush1.msra.mxu0 0.0
    %2056 = vmatprep.subr.mxu0 0.0
    %2057 = vmatpush1.msra.mxu0 0.0
    %2058 = vmatprep.subr.mxu0 0.0
    %2059 = vmatpush1.msra.mxu0 0.0
    %2060 = vmatprep.subr.mxu0 0.0
    %2061 = vmatpush1.msra.mxu0 0.0
    %2062 = vmatprep.subr.mxu0 0.0
    %2063 = vmatpush1.msra.mxu0 0.0
    %2064 = vmatprep.subr.mxu0 0.0
    %2065 = vmatpush1.msra.mxu0 0.0
    %2066 = vmatprep.mubr.f32.mxu0 0.0
    %2067 = vmatmul.mubr.f32.gmra.mrb[0].mxu0 %v2000
    %v2068 = vpop.f32.mrb[0].mxu0
    %v2069 = vadd.f32 %v108, %v2068
    %v2070 = vpop.f32.mrb[0].mxu0
    %v2071 = vadd.f32 %v112, %v2070
    %2072 = vdwg.mxu0
    %2073 = vmatprep.subr.mxu0 0.0
    %2074 = vmatpush1.msra.mxu0 %v45
    %2075 = vmatprep.subr.mxu0 0.0
    %2076 = vmatpush1.msra.mxu0 %v48
    %2077 = vmatprep.subr.mxu0 0.0
    %2078 = vmatpush1.msra.mxu0 %v51
    %2079 = vmatprep.subr.mxu0 0.0
    %2080 = vmatpush1.msra.mxu0 %v54
    %2081 = vmatprep.subr.mxu0 0.0
    %2082 = vmatpush1.msra.mxu0 0.0
    %2083 = vmatprep.subr.mxu0 0.0
    %2084 = vmatpush1.msra.mxu0 0.0
    %2085 = vmatprep.subr.mxu0 0.0
    %2086 = vmatpush1.msra.mxu0 0.0
    %2087 = vmatprep.subr.mxu0 0.0
    %2088 = vmatpush1.msra.mxu0 0.0
    %2089 = vmatprep.subr.mxu0 0.0
    %2090 = vmatpush1.msra.mxu0 0.0
    %2091 = vmatprep.subr.mxu0 0.0
    %2092 = vmatpush1.msra.mxu0 0.0
    %2093 = vmatprep.subr.mxu0 0.0
    %2094 = vmatpush1.msra.mxu0 0.0
    %2095 = vmatprep.subr.mxu0 0.0
    %2096 = vmatpush1.msra.mxu0 0.0
    %2097 = vmatprep.subr.mxu0 0.0
    %2098 = vmatpush1.msra.mxu0 0.0
    %2099 = vmatprep.subr.mxu0 0.0
    %2100 = vmatpush1.msra.mxu0 0.0
    %2101 = vmatprep.subr.mxu0 0.0
    %2102 = vmatpush1.msra.mxu0 0.0
    %2103 = vmatprep.subr.mxu0 0.0
    %2104 = vmatpush1.msra.mxu0 0.0
    %2105 = vmatprep.subr.mxu0 0.0
    %2106 = vmatpush1.msra.mxu0 0.0
    %2107 = vmatprep.subr.mxu0 0.0
    %2108 = vmatpush1.msra.mxu0 0.0
    %2109 = vmatprep.subr.mxu0 0.0
    %2110 = vmatpush1.msra.mxu0 0.0
    %2111 = vmatprep.subr.mxu0 0.0
    %2112 = vmatpush1.msra.mxu0 0.0
    %2113 = vmatprep.subr.mxu0 0.0
    %2114 = vmatpush1.msra.mxu0 0.0
    %2115 = vmatprep.subr.mxu0 0.0
    %2116 = vmatpush1.msra.mxu0 0.0
    %2117 = vmatprep.subr.mxu0 0.0
    %2118 = vmatpush1.msra.mxu0 0.0
    %2119 = vmatprep.subr.mxu0 0.0
    %2120 = vmatpush1.msra.mxu0 0.0
    %2121 = vmatprep.subr.mxu0 0.0
    %2122 = vmatpush1.msra.mxu0 0.0
    %2123 = vmatprep.subr.mxu0 0.0
    %2124 = vmatpush1.msra.mxu0 0.0
    %2125 = vmatprep.subr.mxu0 0.0
    %2126 = vmatpush1.msra.mxu0 0.0
    %2127 = vmatprep.subr.mxu0 0.0
    %2128 = vmatpush1.msra.mxu0 0.0
    %2129 = vmatprep.subr.mxu0 0.0
    %2130 = vmatpush1.msra.mxu0 0.0
    %2131 = vmatprep.subr.mxu0 0.0
    %2132 = vmatpush1.msra.mxu0 0.0
    %2133 = vmatprep.subr.mxu0 0.0
    %2134 = vmatpush1.msra.mxu0 0.0
    %2135 = vmatprep.subr.mxu0 0.0
    %2136 = vmatpush1.msra.mxu0 0.0
    %2137 = vmatprep.mubr.f32.mxu0 0.0
    %2138 = vmatmul.mubr.f32.gmra.mrb[0].mxu0 %v2000
    %v2139 = vpop.f32.mrb[0].mxu0
    %v2140 = vadd.f32 %v116, %v2139
    %v2141 = vpop.f32.mrb[0].mxu0
    %2142 = vdwg.mxu0
    %2143 = vmatprep.subr.mxu0 %v56
    %2144 = vmatpush1.msra.mxu0 %v55
    %2145 = vmatprep.subr.mxu0 %v59
    %2146 = vmatpush1.msra.mxu0 %v58
    %2147 = vmatprep.subr.mxu0 %v62
    %2148 = vmatpush1.msra.mxu0 %v61
    %2149 = vmatprep.subr.mxu0 %v65
    %2150 = vmatpush1.msra.mxu0 %v64
    %2151 = vmatprep.subr.mxu0 %v68
    %2152 = vmatpush1.msra.mxu0 %v67
    %2153 = vmatprep.subr.mxu0 %v71
    %2154 = vmatpush1.msra.mxu0 %v70
    %2155 = vmatprep.subr.mxu0 %v74
    %2156 = vmatpush1.msra.mxu0 %v73
    %2157 = vmatprep.subr.mxu0 %v77
    %2158 = vmatpush1.msra.mxu0 %v76
    %2159 = vmatprep.subr.mxu0 %v80
    %2160 = vmatpush1.msra.mxu0 %v79
    %2161 = vmatprep.subr.mxu0 %v83
    %2162 = vmatpush1.msra.mxu0 %v82
    %2163 = vmatprep.subr.mxu0 %v86
    %2164 = vmatpush1.msra.mxu0 %v85
    %2165 = vmatprep.subr.mxu0 %v89
    %2166 = vmatpush1.msra.mxu0 %v88
    %2167 = vmatprep.subr.mxu0 %v92
    %2168 = vmatpush1.msra.mxu0 %v91
    %2169 = vmatprep.subr.mxu0 %v95
    %2170 = vmatpush1.msra.mxu0 %v94
    %2171 = vmatprep.subr.mxu0 %v98
    %2172 = vmatpush1.msra.mxu0 %v97
    %2173 = vmatprep.subr.mxu0 %v101
    %2174 = vmatpush1.msra.mxu0 %v100
    %2175 = vmatprep.subr.mxu0 0.0
    %2176 = vmatpush1.msra.mxu0 0.0
    %2177 = vmatprep.subr.mxu0 0.0
    %2178 = vmatpush1.msra.mxu0 0.0
    %2179 = vmatprep.subr.mxu0 0.0
    %2180 = vmatpush1.msra.mxu0 0.0
    %2181 = vmatprep.subr.mxu0 0.0
    %2182 = vmatpush1.msra.mxu0 0.0
    %2183 = vmatprep.subr.mxu0 0.0
    %2184 = vmatpush1.msra.mxu0 0.0
    %2185 = vmatprep.subr.mxu0 0.0
    %2186 = vmatpush1.msra.mxu0 0.0
    %2187 = vmatprep.subr.mxu0 0.0
    %2188 = vmatpush1.msra.mxu0 0.0
    %2189 = vmatprep.subr.mxu0 0.0
    %2190 = vmatpush1.msra.mxu0 0.0
    %2191 = vmatprep.subr.mxu0 0.0
    %2192 = vmatpush1.msra.mxu0 0.0
    %2193 = vmatprep.subr.mxu0 0.0
    %2194 = vmatpush1.msra.mxu0 0.0
    %2195 = vmatprep.subr.mxu0 0.0
    %2196 = vmatpush1.msra.mxu0 0.0
    %2197 = vmatprep.subr.mxu0 0.0
    %2198 = vmatpush1.msra.mxu0 0.0
    %2199 = vmatprep.subr.mxu0 0.0
    %2200 = vmatpush1.msra.mxu0 0.0
    %2201 = vmatprep.subr.mxu0 0.0
    %2202 = vmatpush1.msra.mxu0 0.0
    %2203 = vmatprep.subr.mxu0 0.0
    %2204 = vmatpush1.msra.mxu0 0.0
    %2205 = vmatprep.subr.mxu0 0.0
    %2206 = vmatpush1.msra.mxu0 0.0
    %2207 = vmatprep.mubr.f32.mxu0 0.0
    %2208 = vmatmul.mubr.f32.gmra.mrb[0].mxu0 %v1994
    %v2209 = vpop.f32.mrb[0].mxu0
    %v2210 = vadd.f32 %v125, %v2209
    %v2211 = vpop.f32.mrb[0].mxu0
    %v2212 = vadd.f32 %v129, %v2211
    %2213 = vdwg.mxu0
    %2214 = vmatprep.subr.mxu0 0.0
    %2215 = vmatpush1.msra.mxu0 %v57
    %2216 = vmatprep.subr.mxu0 0.0
    %2217 = vmatpush1.msra.mxu0 %v60
    %2218 = vmatprep.subr.mxu0 0.0
    %2219 = vmatpush1.msra.mxu0 %v63
    %2220 = vmatprep.subr.mxu0 0.0
    %2221 = vmatpush1.msra.mxu0 %v66
    %2222 = vmatprep.subr.mxu0 0.0
    %2223 = vmatpush1.msra.mxu0 %v69
    %2224 = vmatprep.subr.mxu0 0.0
    %2225 = vmatpush1.msra.mxu0 %v72
    %2226 = vmatprep.subr.mxu0 0.0
    %2227 = vmatpush1.msra.mxu0 %v75
    %2228 = vmatprep.subr.mxu0 0.0
    %2229 = vmatpush1.msra.mxu0 %v78
    %2230 = vmatprep.subr.mxu0 0.0
    %2231 = vmatpush1.msra.mxu0 %v81
    %2232 = vmatprep.subr.mxu0 0.0
    %2233 = vmatpush1.msra.mxu0 %v84
    %2234 = vmatprep.subr.mxu0 0.0
    %2235 = vmatpush1.msra.mxu0 %v87
    %2236 = vmatprep.subr.mxu0 0.0
    %2237 = vmatpush1.msra.mxu0 %v90
    %2238 = vmatprep.subr.mxu0 0.0
    %2239 = vmatpush1.msra.mxu0 %v93
    %2240 = vmatprep.subr.mxu0 0.0
    %2241 = vmatpush1.msra.mxu0 %v96
    %2242 = vmatprep.subr.mxu0 0.0
    %2243 = vmatpush1.msra.mxu0 %v99
    %2244 = vmatprep.subr.mxu0 0.0
    %2245 = vmatpush1.msra.mxu0 %v102
    %2246 = vmatprep.subr.mxu0 0.0
    %2247 = vmatpush1.msra.mxu0 0.0
    %2248 = vmatprep.subr.mxu0 0.0
    %2249 = vmatpush1.msra.mxu0 0.0
    %2250 = vmatprep.subr.mxu0 0.0
    %2251 = vmatpush1.msra.mxu0 0.0
    %2252 = vmatprep.subr.mxu0 0.0
    %2253 = vmatpush1.msra.mxu0 0.0
    %2254 = vmatprep.subr.mxu0 0.0
    %2255 = vmatpush1.msra.mxu0 0.0
    %2256 = vmatprep.subr.mxu0 0.0
    %2257 = vmatpush1.msra.mxu0 0.0
    %2258 = vmatprep.subr.mxu0 0.0
    %2259 = vmatpush1.msra.mxu0 0.0
    %2260 = vmatprep.subr.mxu0 0.0
    %2261 = vmatpush1.msra.mxu0 0.0
    %2262 = vmatprep.subr.mxu0 0.0
    %2263 = vmatpush1.msra.mxu0 0.0
    %2264 = vmatprep.subr.mxu0 0.0
    %2265 = vmatpush1.msra.mxu0 0.0
    %2266 = vmatprep.subr.mxu0 0.0
    %2267 = vmatpush1.msra.mxu0 0.0
    %2268 = vmatprep.subr.mxu0 0.0
    %2269 = vmatpush1.msra.mxu0 0.0
    %2270 = vmatprep.subr.mxu0 0.0
    %2271 = vmatpush1.msra.mxu0 0.0
    %2272 = vmatprep.subr.mxu0 0.0
    %2273 = vmatpush1.msra.mxu0 0.0
    %2274 = vmatprep.subr.mxu0 0.0
    %2275 = vmatpush1.msra.mxu0 0.0
    %2276 = vmatprep.subr.mxu0 0.0
    %2277 = vmatpush1.msra.mxu0 0.0
    %2278 = vmatprep.mubr.f32.mxu0 0.0
    %2279 = vmatmul.mubr.f32.gmra.mrb[0].mxu0 %v1994
    %v2280 = vpop.f32.mrb[0].mxu0
    %v2281 = vadd.f32 %v133, %v2280
    %v2282 = vpop.f32.mrb[0].mxu0
    %2283 = vdwg.mxu0
    %v2284 = vadd.f32 %v2069, %v2210
    %v2285 = vxor.u32 %v2284, 2147483648
    %v2286 = vmul.f32 %v2285, 1.442695
    %v2287 = vpow.pop %v2286
    %v2288 = vadd.f32 %v2287, 1.0
    %v2289 = vrcp.pop %v2288
    %v2290 = vmul.f32 1.0, %v2289
    %v2291 = vadd.f32 %v2071, %v2212
    %v2292 = vxor.u32 %v2291, 2147483648
    %v2293 = vmul.f32 %v2292, 1.442695
    %v2294 = vpow.pop %v2293
    %v2295 = vadd.f32 %v2294, 1.0
    %v2296 = vrcp.pop %v2295
    %v2297 = vmul.f32 1.0, %v2296
    %v2298 = vmul.f32 %v2290, %v2281
    %v2299 = vadd.f32 %v2140, %v2298
    %v2300 = vtanh.pop %v2299
    %v2301 = vsub.f32 1.0, %v2297
    %v2302 = vmul.f32 %v2301, %v2300
    %v2303 = vmul.f32 %v2297, %v1994
    %v2304 = vadd.f32 %v2302, %v2303
    %s2305 = scalar_lea.vmem %s6, 48
    %2306 = vst [vmem:[%s2305] sm:$0xff] %v2304
    %s2307 = scalar_lea.vmem %s0, 56
    %v2308 = vld [vmem:[%s2307] sm:$0xff]
    %v2310 = vsel %vm139, %v2308, 0
    %2312 = vmatprep.subr.mxu0 %v44
    %2313 = vmatpush1.msra.mxu0 %v43
    %2314 = vmatprep.subr.mxu0 %v47
    %2315 = vmatpush1.msra.mxu0 %v46
    %2316 = vmatprep.subr.mxu0 %v50
    %2317 = vmatpush1.msra.mxu0 %v49
    %2318 = vmatprep.subr.mxu0 %v53
    %2319 = vmatpush1.msra.mxu0 %v52
    %2320 = vmatprep.subr.mxu0 0.0
    %2321 = vmatpush1.msra.mxu0 0.0
    %2322 = vmatprep.subr.mxu0 0.0
    %2323 = vmatpush1.msra.mxu0 0.0
    %2324 = vmatprep.subr.mxu0 0.0
    %2325 = vmatpush1.msra.mxu0 0.0
    %2326 = vmatprep.subr.mxu0 0.0
    %2327 = vmatpush1.msra.mxu0 0.0
    %2328 = vmatprep.subr.mxu0 0.0
    %2329 = vmatpush1.msra.mxu0 0.0
    %2330 = vmatprep.subr.mxu0 0.0
    %2331 = vmatpush1.msra.mxu0 0.0
    %2332 = vmatprep.subr.mxu0 0.0
    %2333 = vmatpush1.msra.mxu0 0.0
    %2334 = vmatprep.subr.mxu0 0.0
    %2335 = vmatpush1.msra.mxu0 0.0
    %2336 = vmatprep.subr.mxu0 0.0
    %2337 = vmatpush1.msra.mxu0 0.0
    %2338 = vmatprep.subr.mxu0 0.0
    %2339 = vmatpush1.msra.mxu0 0.0
    %2340 = vmatprep.subr.mxu0 0.0
    %2341 = vmatpush1.msra.mxu0 0.0
    %2342 = vmatprep.subr.mxu0 0.0
    %2343 = vmatpush1.msra.mxu0 0.0
    %2344 = vmatprep.subr.mxu0 0.0
    %2345 = vmatpush1.msra.mxu0 0.0
    %2346 = vmatprep.subr.mxu0 0.0
    %2347 = vmatpush1.msra.mxu0 0.0
    %2348 = vmatprep.subr.mxu0 0.0
    %2349 = vmatpush1.msra.mxu0 0.0
    %2350 = vmatprep.subr.mxu0 0.0
    %2351 = vmatpush1.msra.mxu0 0.0
    %2352 = vmatprep.subr.mxu0 0.0
    %2353 = vmatpush1.msra.mxu0 0.0
    %2354 = vmatprep.subr.mxu0 0.0
    %2355 = vmatpush1.msra.mxu0 0.0
    %2356 = vmatprep.subr.mxu0 0.0
    %2357 = vmatpush1.msra.mxu0 0.0
    %2358 = vmatprep.subr.mxu0 0.0
    %2359 = vmatpush1.msra.mxu0 0.0
    %2360 = vmatprep.subr.mxu0 0.0
    %2361 = vmatpush1.msra.mxu0 0.0
    %2362 = vmatprep.subr.mxu0 0.0
    %2363 = vmatpush1.msra.mxu0 0.0
    %2364 = vmatprep.subr.mxu0 0.0
    %2365 = vmatpush1.msra.mxu0 0.0
    %2366 = vmatprep.subr.mxu0 0.0
    %2367 = vmatpush1.msra.mxu0 0.0
    %2368 = vmatprep.subr.mxu0 0.0
    %2369 = vmatpush1.msra.mxu0 0.0
    %2370 = vmatprep.subr.mxu0 0.0
    %2371 = vmatpush1.msra.mxu0 0.0
    %2372 = vmatprep.subr.mxu0 0.0
    %2373 = vmatpush1.msra.mxu0 0.0
    %2374 = vmatprep.subr.mxu0 0.0
    %2375 = vmatpush1.msra.mxu0 0.0
    %2376 = vmatprep.mubr.f32.mxu0 0.0
    %2377 = vmatmul.mubr.f32.gmra.mrb[0].mxu0 %v2310
    %v2378 = vpop.f32.mrb[0].mxu0
    %v2379 = vadd.f32 %v108, %v2378
    %v2380 = vpop.f32.mrb[0].mxu0
    %v2381 = vadd.f32 %v112, %v2380
    %2382 = vdwg.mxu0
    %2383 = vmatprep.subr.mxu0 0.0
    %2384 = vmatpush1.msra.mxu0 %v45
    %2385 = vmatprep.subr.mxu0 0.0
    %2386 = vmatpush1.msra.mxu0 %v48
    %2387 = vmatprep.subr.mxu0 0.0
    %2388 = vmatpush1.msra.mxu0 %v51
    %2389 = vmatprep.subr.mxu0 0.0
    %2390 = vmatpush1.msra.mxu0 %v54
    %2391 = vmatprep.subr.mxu0 0.0
    %2392 = vmatpush1.msra.mxu0 0.0
    %2393 = vmatprep.subr.mxu0 0.0
    %2394 = vmatpush1.msra.mxu0 0.0
    %2395 = vmatprep.subr.mxu0 0.0
    %2396 = vmatpush1.msra.mxu0 0.0
    %2397 = vmatprep.subr.mxu0 0.0
    %2398 = vmatpush1.msra.mxu0 0.0
    %2399 = vmatprep.subr.mxu0 0.0
    %2400 = vmatpush1.msra.mxu0 0.0
    %2401 = vmatprep.subr.mxu0 0.0
    %2402 = vmatpush1.msra.mxu0 0.0
    %2403 = vmatprep.subr.mxu0 0.0
    %2404 = vmatpush1.msra.mxu0 0.0
    %2405 = vmatprep.subr.mxu0 0.0
    %2406 = vmatpush1.msra.mxu0 0.0
    %2407 = vmatprep.subr.mxu0 0.0
    %2408 = vmatpush1.msra.mxu0 0.0
    %2409 = vmatprep.subr.mxu0 0.0
    %2410 = vmatpush1.msra.mxu0 0.0
    %2411 = vmatprep.subr.mxu0 0.0
    %2412 = vmatpush1.msra.mxu0 0.0
    %2413 = vmatprep.subr.mxu0 0.0
    %2414 = vmatpush1.msra.mxu0 0.0
    %2415 = vmatprep.subr.mxu0 0.0
    %2416 = vmatpush1.msra.mxu0 0.0
    %2417 = vmatprep.subr.mxu0 0.0
    %2418 = vmatpush1.msra.mxu0 0.0
    %2419 = vmatprep.subr.mxu0 0.0
    %2420 = vmatpush1.msra.mxu0 0.0
    %2421 = vmatprep.subr.mxu0 0.0
    %2422 = vmatpush1.msra.mxu0 0.0
    %2423 = vmatprep.subr.mxu0 0.0
    %2424 = vmatpush1.msra.mxu0 0.0
    %2425 = vmatprep.subr.mxu0 0.0
    %2426 = vmatpush1.msra.mxu0 0.0
    %2427 = vmatprep.subr.mxu0 0.0
    %2428 = vmatpush1.msra.mxu0 0.0
    %2429 = vmatprep.subr.mxu0 0.0
    %2430 = vmatpush1.msra.mxu0 0.0
    %2431 = vmatprep.subr.mxu0 0.0
    %2432 = vmatpush1.msra.mxu0 0.0
    %2433 = vmatprep.subr.mxu0 0.0
    %2434 = vmatpush1.msra.mxu0 0.0
    %2435 = vmatprep.subr.mxu0 0.0
    %2436 = vmatpush1.msra.mxu0 0.0
    %2437 = vmatprep.subr.mxu0 0.0
    %2438 = vmatpush1.msra.mxu0 0.0
    %2439 = vmatprep.subr.mxu0 0.0
    %2440 = vmatpush1.msra.mxu0 0.0
    %2441 = vmatprep.subr.mxu0 0.0
    %2442 = vmatpush1.msra.mxu0 0.0
    %2443 = vmatprep.subr.mxu0 0.0
    %2444 = vmatpush1.msra.mxu0 0.0
    %2445 = vmatprep.subr.mxu0 0.0
    %2446 = vmatpush1.msra.mxu0 0.0
    %2447 = vmatprep.mubr.f32.mxu0 0.0
    %2448 = vmatmul.mubr.f32.gmra.mrb[0].mxu0 %v2310
    %v2449 = vpop.f32.mrb[0].mxu0
    %v2450 = vadd.f32 %v116, %v2449
    %v2451 = vpop.f32.mrb[0].mxu0
    %2452 = vdwg.mxu0
    %2453 = vmatprep.subr.mxu0 %v56
    %2454 = vmatpush1.msra.mxu0 %v55
    %2455 = vmatprep.subr.mxu0 %v59
    %2456 = vmatpush1.msra.mxu0 %v58
    %2457 = vmatprep.subr.mxu0 %v62
    %2458 = vmatpush1.msra.mxu0 %v61
    %2459 = vmatprep.subr.mxu0 %v65
    %2460 = vmatpush1.msra.mxu0 %v64
    %2461 = vmatprep.subr.mxu0 %v68
    %2462 = vmatpush1.msra.mxu0 %v67
    %2463 = vmatprep.subr.mxu0 %v71
    %2464 = vmatpush1.msra.mxu0 %v70
    %2465 = vmatprep.subr.mxu0 %v74
    %2466 = vmatpush1.msra.mxu0 %v73
    %2467 = vmatprep.subr.mxu0 %v77
    %2468 = vmatpush1.msra.mxu0 %v76
    %2469 = vmatprep.subr.mxu0 %v80
    %2470 = vmatpush1.msra.mxu0 %v79
    %2471 = vmatprep.subr.mxu0 %v83
    %2472 = vmatpush1.msra.mxu0 %v82
    %2473 = vmatprep.subr.mxu0 %v86
    %2474 = vmatpush1.msra.mxu0 %v85
    %2475 = vmatprep.subr.mxu0 %v89
    %2476 = vmatpush1.msra.mxu0 %v88
    %2477 = vmatprep.subr.mxu0 %v92
    %2478 = vmatpush1.msra.mxu0 %v91
    %2479 = vmatprep.subr.mxu0 %v95
    %2480 = vmatpush1.msra.mxu0 %v94
    %2481 = vmatprep.subr.mxu0 %v98
    %2482 = vmatpush1.msra.mxu0 %v97
    %2483 = vmatprep.subr.mxu0 %v101
    %2484 = vmatpush1.msra.mxu0 %v100
    %2485 = vmatprep.subr.mxu0 0.0
    %2486 = vmatpush1.msra.mxu0 0.0
    %2487 = vmatprep.subr.mxu0 0.0
    %2488 = vmatpush1.msra.mxu0 0.0
    %2489 = vmatprep.subr.mxu0 0.0
    %2490 = vmatpush1.msra.mxu0 0.0
    %2491 = vmatprep.subr.mxu0 0.0
    %2492 = vmatpush1.msra.mxu0 0.0
    %2493 = vmatprep.subr.mxu0 0.0
    %2494 = vmatpush1.msra.mxu0 0.0
    %2495 = vmatprep.subr.mxu0 0.0
    %2496 = vmatpush1.msra.mxu0 0.0
    %2497 = vmatprep.subr.mxu0 0.0
    %2498 = vmatpush1.msra.mxu0 0.0
    %2499 = vmatprep.subr.mxu0 0.0
    %2500 = vmatpush1.msra.mxu0 0.0
    %2501 = vmatprep.subr.mxu0 0.0
    %2502 = vmatpush1.msra.mxu0 0.0
    %2503 = vmatprep.subr.mxu0 0.0
    %2504 = vmatpush1.msra.mxu0 0.0
    %2505 = vmatprep.subr.mxu0 0.0
    %2506 = vmatpush1.msra.mxu0 0.0
    %2507 = vmatprep.subr.mxu0 0.0
    %2508 = vmatpush1.msra.mxu0 0.0
    %2509 = vmatprep.subr.mxu0 0.0
    %2510 = vmatpush1.msra.mxu0 0.0
    %2511 = vmatprep.subr.mxu0 0.0
    %2512 = vmatpush1.msra.mxu0 0.0
    %2513 = vmatprep.subr.mxu0 0.0
    %2514 = vmatpush1.msra.mxu0 0.0
    %2515 = vmatprep.subr.mxu0 0.0
    %2516 = vmatpush1.msra.mxu0 0.0
    %2517 = vmatprep.mubr.f32.mxu0 0.0
    %2518 = vmatmul.mubr.f32.gmra.mrb[0].mxu0 %v2304
    %v2519 = vpop.f32.mrb[0].mxu0
    %v2520 = vadd.f32 %v125, %v2519
    %v2521 = vpop.f32.mrb[0].mxu0
    %v2522 = vadd.f32 %v129, %v2521
    %2523 = vdwg.mxu0
    %2524 = vmatprep.subr.mxu0 0.0
    %2525 = vmatpush1.msra.mxu0 %v57
    %2526 = vmatprep.subr.mxu0 0.0
    %2527 = vmatpush1.msra.mxu0 %v60
    %2528 = vmatprep.subr.mxu0 0.0
    %2529 = vmatpush1.msra.mxu0 %v63
    %2530 = vmatprep.subr.mxu0 0.0
    %2531 = vmatpush1.msra.mxu0 %v66
    %2532 = vmatprep.subr.mxu0 0.0
    %2533 = vmatpush1.msra.mxu0 %v69
    %2534 = vmatprep.subr.mxu0 0.0
    %2535 = vmatpush1.msra.mxu0 %v72
    %2536 = vmatprep.subr.mxu0 0.0
    %2537 = vmatpush1.msra.mxu0 %v75
    %2538 = vmatprep.subr.mxu0 0.0
    %2539 = vmatpush1.msra.mxu0 %v78
    %2540 = vmatprep.subr.mxu0 0.0
    %2541 = vmatpush1.msra.mxu0 %v81
    %2542 = vmatprep.subr.mxu0 0.0
    %2543 = vmatpush1.msra.mxu0 %v84
    %2544 = vmatprep.subr.mxu0 0.0
    %2545 = vmatpush1.msra.mxu0 %v87
    %2546 = vmatprep.subr.mxu0 0.0
    %2547 = vmatpush1.msra.mxu0 %v90
    %2548 = vmatprep.subr.mxu0 0.0
    %2549 = vmatpush1.msra.mxu0 %v93
    %2550 = vmatprep.subr.mxu0 0.0
    %2551 = vmatpush1.msra.mxu0 %v96
    %2552 = vmatprep.subr.mxu0 0.0
    %2553 = vmatpush1.msra.mxu0 %v99
    %2554 = vmatprep.subr.mxu0 0.0
    %2555 = vmatpush1.msra.mxu0 %v102
    %2556 = vmatprep.subr.mxu0 0.0
    %2557 = vmatpush1.msra.mxu0 0.0
    %2558 = vmatprep.subr.mxu0 0.0
    %2559 = vmatpush1.msra.mxu0 0.0
    %2560 = vmatprep.subr.mxu0 0.0
    %2561 = vmatpush1.msra.mxu0 0.0
    %2562 = vmatprep.subr.mxu0 0.0
    %2563 = vmatpush1.msra.mxu0 0.0
    %2564 = vmatprep.subr.mxu0 0.0
    %2565 = vmatpush1.msra.mxu0 0.0
    %2566 = vmatprep.subr.mxu0 0.0
    %2567 = vmatpush1.msra.mxu0 0.0
    %2568 = vmatprep.subr.mxu0 0.0
    %2569 = vmatpush1.msra.mxu0 0.0
    %2570 = vmatprep.subr.mxu0 0.0
    %2571 = vmatpush1.msra.mxu0 0.0
    %2572 = vmatprep.subr.mxu0 0.0
    %2573 = vmatpush1.msra.mxu0 0.0
    %2574 = vmatprep.subr.mxu0 0.0
    %2575 = vmatpush1.msra.mxu0 0.0
    %2576 = vmatprep.subr.mxu0 0.0
    %2577 = vmatpush1.msra.mxu0 0.0
    %2578 = vmatprep.subr.mxu0 0.0
    %2579 = vmatpush1.msra.mxu0 0.0
    %2580 = vmatprep.subr.mxu0 0.0
    %2581 = vmatpush1.msra.mxu0 0.0
    %2582 = vmatprep.subr.mxu0 0.0
    %2583 = vmatpush1.msra.mxu0 0.0
    %2584 = vmatprep.subr.mxu0 0.0
    %2585 = vmatpush1.msra.mxu0 0.0
    %2586 = vmatprep.subr.mxu0 0.0
    %2587 = vmatpush1.msra.mxu0 0.0
    %2588 = vmatprep.mubr.f32.mxu0 0.0
    %2589 = vmatmul.mubr.f32.gmra.mrb[0].mxu0 %v2304
    %v2590 = vpop.f32.mrb[0].mxu0
    %v2591 = vadd.f32 %v133, %v2590
    %v2592 = vpop.f32.mrb[0].mxu0
    %2593 = vdwg.mxu0
    %v2594 = vadd.f32 %v2379, %v2520
    %v2595 = vxor.u32 %v2594, 2147483648
    %v2596 = vmul.f32 %v2595, 1.442695
    %v2597 = vpow.pop %v2596
    %v2598 = vadd.f32 %v2597, 1.0
    %v2599 = vrcp.pop %v2598
    %v2600 = vmul.f32 1.0, %v2599
    %v2601 = vadd.f32 %v2381, %v2522
    %v2602 = vxor.u32 %v2601, 2147483648
    %v2603 = vmul.f32 %v2602, 1.442695
    %v2604 = vpow.pop %v2603
    %v2605 = vadd.f32 %v2604, 1.0
    %v2606 = vrcp.pop %v2605
    %v2607 = vmul.f32 1.0, %v2606
    %v2608 = vmul.f32 %v2600, %v2591
    %v2609 = vadd.f32 %v2450, %v2608
    %v2610 = vtanh.pop %v2609
    %v2611 = vsub.f32 1.0, %v2607
    %v2612 = vmul.f32 %v2611, %v2610
    %v2613 = vmul.f32 %v2607, %v2304
    %v2614 = vadd.f32 %v2612, %v2613
    %s2615 = scalar_lea.vmem %s6, 56
    %2616 = vst [vmem:[%s2615] sm:$0xff] %v2614
    %2617 = vst [vmem:[#allocation2] sm:$0xff] %v2614
    // Predicated region
    $region34: #{decoder_forward.2} parent=1 // pred_check
      _
    $region35: #{decoder_forward.2} parent=1 // pred_check_branch
      %2619 = sbr.rel (0) target = $region37
    $region36: #{decoder_forward.2} parent=1 // pred_region
      _
    $region37: #{decoder_forward.2} parent=1 // pred_fallthru
      _
    // Predicated region
    $region38: #{decoder_forward.2} parent=1 // pred_check
      _
    $region39: #{decoder_forward.2} parent=1 // pred_check_branch
      %2621 = sbr.rel (0) target = $region41
    $region40: #{decoder_forward.2} parent=1 // pred_region
      _
    $region41: #{decoder_forward.2} parent=1 // pred_fallthru
      _
    %2622 = vsyncpa [#allocation4], 1

</llo_original>
